<compile_context>
chip_gen: v7x
topology: tpu7x:2x2x1
jax: 0.10.0
libtpu: 0.0.40
codegen_flags: <defaults>
</compile_context>

<pallas_src>
import functools
import math

import jax
import jax.numpy as jnp
from jax.experimental import pallas as pl
from jax.experimental.pallas import tpu as pltpu


# ----------------------------------------------------------------------------- kernel

def _decoder_kernel(x_ref,
                    ln1_g, ln1_b, wqkv, bqkv, wo, bo,
                    ln2_g, ln2_b, w1, b1, w2, b2,
                    wh, bh,
                    o_ref, acc_ref, *, num_head):
    """One grid step = one (batch-tile, layer) pair.

    The activation (S, Bt, C) lives in `acc_ref` (f32 VMEM scratch) and is carried
    across the layer grid axis; the block-diagonal head projection is applied and
    the output block written only at the last layer.
    """
    S, Bt, C = acc_ref.shape
    N = S * Bt
    hd = C // num_head
    scale = 1.0 / math.sqrt(hd)
    layer = pl.program_id(1)
    n_layer = pl.num_programs(1)

    @pl.when(layer == 0)
    def _():
        acc_ref[...] = x_ref[...].astype(jnp.float32)

    x = acc_ref[...]                         # (S, Bt, C) f32
    xf = x.reshape(N, C)

    def layernorm(v, g_ref, b_ref):
        # single-pass mean / mean-of-squares, f32 statistics
        m = jnp.mean(v, axis=-1, keepdims=True)
        m2 = jnp.mean(v * v, axis=-1, keepdims=True)
        var = m2 - m * m
        # TODO(synk): eps=1e-6 matches timm ViT; plain nn.LayerNorm default is 1e-5.
        return (v - m) * jax.lax.rsqrt(var + 1e-6) * g_ref[0] + b_ref[0]

    # ---- multi-head self-attention (pre-LN), fused lane-dense QKV ----
    xn = layernorm(xf, ln1_g, ln1_b)
    qkv = jnp.dot(xn.astype(jnp.bfloat16), wqkv[0],
                  preferred_element_type=jnp.float32) + bqkv[0]          # (N, 3C) f32
    qkv3 = qkv.reshape(S, Bt, 3 * C)

    outs = []
    for bi in range(Bt):                      # Bt, num_head are small & static
        row = qkv3[:, bi, :]                  # (S, 3C)
        heads = []
        for h in range(num_head):
            qh = (row[:, h * hd:(h + 1) * hd] * scale).astype(jnp.bfloat16)
            kh = row[:, C + h * hd:C + (h + 1) * hd].astype(jnp.bfloat16)
            vh = row[:, 2 * C + h * hd:2 * C + (h + 1) * hd].astype(jnp.bfloat16)
            s = jnp.dot(qh, kh.T, preferred_element_type=jnp.float32)    # (S, S)
            s = s - jnp.max(s, axis=-1, keepdims=True)
            p = jnp.exp(s)
            p = p * pl.reciprocal(jnp.sum(p, axis=-1, keepdims=True), approx=True)
            heads.append(jnp.dot(p.astype(jnp.bfloat16), vh,
                                 preferred_element_type=jnp.float32))
        outs.append(jnp.concatenate(heads, axis=-1))                     # (S, C)
    attn = jnp.stack(outs, axis=1).reshape(N, C)                         # (N, C)

    proj = jnp.dot(attn.astype(jnp.bfloat16), wo[0],
                   preferred_element_type=jnp.float32) + bo[0]
    x1 = xf + proj                                                       # residual, f32

    # ---- MLP (pre-LN) ----
    xn2 = layernorm(x1, ln2_g, ln2_b)
    h1 = jnp.dot(xn2.astype(jnp.bfloat16), w1[0],
                 preferred_element_type=jnp.float32) + b1[0]
    # TODO(synk): torch nn.GELU default is exact erf; tanh approximation used here.
    h1 = jax.nn.gelu(h1, approximate=True)
    h2 = jnp.dot(h1.astype(jnp.bfloat16), w2[0],
                 preferred_element_type=jnp.float32) + b2[0]
    x2 = x1 + h2                                                         # (N, C)

    acc_ref[...] = x2.reshape(S, Bt, C)

    @pl.when(layer == n_layer - 1)
    def _():
        # fused lane-dense block-diagonal head: (N, C) @ (C, Do) + bias
        Do = o_ref.shape[-1]
        y = jnp.dot(x2.astype(jnp.bfloat16), wh[...],
                    preferred_element_type=jnp.float32) + bh[...]        # (N, Do)
        o_ref[...] = y.reshape(S, Bt, Do).astype(o_ref.dtype)


# ----------------------------------------------------------------------------- wrapper

def _pick_batch_tile(B, S, C):
    """Rows-per-grid-step heuristic.  Full batch unless it blows a few-MiB budget;
    when splitting, keep the batch tile a multiple of 8 (sublane) so the block is legal."""
    if B % 8 != 0:
        return B
    bt = B
    while bt * S * C * 4 > (2 << 20) and bt % 16 == 0:
        bt //= 2
    return bt


def decoder_stack(feats, tb, w_head_bd, b_head_bd, *, num_head):
    """feats: (S, B, C) time-major; tb: dict of layer-stacked weights.
    Returns the block-diagonal-head output (S, B, dim_indices*dim_tokens)."""
    S, B, C = feats.shape
    Do = w_head_bd.shape[1]
    names = ['ln1_g', 'ln1_b', 'wqkv', 'bqkv', 'wo', 'bo',
             'ln2_g', 'ln2_b', 'w1', 'b1', 'w2', 'b2']
    weights = [tb[n] for n in names]
    L = tb['wqkv'].shape[0]
    Bt = _pick_batch_tile(B, S, C)
    nb = B // Bt

    def wspec(w):
        rest = tuple(w.shape[1:])
        nrest = len(rest)
        return pl.BlockSpec((1,) + rest, lambda b, l, n=nrest: (l,) + (0,) * n)

    in_specs = ([pl.BlockSpec((S, Bt, C), lambda b, l: (0, b, 0))]
                + [wspec(w) for w in weights]
                + [pl.BlockSpec(w_head_bd.shape, lambda b, l: (0, 0)),
                   pl.BlockSpec(b_head_bd.shape, lambda b, l: (0, 0))])
    out_specs = pl.BlockSpec((S, Bt, Do), lambda b, l: (0, b, 0))

    return pl.pallas_call(
        functools.partial(_decoder_kernel, num_head=num_head),
        out_shape=jax.ShapeDtypeStruct((S, B, Do), jnp.float32),
        grid=(nb, L),                                   # layer (carried) axis last
        in_specs=in_specs,
        out_specs=out_specs,
        scratch_shapes=[pltpu.VMEM((S, Bt, C), jnp.float32)],
        compiler_params=pltpu.CompilerParams(
            dimension_semantics=("parallel", "arbitrary"),
            # explicit scoped-VMEM budget (re-derive for large C / v7x's 64 MiB VMEM)
            vmem_limit_bytes=32 * 1024 * 1024),
    )(feats, *weights, w_head_bd, b_head_bd)


def mae_decoder_forward(features, backward_indexes, params, *, dim_indices, num_head):
    """Matches MAE_Decoder.forward (trainable_position=True).

    features:          (T, B, C) float32, C = emb_dim * dim_indices
    backward_indexes:  (seq_length, B) int32
    returns: patches (B, seq, dim_indices, dim_tokens), mask (B, seq, dim_indices)
    """
    T, B, C = features.shape
    bi = jnp.concatenate([jnp.zeros((1, B), dtype=backward_indexes.dtype),
                          backward_indexes + 1], axis=0)                 # (S, B)
    S = bi.shape[0]

    # append mask tokens, un-shuffle (take_indexes), add positional embedding (XLA glue)
    feats = jnp.concatenate(
        [features, jnp.broadcast_to(params['mask_token'], (S - T, B, C))], axis=0)
    idx = jnp.broadcast_to(bi[:, :, None], (S, B, C)).astype(jnp.int32)
    feats = jnp.take_along_axis(feats, idx, axis=0)
    feats = feats + params['pos_embedding']                              # (S, B, C)

    # transformer + fused block-diagonal head: one pallas_call, time-major in/out
    out = decoder_stack(feats, params['tblocks'], params['head_w_bd'],
                        params['head_b_bd'], num_head=num_head)          # (S, B, Do)
    seq = S - 1
    dim_tokens = params['head_w_bd'].shape[1] // dim_indices

    # drop class token, reshape to (B, seq, dim_indices, dim_tokens)
    patches = jnp.transpose(out[1:].reshape(seq, B, dim_indices, dim_tokens),
                            (1, 0, 2, 3))

    # mask is constant across the channel dim -> compute per (t, b) and broadcast
    mask_seq = jnp.zeros((seq, B), jnp.float32).at[T:].set(1.0)
    mask_tb = jnp.take_along_axis(mask_seq, (bi[1:] - 1).astype(jnp.int32), axis=0)
    mask = jnp.broadcast_to(jnp.transpose(mask_tb)[:, :, None], (B, seq, dim_indices))
    return patches, mask


# ----------------------------------------------------------------------------- params

def init_params(key, seq_length, emb_dim, dim_indices, num_layer, num_head, dim_tokens):
    C = emb_dim * dim_indices
    H = 4 * C
    wdt = jnp.bfloat16        # MXU operand dtype; LN params / biases / softmax stay f32
    keys = jax.random.split(key, 3 + num_layer)

    head_w = 0.02 * jax.random.normal(keys[2], (emb_dim, dim_tokens), jnp.float32)
    head_b = jnp.zeros((dim_tokens,), jnp.float32)

    params = {
        'mask_token': 0.02 * jax.random.normal(keys[0], (1, 1, C), jnp.float32),
        'pos_embedding': 0.02 * jax.random.normal(keys[1], (seq_length + 1, 1, C),
                                                  jnp.float32),
        # lane-dense block-diagonal head weight: (C, dim_indices * dim_tokens)
        'head_w_bd': jnp.kron(jnp.eye(dim_indices, dtype=jnp.float32), head_w).astype(wdt),
        'head_b_bd': jnp.tile(head_b[None, :], (1, dim_indices)),
    }

    layers = []
    for l in range(num_layer):
        k = jax.random.split(keys[3 + l], 4)
        layers.append(dict(
            ln1_g=jnp.ones((1, C), jnp.float32), ln1_b=jnp.zeros((1, C), jnp.float32),
            wqkv=(0.02 * jax.random.normal(k[0], (C, 3 * C), jnp.float32)).astype(wdt),
            bqkv=jnp.zeros((1, 3 * C), jnp.float32),
            wo=(0.02 * jax.random.normal(k[1], (C, C), jnp.float32)).astype(wdt),
            bo=jnp.zeros((1, C), jnp.float32),
            ln2_g=jnp.ones((1, C), jnp.float32), ln2_b=jnp.zeros((1, C), jnp.float32),
            w1=(0.02 * jax.random.normal(k[2], (C, H), jnp.float32)).astype(wdt),
            b1=jnp.zeros((1, H), jnp.float32),
            w2=(0.02 * jax.random.normal(k[3], (H, C), jnp.float32)).astype(wdt),
            b2=jnp.zeros((1, C), jnp.float32),
        ))
    # stack per-layer weights on a leading layer axis so one pallas_call streams them
    params['tblocks'] = {k2: jnp.stack([lp[k2] for lp in layers], axis=0)
                         for k2 in layers[0]}
    return params


# ----------------------------------------------------------------------------- main

if __name__ == "__main__":
    seq_length = 8       # number of patch tokens
    emb_dim = 8
    dim_indices = 4
    num_head = 2
    num_layer = 2
    dim_tokens = 16
    B = 2
    T_vis = 5            # visible tokens (incl. class token), < seq_length + 1
    C = emb_dim * dim_indices

    key = jax.random.PRNGKey(0)
    kf, kp, ki = jax.random.split(key, 3)

    params = init_params(kp, seq_length, emb_dim, dim_indices, num_layer, num_head,
                         dim_tokens)
    features = jax.random.normal(kf, (T_vis, B, C), jnp.float32)
    perm_keys = jax.random.split(ki, B)
    backward_indexes = jnp.stack(
        [jax.random.permutation(perm_keys[b], seq_length) for b in range(B)],
        axis=1).astype(jnp.int32)                                        # (seq_length, B)

    patches, mask = mae_decoder_forward(
        features, backward_indexes, params,
        dim_indices=dim_indices, num_head=num_head)
    jax.block_until_ready((patches, mask))

    assert patches.shape == (B, seq_length, dim_indices, dim_tokens)
    assert mask.shape == (B, seq_length, dim_indices)
    print("KERNEL_OK")
</pallas_src>

<mosaic_0001>
module attributes {stable_mosaic.version = 11 : i64} {
  func.func @_decoder_kernel(%arg0: i32, %arg1: i32, %arg2: memref<9x2x32xf32, #tpu.memory_space<vmem>>, %arg3: memref<1x1x32xf32, #tpu.memory_space<vmem>>, %arg4: memref<1x1x32xf32, #tpu.memory_space<vmem>>, %arg5: memref<1x32x96xbf16, #tpu.memory_space<vmem>>, %arg6: memref<1x1x96xf32, #tpu.memory_space<vmem>>, %arg7: memref<1x32x32xbf16, #tpu.memory_space<vmem>>, %arg8: memref<1x1x32xf32, #tpu.memory_space<vmem>>, %arg9: memref<1x1x32xf32, #tpu.memory_space<vmem>>, %arg10: memref<1x1x32xf32, #tpu.memory_space<vmem>>, %arg11: memref<1x32x128xbf16, #tpu.memory_space<vmem>>, %arg12: memref<1x1x128xf32, #tpu.memory_space<vmem>>, %arg13: memref<1x128x32xbf16, #tpu.memory_space<vmem>>, %arg14: memref<1x1x32xf32, #tpu.memory_space<vmem>>, %arg15: memref<32x64xbf16, #tpu.memory_space<vmem>>, %arg16: memref<1x64xf32, #tpu.memory_space<vmem>>, %arg17: memref<9x2x64xf32, #tpu.memory_space<vmem>>, %arg18: memref<9x2x32xf32, #tpu.memory_space<vmem>>) attributes {dimension_semantics = [#tpu.dimension_semantics<parallel>, #tpu.dimension_semantics<arbitrary>], iteration_bounds = array<i64: 1, 2>, scalar_prefetch = 0 : i64, scratch_operands = 1 : i64, tpu.core_type = #tpu.core_type<tc>, window_params = [{transform_indices = @transform_0, window_bounds = array<i64: 9, 2, 32>}, {transform_indices = @transform_1, window_bounds = array<i64: 1, 1, 32>}, {transform_indices = @transform_2, window_bounds = array<i64: 1, 1, 32>}, {transform_indices = @transform_3, window_bounds = array<i64: 1, 32, 96>}, {transform_indices = @transform_4, window_bounds = array<i64: 1, 1, 96>}, {transform_indices = @transform_5, window_bounds = array<i64: 1, 32, 32>}, {transform_indices = @transform_6, window_bounds = array<i64: 1, 1, 32>}, {transform_indices = @transform_7, window_bounds = array<i64: 1, 1, 32>}, {transform_indices = @transform_8, window_bounds = array<i64: 1, 1, 32>}, {transform_indices = @transform_9, window_bounds = array<i64: 1, 32, 128>}, {transform_indices = @transform_10, window_bounds = array<i64: 1, 1, 128>}, {transform_indices = @transform_11, window_bounds = array<i64: 1, 128, 32>}, {transform_indices = @transform_12, window_bounds = array<i64: 1, 1, 32>}, {pipeline_mode = #tpu.pipeline_mode<synchronous>, transform_indices = @transform_13, window_bounds = array<i64: 32, 64>}, {pipeline_mode = #tpu.pipeline_mode<synchronous>, transform_indices = @transform_14, window_bounds = array<i64: 1, 64>}, {transform_indices = @transform_15, window_bounds = array<i64: 9, 2, 64>}]} {
    %c0_i32 = arith.constant 0 : i32
    %0 = arith.cmpi eq, %arg1, %c0_i32 : i32
    %1 = arith.extui %0 : i1 to i32
    %c0_i32_0 = arith.constant 0 : i32
    %2 = arith.cmpi ne, %1, %c0_i32_0 : i32
    scf.if %2 {
      %c0_80 = arith.constant 0 : index
      %c0_81 = arith.constant 0 : index
      %c0_82 = arith.constant 0 : index
      %208 = vector.load %arg2[%c0_80, %c0_81, %c0_82] : memref<9x2x32xf32, #tpu.memory_space<vmem>>, vector<9x2x32xf32>
      %c0_83 = arith.constant 0 : index
      %c0_84 = arith.constant 0 : index
      %c0_85 = arith.constant 0 : index
      %209 = vector.load %arg18[%c0_83, %c0_84, %c0_85] : memref<9x2x32xf32, #tpu.memory_space<vmem>>, vector<9x2x32xf32>
      tpu.vector_store %arg18[%c0_83, %c0_84, %c0_85], %208 {strides = array<i32>} : memref<9x2x32xf32, #tpu.memory_space<vmem>>, vector<9x2x32xf32>,
    } else {
    }
    %c0 = arith.constant 0 : index
    %c0_1 = arith.constant 0 : index
    %c0_2 = arith.constant 0 : index
    %3 = vector.load %arg18[%c0, %c0_1, %c0_2] : memref<9x2x32xf32, #tpu.memory_space<vmem>>, vector<9x2x32xf32>
    %4 = vector.shape_cast %3 : vector<9x2x32xf32> to vector<18x32xf32>
    %cst = arith.constant dense<0.000000e+00> : vector<18xf32>
    %5 = vector.multi_reduction <add>, %4, %cst [1] : vector<18x32xf32> to vector<18xf32>
    %6 = vector.shape_cast %5 : vector<18xf32> to vector<18x1xf32>
    %cst_3 = arith.constant 3.200000e+01 : f32
    %7 = vector.broadcast %cst_3 : f32 to vector<18x1xf32>
    %8 = arith.divf %6, %7 : vector<18x1xf32>
    %9 = arith.mulf %4, %4 : vector<18x32xf32>
    %cst_4 = arith.constant dense<0.000000e+00> : vector<18xf32>
    %10 = vector.multi_reduction <add>, %9, %cst_4 [1] : vector<18x32xf32> to vector<18xf32>
    %11 = vector.shape_cast %10 : vector<18xf32> to vector<18x1xf32>
    %cst_5 = arith.constant 3.200000e+01 : f32
    %12 = vector.broadcast %cst_5 : f32 to vector<18x1xf32>
    %13 = arith.divf %11, %12 : vector<18x1xf32>
    %14 = arith.mulf %8, %8 : vector<18x1xf32>
    %15 = arith.subf %13, %14 : vector<18x1xf32>
    %16 = vector.broadcast %8 : vector<18x1xf32> to vector<18x32xf32>
    %17 = arith.subf %4, %16 : vector<18x32xf32>
    %cst_6 = arith.constant 9.99999997E-7 : f32
    %18 = vector.broadcast %cst_6 : f32 to vector<18x1xf32>
    %19 = arith.addf %15, %18 : vector<18x1xf32>
    %20 = math.rsqrt %19 : vector<18x1xf32>
    %21 = vector.broadcast %20 : vector<18x1xf32> to vector<18x32xf32>
    %22 = arith.mulf %17, %21 : vector<18x32xf32>
    %c0_7 = arith.constant 0 : index
    %c0_8 = arith.constant 0 : index
    %c0_9 = arith.constant 0 : index
    %23 = vector.load %arg3[%c0_7, %c0_8, %c0_9] : memref<1x1x32xf32, #tpu.memory_space<vmem>>, vector<1x1x32xf32>
    %24 = vector.shape_cast %23 : vector<1x1x32xf32> to vector<1x32xf32>
    %25 = vector.broadcast %24 : vector<1x32xf32> to vector<18x32xf32>
    %26 = arith.mulf %22, %25 : vector<18x32xf32>
    %c0_10 = arith.constant 0 : index
    %c0_11 = arith.constant 0 : index
    %c0_12 = arith.constant 0 : index
    %27 = vector.load %arg4[%c0_10, %c0_11, %c0_12] : memref<1x1x32xf32, #tpu.memory_space<vmem>>, vector<1x1x32xf32>
    %28 = vector.shape_cast %27 : vector<1x1x32xf32> to vector<1x32xf32>
    %29 = vector.broadcast %28 : vector<1x32xf32> to vector<18x32xf32>
    %30 = arith.addf %26, %29 : vector<18x32xf32>
    %31 = arith.truncf %30 : vector<18x32xf32> to vector<18x32xbf16>
    %c0_13 = arith.constant 0 : index
    %c0_14 = arith.constant 0 : index
    %c0_15 = arith.constant 0 : index
    %32 = vector.load %arg5[%c0_13, %c0_14, %c0_15] : memref<1x32x96xbf16, #tpu.memory_space<vmem>>, vector<1x32x96xbf16>
    %33 = vector.shape_cast %32 : vector<1x32x96xbf16> to vector<32x96xbf16>
    %cst_16 = arith.constant dense<0.000000e+00> : vector<18x96xf32>
    %34 = tpu.matmul %31, %33, %cst_16 {dimension_numbers = #tpu.dot_dimension_numbers<[1], [0], [0], [1], [0, 0, 1, 1], [], []>} : vector<18x32xbf16>, vector<32x96xbf16>, vector<18x96xf32> -> vector<18x96xf32>
    %c0_17 = arith.constant 0 : index
    %c0_18 = arith.constant 0 : index
    %c0_19 = arith.constant 0 : index
    %35 = vector.load %arg6[%c0_17, %c0_18, %c0_19] : memref<1x1x96xf32, #tpu.memory_space<vmem>>, vector<1x1x96xf32>
    %36 = vector.shape_cast %35 : vector<1x1x96xf32> to vector<1x96xf32>
    %37 = vector.broadcast %36 : vector<1x96xf32> to vector<18x96xf32>
    %38 = arith.addf %34, %37 : vector<18x96xf32>
    %39 = vector.shape_cast %38 : vector<18x96xf32> to vector<9x2x96xf32>
    %40 = vector.extract_strided_slice %39 {offsets = [0, 0, 0], sizes = [9, 1, 96], strides = [1, 1, 1]} : vector<9x2x96xf32> to vector<9x1x96xf32>
    %41 = vector.shape_cast %40 : vector<9x1x96xf32> to vector<9x96xf32>
    %42 = vector.extract_strided_slice %41 {offsets = [0, 0], sizes = [9, 16], strides = [1, 1]} : vector<9x96xf32> to vector<9x16xf32>
    %cst_20 = arith.constant 2.500000e-01 : f32
    %43 = vector.broadcast %cst_20 : f32 to vector<9x16xf32>
    %44 = arith.mulf %42, %43 : vector<9x16xf32>
    %45 = arith.truncf %44 : vector<9x16xf32> to vector<9x16xbf16>
    %46 = vector.extract_strided_slice %41 {offsets = [0, 32], sizes = [9, 16], strides = [1, 1]} : vector<9x96xf32> to vector<9x16xf32>
    %47 = arith.truncf %46 : vector<9x16xf32> to vector<9x16xbf16>
    %48 = vector.extract_strided_slice %41 {offsets = [0, 64], sizes = [9, 16], strides = [1, 1]} : vector<9x96xf32> to vector<9x16xf32>
    %49 = arith.truncf %48 : vector<9x16xf32> to vector<9x16xbf16>
    %50 = tpu.transpose %47, [1, 0] : vector<9x16xbf16> -> vector<16x9xbf16>
    %cst_21 = arith.constant dense<0.000000e+00> : vector<9x9xf32>
    %51 = tpu.matmul %45, %50, %cst_21 {dimension_numbers = #tpu.dot_dimension_numbers<[1], [0], [0], [1], [0, 0, 1, 1], [], []>} : vector<9x16xbf16>, vector<16x9xbf16>, vector<9x9xf32> -> vector<9x9xf32>
    %cst_22 = arith.constant dense<0xFF800000> : vector<9xf32>
    %52 = vector.multi_reduction <maximumf>, %51, %cst_22 [1] : vector<9x9xf32> to vector<9xf32>
    %53 = vector.shape_cast %52 : vector<9xf32> to vector<9x1xf32>
    %54 = vector.broadcast %53 : vector<9x1xf32> to vector<9x9xf32>
    %55 = arith.subf %51, %54 : vector<9x9xf32>
    %56 = math.exp %55 : vector<9x9xf32>
    %cst_23 = arith.constant dense<0.000000e+00> : vector<9xf32>
    %57 = vector.multi_reduction <add>, %56, %cst_23 [1] : vector<9x9xf32> to vector<9xf32>
    %58 = vector.shape_cast %57 : vector<9xf32> to vector<9x1xf32>
    %59 = tpu.reciprocal %58 {approx = true} : vector<9x1xf32> -> vector<9x1xf32>
    %60 = vector.broadcast %59 : vector<9x1xf32> to vector<9x9xf32>
    %61 = arith.mulf %56, %60 : vector<9x9xf32>
    %62 = arith.truncf %61 : vector<9x9xf32> to vector<9x9xbf16>
    %cst_24 = arith.constant dense<0.000000e+00> : vector<9x16xf32>
    %63 = tpu.matmul %62, %49, %cst_24 {dimension_numbers = #tpu.dot_dimension_numbers<[1], [0], [0], [1], [0, 0, 1, 1], [], []>} : vector<9x9xbf16>, vector<9x16xbf16>, vector<9x16xf32> -> vector<9x16xf32>
    %64 = vector.extract_strided_slice %41 {offsets = [0, 16], sizes = [9, 16], strides = [1, 1]} : vector<9x96xf32> to vector<9x16xf32>
    %cst_25 = arith.constant 2.500000e-01 : f32
    %65 = vector.broadcast %cst_25 : f32 to vector<9x16xf32>
    %66 = arith.mulf %64, %65 : vector<9x16xf32>
    %67 = arith.truncf %66 : vector<9x16xf32> to vector<9x16xbf16>
    %68 = vector.extract_strided_slice %41 {offsets = [0, 48], sizes = [9, 16], strides = [1, 1]} : vector<9x96xf32> to vector<9x16xf32>
    %69 = arith.truncf %68 : vector<9x16xf32> to vector<9x16xbf16>
    %70 = vector.extract_strided_slice %41 {offsets = [0, 80], sizes = [9, 16], strides = [1, 1]} : vector<9x96xf32> to vector<9x16xf32>
    %71 = arith.truncf %70 : vector<9x16xf32> to vector<9x16xbf16>
    %72 = tpu.transpose %69, [1, 0] : vector<9x16xbf16> -> vector<16x9xbf16>
    %cst_26 = arith.constant dense<0.000000e+00> : vector<9x9xf32>
    %73 = tpu.matmul %67, %72, %cst_26 {dimension_numbers = #tpu.dot_dimension_numbers<[1], [0], [0], [1], [0, 0, 1, 1], [], []>} : vector<9x16xbf16>, vector<16x9xbf16>, vector<9x9xf32> -> vector<9x9xf32>
    %cst_27 = arith.constant dense<0xFF800000> : vector<9xf32>
    %74 = vector.multi_reduction <maximumf>, %73, %cst_27 [1] : vector<9x9xf32> to vector<9xf32>
    %75 = vector.shape_cast %74 : vector<9xf32> to vector<9x1xf32>
    %76 = vector.broadcast %75 : vector<9x1xf32> to vector<9x9xf32>
    %77 = arith.subf %73, %76 : vector<9x9xf32>
    %78 = math.exp %77 : vector<9x9xf32>
    %cst_28 = arith.constant dense<0.000000e+00> : vector<9xf32>
    %79 = vector.multi_reduction <add>, %78, %cst_28 [1] : vector<9x9xf32> to vector<9xf32>
    %80 = vector.shape_cast %79 : vector<9xf32> to vector<9x1xf32>
    %81 = tpu.reciprocal %80 {approx = true} : vector<9x1xf32> -> vector<9x1xf32>
    %82 = vector.broadcast %81 : vector<9x1xf32> to vector<9x9xf32>
    %83 = arith.mulf %78, %82 : vector<9x9xf32>
    %84 = arith.truncf %83 : vector<9x9xf32> to vector<9x9xbf16>
    %cst_29 = arith.constant dense<0.000000e+00> : vector<9x16xf32>
    %85 = tpu.matmul %84, %71, %cst_29 {dimension_numbers = #tpu.dot_dimension_numbers<[1], [0], [0], [1], [0, 0, 1, 1], [], []>} : vector<9x9xbf16>, vector<9x16xbf16>, vector<9x16xf32> -> vector<9x16xf32>
    %86 = tpu.concatenate %63, %85 in 1 : vector<9x16xf32>, vector<9x16xf32> -> vector<9x32xf32>
    %87 = vector.extract_strided_slice %39 {offsets = [0, 1, 0], sizes = [9, 1, 96], strides = [1, 1, 1]} : vector<9x2x96xf32> to vector<9x1x96xf32>
    %88 = vector.shape_cast %87 : vector<9x1x96xf32> to vector<9x96xf32>
    %89 = vector.extract_strided_slice %88 {offsets = [0, 0], sizes = [9, 16], strides = [1, 1]} : vector<9x96xf32> to vector<9x16xf32>
    %cst_30 = arith.constant 2.500000e-01 : f32
    %90 = vector.broadcast %cst_30 : f32 to vector<9x16xf32>
    %91 = arith.mulf %89, %90 : vector<9x16xf32>
    %92 = arith.truncf %91 : vector<9x16xf32> to vector<9x16xbf16>
    %93 = vector.extract_strided_slice %88 {offsets = [0, 32], sizes = [9, 16], strides = [1, 1]} : vector<9x96xf32> to vector<9x16xf32>
    %94 = arith.truncf %93 : vector<9x16xf32> to vector<9x16xbf16>
    %95 = vector.extract_strided_slice %88 {offsets = [0, 64], sizes = [9, 16], strides = [1, 1]} : vector<9x96xf32> to vector<9x16xf32>
    %96 = arith.truncf %95 : vector<9x16xf32> to vector<9x16xbf16>
    %97 = tpu.transpose %94, [1, 0] : vector<9x16xbf16> -> vector<16x9xbf16>
    %cst_31 = arith.constant dense<0.000000e+00> : vector<9x9xf32>
    %98 = tpu.matmul %92, %97, %cst_31 {dimension_numbers = #tpu.dot_dimension_numbers<[1], [0], [0], [1], [0, 0, 1, 1], [], []>} : vector<9x16xbf16>, vector<16x9xbf16>, vector<9x9xf32> -> vector<9x9xf32>
    %cst_32 = arith.constant dense<0xFF800000> : vector<9xf32>
    %99 = vector.multi_reduction <maximumf>, %98, %cst_32 [1] : vector<9x9xf32> to vector<9xf32>
    %100 = vector.shape_cast %99 : vector<9xf32> to vector<9x1xf32>
    %101 = vector.broadcast %100 : vector<9x1xf32> to vector<9x9xf32>
    %102 = arith.subf %98, %101 : vector<9x9xf32>
    %103 = math.exp %102 : vector<9x9xf32>
    %cst_33 = arith.constant dense<0.000000e+00> : vector<9xf32>
    %104 = vector.multi_reduction <add>, %103, %cst_33 [1] : vector<9x9xf32> to vector<9xf32>
    %105 = vector.shape_cast %104 : vector<9xf32> to vector<9x1xf32>
    %106 = tpu.reciprocal %105 {approx = true} : vector<9x1xf32> -> vector<9x1xf32>
    %107 = vector.broadcast %106 : vector<9x1xf32> to vector<9x9xf32>
    %108 = arith.mulf %103, %107 : vector<9x9xf32>
    %109 = arith.truncf %108 : vector<9x9xf32> to vector<9x9xbf16>
    %cst_34 = arith.constant dense<0.000000e+00> : vector<9x16xf32>
    %110 = tpu.matmul %109, %96, %cst_34 {dimension_numbers = #tpu.dot_dimension_numbers<[1], [0], [0], [1], [0, 0, 1, 1], [], []>} : vector<9x9xbf16>, vector<9x16xbf16>, vector<9x16xf32> -> vector<9x16xf32>
    %111 = vector.extract_strided_slice %88 {offsets = [0, 16], sizes = [9, 16], strides = [1, 1]} : vector<9x96xf32> to vector<9x16xf32>
    %cst_35 = arith.constant 2.500000e-01 : f32
    %112 = vector.broadcast %cst_35 : f32 to vector<9x16xf32>
    %113 = arith.mulf %111, %112 : vector<9x16xf32>
    %114 = arith.truncf %113 : vector<9x16xf32> to vector<9x16xbf16>
    %115 = vector.extract_strided_slice %88 {offsets = [0, 48], sizes = [9, 16], strides = [1, 1]} : vector<9x96xf32> to vector<9x16xf32>
    %116 = arith.truncf %115 : vector<9x16xf32> to vector<9x16xbf16>
    %117 = vector.extract_strided_slice %88 {offsets = [0, 80], sizes = [9, 16], strides = [1, 1]} : vector<9x96xf32> to vector<9x16xf32>
    %118 = arith.truncf %117 : vector<9x16xf32> to vector<9x16xbf16>
    %119 = tpu.transpose %116, [1, 0] : vector<9x16xbf16> -> vector<16x9xbf16>
    %cst_36 = arith.constant dense<0.000000e+00> : vector<9x9xf32>
    %120 = tpu.matmul %114, %119, %cst_36 {dimension_numbers = #tpu.dot_dimension_numbers<[1], [0], [0], [1], [0, 0, 1, 1], [], []>} : vector<9x16xbf16>, vector<16x9xbf16>, vector<9x9xf32> -> vector<9x9xf32>
    %cst_37 = arith.constant dense<0xFF800000> : vector<9xf32>
    %121 = vector.multi_reduction <maximumf>, %120, %cst_37 [1] : vector<9x9xf32> to vector<9xf32>
    %122 = vector.shape_cast %121 : vector<9xf32> to vector<9x1xf32>
    %123 = vector.broadcast %122 : vector<9x1xf32> to vector<9x9xf32>
    %124 = arith.subf %120, %123 : vector<9x9xf32>
    %125 = math.exp %124 : vector<9x9xf32>
    %cst_38 = arith.constant dense<0.000000e+00> : vector<9xf32>
    %126 = vector.multi_reduction <add>, %125, %cst_38 [1] : vector<9x9xf32> to vector<9xf32>
    %127 = vector.shape_cast %126 : vector<9xf32> to vector<9x1xf32>
    %128 = tpu.reciprocal %127 {approx = true} : vector<9x1xf32> -> vector<9x1xf32>
    %129 = vector.broadcast %128 : vector<9x1xf32> to vector<9x9xf32>
    %130 = arith.mulf %125, %129 : vector<9x9xf32>
    %131 = arith.truncf %130 : vector<9x9xf32> to vector<9x9xbf16>
    %cst_39 = arith.constant dense<0.000000e+00> : vector<9x16xf32>
    %132 = tpu.matmul %131, %118, %cst_39 {dimension_numbers = #tpu.dot_dimension_numbers<[1], [0], [0], [1], [0, 0, 1, 1], [], []>} : vector<9x9xbf16>, vector<9x16xbf16>, vector<9x16xf32> -> vector<9x16xf32>
    %133 = tpu.concatenate %110, %132 in 1 : vector<9x16xf32>, vector<9x16xf32> -> vector<9x32xf32>
    %134 = vector.shape_cast %86 : vector<9x32xf32> to vector<9x1x32xf32>
    %135 = vector.shape_cast %133 : vector<9x32xf32> to vector<9x1x32xf32>
    %136 = tpu.concatenate %134, %135 in 1 : vector<9x1x32xf32>, vector<9x1x32xf32> -> vector<9x2x32xf32>
    %137 = vector.shape_cast %136 : vector<9x2x32xf32> to vector<18x32xf32>
    %138 = arith.truncf %137 : vector<18x32xf32> to vector<18x32xbf16>
    %c0_40 = arith.constant 0 : index
    %c0_41 = arith.constant 0 : index
    %c0_42 = arith.constant 0 : index
    %139 = vector.load %arg7[%c0_40, %c0_41, %c0_42] : memref<1x32x32xbf16, #tpu.memory_space<vmem>>, vector<1x32x32xbf16>
    %140 = vector.shape_cast %139 : vector<1x32x32xbf16> to vector<32x32xbf16>
    %cst_43 = arith.constant dense<0.000000e+00> : vector<18x32xf32>
    %141 = tpu.matmul %138, %140, %cst_43 {dimension_numbers = #tpu.dot_dimension_numbers<[1], [0], [0], [1], [0, 0, 1, 1], [], []>} : vector<18x32xbf16>, vector<32x32xbf16>, vector<18x32xf32> -> vector<18x32xf32>
    %c0_44 = arith.constant 0 : index
    %c0_45 = arith.constant 0 : index
    %c0_46 = arith.constant 0 : index
    %142 = vector.load %arg8[%c0_44, %c0_45, %c0_46] : memref<1x1x32xf32, #tpu.memory_space<vmem>>, vector<1x1x32xf32>
    %143 = vector.shape_cast %142 : vector<1x1x32xf32> to vector<1x32xf32>
    %144 = vector.broadcast %143 : vector<1x32xf32> to vector<18x32xf32>
    %145 = arith.addf %141, %144 : vector<18x32xf32>
    %146 = arith.addf %4, %145 : vector<18x32xf32>
    %cst_47 = arith.constant dense<0.000000e+00> : vector<18xf32>
    %147 = vector.multi_reduction <add>, %146, %cst_47 [1] : vector<18x32xf32> to vector<18xf32>
    %148 = vector.shape_cast %147 : vector<18xf32> to vector<18x1xf32>
    %cst_48 = arith.constant 3.200000e+01 : f32
    %149 = vector.broadcast %cst_48 : f32 to vector<18x1xf32>
    %150 = arith.divf %148, %149 : vector<18x1xf32>
    %151 = arith.mulf %146, %146 : vector<18x32xf32>
    %cst_49 = arith.constant dense<0.000000e+00> : vector<18xf32>
    %152 = vector.multi_reduction <add>, %151, %cst_49 [1] : vector<18x32xf32> to vector<18xf32>
    %153 = vector.shape_cast %152 : vector<18xf32> to vector<18x1xf32>
    %cst_50 = arith.constant 3.200000e+01 : f32
    %154 = vector.broadcast %cst_50 : f32 to vector<18x1xf32>
    %155 = arith.divf %153, %154 : vector<18x1xf32>
    %156 = arith.mulf %150, %150 : vector<18x1xf32>
    %157 = arith.subf %155, %156 : vector<18x1xf32>
    %158 = vector.broadcast %150 : vector<18x1xf32> to vector<18x32xf32>
    %159 = arith.subf %146, %158 : vector<18x32xf32>
    %cst_51 = arith.constant 9.99999997E-7 : f32
    %160 = vector.broadcast %cst_51 : f32 to vector<18x1xf32>
    %161 = arith.addf %157, %160 : vector<18x1xf32>
    %162 = math.rsqrt %161 : vector<18x1xf32>
    %163 = vector.broadcast %162 : vector<18x1xf32> to vector<18x32xf32>
    %164 = arith.mulf %159, %163 : vector<18x32xf32>
    %c0_52 = arith.constant 0 : index
    %c0_53 = arith.constant 0 : index
    %c0_54 = arith.constant 0 : index
    %165 = vector.load %arg9[%c0_52, %c0_53, %c0_54] : memref<1x1x32xf32, #tpu.memory_space<vmem>>, vector<1x1x32xf32>
    %166 = vector.shape_cast %165 : vector<1x1x32xf32> to vector<1x32xf32>
    %167 = vector.broadcast %166 : vector<1x32xf32> to vector<18x32xf32>
    %168 = arith.mulf %164, %167 : vector<18x32xf32>
    %c0_55 = arith.constant 0 : index
    %c0_56 = arith.constant 0 : index
    %c0_57 = arith.constant 0 : index
    %169 = vector.load %arg10[%c0_55, %c0_56, %c0_57] : memref<1x1x32xf32, #tpu.memory_space<vmem>>, vector<1x1x32xf32>
    %170 = vector.shape_cast %169 : vector<1x1x32xf32> to vector<1x32xf32>
    %171 = vector.broadcast %170 : vector<1x32xf32> to vector<18x32xf32>
    %172 = arith.addf %168, %171 : vector<18x32xf32>
    %173 = arith.truncf %172 : vector<18x32xf32> to vector<18x32xbf16>
    %c0_58 = arith.constant 0 : index
    %c0_59 = arith.constant 0 : index
    %c0_60 = arith.constant 0 : index
    %174 = vector.load %arg11[%c0_58, %c0_59, %c0_60] : memref<1x32x128xbf16, #tpu.memory_space<vmem>>, vector<1x32x128xbf16>
    %175 = vector.shape_cast %174 : vector<1x32x128xbf16> to vector<32x128xbf16>
    %cst_61 = arith.constant dense<0.000000e+00> : vector<18x128xf32>
    %176 = tpu.matmul %173, %175, %cst_61 {dimension_numbers = #tpu.dot_dimension_numbers<[1], [0], [0], [1], [0, 0, 1, 1], [], []>} : vector<18x32xbf16>, vector<32x128xbf16>, vector<18x128xf32> -> vector<18x128xf32>
    %c0_62 = arith.constant 0 : index
    %c0_63 = arith.constant 0 : index
    %c0_64 = arith.constant 0 : index
    %177 = vector.load %arg12[%c0_62, %c0_63, %c0_64] : memref<1x1x128xf32, #tpu.memory_space<vmem>>, vector<1x1x128xf32>
    %178 = vector.shape_cast %177 : vector<1x1x128xf32> to vector<1x128xf32>
    %179 = vector.broadcast %178 : vector<1x128xf32> to vector<18x128xf32>
    %180 = arith.addf %176, %179 : vector<18x128xf32>
    %181 = arith.mulf %180, %180 : vector<18x128xf32>
    %182 = arith.mulf %180, %181 : vector<18x128xf32>
    %cst_65 = arith.constant 4.471500e-02 : f32
    %183 = vector.broadcast %cst_65 : f32 to vector<18x128xf32>
    %184 = arith.mulf %183, %182 : vector<18x128xf32>
    %185 = arith.addf %180, %184 : vector<18x128xf32>
    %cst_66 = arith.constant 0.797884583 : f32
    %186 = vector.broadcast %cst_66 : f32 to vector<18x128xf32>
    %187 = arith.mulf %186, %185 : vector<18x128xf32>
    %188 = math.tanh %187 : vector<18x128xf32>
    %cst_67 = arith.constant 1.000000e+00 : f32
    %189 = vector.broadcast %cst_67 : f32 to vector<18x128xf32>
    %190 = arith.addf %189, %188 : vector<18x128xf32>
    %cst_68 = arith.constant 5.000000e-01 : f32
    %191 = vector.broadcast %cst_68 : f32 to vector<18x128xf32>
    %192 = arith.mulf %191, %190 : vector<18x128xf32>
    %193 = arith.mulf %180, %192 : vector<18x128xf32>
    %194 = arith.truncf %193 : vector<18x128xf32> to vector<18x128xbf16>
    %c0_69 = arith.constant 0 : index
    %c0_70 = arith.constant 0 : index
    %c0_71 = arith.constant 0 : index
    %195 = vector.load %arg13[%c0_69, %c0_70, %c0_71] : memref<1x128x32xbf16, #tpu.memory_space<vmem>>, vector<1x128x32xbf16>
    %196 = vector.shape_cast %195 : vector<1x128x32xbf16> to vector<128x32xbf16>
    %cst_72 = arith.constant dense<0.000000e+00> : vector<18x32xf32>
    %197 = tpu.matmul %194, %196, %cst_72 {dimension_numbers = #tpu.dot_dimension_numbers<[1], [0], [0], [1], [0, 0, 1, 1], [], []>} : vector<18x128xbf16>, vector<128x32xbf16>, vector<18x32xf32> -> vector<18x32xf32>
    %c0_73 = arith.constant 0 : index
    %c0_74 = arith.constant 0 : index
    %c0_75 = arith.constant 0 : index
    %198 = vector.load %arg14[%c0_73, %c0_74, %c0_75] : memref<1x1x32xf32, #tpu.memory_space<vmem>>, vector<1x1x32xf32>
    %199 = vector.shape_cast %198 : vector<1x1x32xf32> to vector<1x32xf32>
    %200 = vector.broadcast %199 : vector<1x32xf32> to vector<18x32xf32>
    %201 = arith.addf %197, %200 : vector<18x32xf32>
    %202 = arith.addf %146, %201 : vector<18x32xf32>
    %203 = vector.shape_cast %202 : vector<18x32xf32> to vector<9x2x32xf32>
    %c0_76 = arith.constant 0 : index
    %c0_77 = arith.constant 0 : index
    %c0_78 = arith.constant 0 : index
    %204 = vector.load %arg18[%c0_76, %c0_77, %c0_78] : memref<9x2x32xf32, #tpu.memory_space<vmem>>, vector<9x2x32xf32>
    tpu.vector_store %arg18[%c0_76, %c0_77, %c0_78], %203 {strides = array<i32>} : memref<9x2x32xf32, #tpu.memory_space<vmem>>, vector<9x2x32xf32>,
    %c1_i32 = arith.constant 1 : i32
    %205 = arith.cmpi eq, %arg1, %c1_i32 : i32
    %206 = arith.extui %205 : i1 to i32
    %c0_i32_79 = arith.constant 0 : i32
    %207 = arith.cmpi ne, %206, %c0_i32_79 : i32
    scf.if %207 {
      %208 = arith.truncf %202 : vector<18x32xf32> to vector<18x32xbf16>
      %c0_80 = arith.constant 0 : index
      %c0_81 = arith.constant 0 : index
      %209 = vector.load %arg15[%c0_80, %c0_81] : memref<32x64xbf16, #tpu.memory_space<vmem>>, vector<32x64xbf16>
      %cst_82 = arith.constant dense<0.000000e+00> : vector<18x64xf32>
      %210 = tpu.matmul %208, %209, %cst_82 {dimension_numbers = #tpu.dot_dimension_numbers<[1], [0], [0], [1], [0, 0, 1, 1], [], []>} : vector<18x32xbf16>, vector<32x64xbf16>, vector<18x64xf32> -> vector<18x64xf32>
      %c0_83 = arith.constant 0 : index
      %c0_84 = arith.constant 0 : index
      %211 = vector.load %arg16[%c0_83, %c0_84] : memref<1x64xf32, #tpu.memory_space<vmem>>, vector<1x64xf32>
      %212 = vector.broadcast %211 : vector<1x64xf32> to vector<18x64xf32>
      %213 = arith.addf %210, %212 : vector<18x64xf32>
      %214 = vector.shape_cast %213 : vector<18x64xf32> to vector<9x2x64xf32>
      %c0_85 = arith.constant 0 : index
      %c0_86 = arith.constant 0 : index
      %c0_87 = arith.constant 0 : index
      %215 = vector.load %arg17[%c0_85, %c0_86, %c0_87] : memref<9x2x64xf32, #tpu.memory_space<vmem>>, vector<9x2x64xf32>
      tpu.vector_store %arg17[%c0_85, %c0_86, %c0_87], %214 {strides = array<i32>} : memref<9x2x64xf32, #tpu.memory_space<vmem>>, vector<9x2x64xf32>,
    } else {
    }
    return
  }
  func.func @transform_0(%arg0: i32, %arg1: i32) -> (i32, i32, i32) {
    %c0_i32 = arith.constant 0 : i32
    %c0_i32_0 = arith.constant 0 : i32
    %c0_i32_1 = arith.constant 0 : i32
    return %c0_i32, %arg0, %c0_i32_0 : i32, i32, i32
  }
  func.func @transform_1(%arg0: i32, %arg1: i32) -> (i32, i32, i32) {
    %c0_i32 = arith.constant 0 : i32
    %c0_i32_0 = arith.constant 0 : i32
    %c0_i32_1 = arith.constant 0 : i32
    return %arg1, %c0_i32, %c0_i32_0 : i32, i32, i32
  }
  func.func @transform_2(%arg0: i32, %arg1: i32) -> (i32, i32, i32) {
    %c0_i32 = arith.constant 0 : i32
    %c0_i32_0 = arith.constant 0 : i32
    %c0_i32_1 = arith.constant 0 : i32
    return %arg1, %c0_i32, %c0_i32_0 : i32, i32, i32
  }
  func.func @transform_3(%arg0: i32, %arg1: i32) -> (i32, i32, i32) {
    %c0_i32 = arith.constant 0 : i32
    %c0_i32_0 = arith.constant 0 : i32
    %c0_i32_1 = arith.constant 0 : i32
    return %arg1, %c0_i32, %c0_i32_0 : i32, i32, i32
  }
  func.func @transform_4(%arg0: i32, %arg1: i32) -> (i32, i32, i32) {
    %c0_i32 = arith.constant 0 : i32
    %c0_i32_0 = arith.constant 0 : i32
    %c0_i32_1 = arith.constant 0 : i32
    return %arg1, %c0_i32, %c0_i32_0 : i32, i32, i32
  }
  func.func @transform_5(%arg0: i32, %arg1: i32) -> (i32, i32, i32) {
    %c0_i32 = arith.constant 0 : i32
    %c0_i32_0 = arith.constant 0 : i32
    %c0_i32_1 = arith.constant 0 : i32
    return %arg1, %c0_i32, %c0_i32_0 : i32, i32, i32
  }
  func.func @transform_6(%arg0: i32, %arg1: i32) -> (i32, i32, i32) {
    %c0_i32 = arith.constant 0 : i32
    %c0_i32_0 = arith.constant 0 : i32
    %c0_i32_1 = arith.constant 0 : i32
    return %arg1, %c0_i32, %c0_i32_0 : i32, i32, i32
  }
  func.func @transform_7(%arg0: i32, %arg1: i32) -> (i32, i32, i32) {
    %c0_i32 = arith.constant 0 : i32
    %c0_i32_0 = arith.constant 0 : i32
    %c0_i32_1 = arith.constant 0 : i32
    return %arg1, %c0_i32, %c0_i32_0 : i32, i32, i32
  }
  func.func @transform_8(%arg0: i32, %arg1: i32) -> (i32, i32, i32) {
    %c0_i32 = arith.constant 0 : i32
    %c0_i32_0 = arith.constant 0 : i32
    %c0_i32_1 = arith.constant 0 : i32
    return %arg1, %c0_i32, %c0_i32_0 : i32, i32, i32
  }
  func.func @transform_9(%arg0: i32, %arg1: i32) -> (i32, i32, i32) {
    %c0_i32 = arith.constant 0 : i32
    %c0_i32_0 = arith.constant 0 : i32
    %c0_i32_1 = arith.constant 0 : i32
    return %arg1, %c0_i32, %c0_i32_0 : i32, i32, i32
  }
  func.func @transform_10(%arg0: i32, %arg1: i32) -> (i32, i32, i32) {
    %c0_i32 = arith.constant 0 : i32
    %c0_i32_0 = arith.constant 0 : i32
    %c0_i32_1 = arith.constant 0 : i32
    return %arg1, %c0_i32, %c0_i32_0 : i32, i32, i32
  }
  func.func @transform_11(%arg0: i32, %arg1: i32) -> (i32, i32, i32) {
    %c0_i32 = arith.constant 0 : i32
    %c0_i32_0 = arith.constant 0 : i32
    %c0_i32_1 = arith.constant 0 : i32
    return %arg1, %c0_i32, %c0_i32_0 : i32, i32, i32
  }
  func.func @transform_12(%arg0: i32, %arg1: i32) -> (i32, i32, i32) {
    %c0_i32 = arith.constant 0 : i32
    %c0_i32_0 = arith.constant 0 : i32
    %c0_i32_1 = arith.constant 0 : i32
    return %arg1, %c0_i32, %c0_i32_0 : i32, i32, i32
  }
  func.func @transform_13(%arg0: i32, %arg1: i32) -> (i32, i32) {
    %c0_i32 = arith.constant 0 : i32
    %c0_i32_0 = arith.constant 0 : i32
    %c0_i32_1 = arith.constant 0 : i32
    return %c0_i32, %c0_i32_0 : i32, i32
  }
  func.func @transform_14(%arg0: i32, %arg1: i32) -> (i32, i32) {
    %c0_i32 = arith.constant 0 : i32
    %c0_i32_0 = arith.constant 0 : i32
    %c0_i32_1 = arith.constant 0 : i32
    return %c0_i32, %c0_i32_0 : i32, i32
  }
  func.func @transform_15(%arg0: i32, %arg1: i32) -> (i32, i32, i32) {
    %c0_i32 = arith.constant 0 : i32
    %c0_i32_0 = arith.constant 0 : i32
    %c0_i32_1 = arith.constant 0 : i32
    return %c0_i32, %arg0, %c0_i32_0 : i32, i32, i32
  }
}

</mosaic_0001>

<llo_original>
// kernel: tpu_custom_call.1
$region0: #{tpu_custom_call.1}
  #allocation0 [shape = 'u32[]', space=smem, size = 0x4, offset = 0x4, fixed_abs, tag = 'smem constant byte address 0x4 - core index']
  #allocation1 [shape = 'u32[144,128]{1,0:T(1,128)}', space=vmem, size = 0x12000, scoped, tag = 'internal scratch']
  #allocation2 [shape = 'f32[9,2,32]{2,1,0:T(2,128)}', space=vmem, size = 0x2400, scoped, tag = 'scratch operand']
  %s0 = inlined_call_operand.vmem [shape: f32[9,2,32], index: 0, kind: input, shape index: {}]
  %s1 = inlined_call_operand.vmem [shape: f32[2,1,32], index: 1, kind: input, shape index: {}]
  %s2 = inlined_call_operand.vmem [shape: f32[2,1,32], index: 2, kind: input, shape index: {}]
  %s3 = inlined_call_operand.vmem [shape: bf16[2,32,96], index: 3, kind: input, shape index: {}]
  %s4 = inlined_call_operand.vmem [shape: f32[2,1,96], index: 4, kind: input, shape index: {}]
  %s5 = inlined_call_operand.vmem [shape: bf16[2,32,32], index: 5, kind: input, shape index: {}]
  %s6 = inlined_call_operand.vmem [shape: f32[2,1,32], index: 6, kind: input, shape index: {}]
  %s7 = inlined_call_operand.vmem [shape: f32[2,1,32], index: 7, kind: input, shape index: {}]
  %s8 = inlined_call_operand.vmem [shape: f32[2,1,32], index: 8, kind: input, shape index: {}]
  %s9 = inlined_call_operand.vmem [shape: bf16[2,32,128], index: 9, kind: input, shape index: {}]
  %s10 = inlined_call_operand.vmem [shape: f32[2,1,128], index: 10, kind: input, shape index: {}]
  %s11 = inlined_call_operand.vmem [shape: bf16[2,128,32], index: 11, kind: input, shape index: {}]
  %s12 = inlined_call_operand.vmem [shape: f32[2,1,32], index: 12, kind: input, shape index: {}]
  %s13 = inlined_call_operand.vmem [shape: bf16[32,64], index: 13, kind: input, shape index: {}]
  %s14 = inlined_call_operand.vmem [shape: f32[1,64], index: 14, kind: input, shape index: {}]
  %s15 = inlined_call_operand.hbm [shape: f32[9,2,64], index: 15, kind: output, shape index: {}]
  %s16 = sld [smem:[#allocation0]]
  $region101: #{tpu_custom_call.1} parent=0
    _
  %s18 = ssub.s32 1, %s16
  %s19 = scalar_select 0, %s18, %s16
  $region1: #{tpu_custom_call.1} parent=0
    #allocation3 [shape = 'u8[9216]{0}', space=vmem, size = 0x2400, scoped, tag = 'output window, operand 0, single buffered']
    #allocation4 [shape = 's32[2]{0}', space=sflag, size = 0x8, scoped, tag = 'scoped memory for tpu_custom_call.1']
    %20 = vsyncpa [#allocation4], 0
    loop: start=0, step=1, limit=4
    $region2: #{tpu_custom_call.1} parent=1 // loop_pre_header
      _
    $region3: #{tpu_custom_call.1} parent=1 // loop_header
      %s22 = sphi 0, %s26
      %p23 = scmp.ge.s32.totalorder %s22, 4
      %s29 = sphi 0, %s41
      %s30 = sphi 0, %s37
      %s31 = sphi 0, %s29
      %s32 = sphi 0, %s30
      %s33 = sphi 0, %s31
      %s34 = sphi 0, %s32
      %s44 = sphi 0, %s46
      %s47 = sphi 0, %s44
      %s48 = sphi 0, %s47
      %s64 = sphi 0, %s48
      %s70 = sphi 0, %s72
      %s73 = sphi 0, %s70
      %s74 = sphi 0, %s73
      %s90 = sphi 0, %s74
      %s96 = sphi 0, %s98
      %s99 = sphi 0, %s96
      %s100 = sphi 0, %s99
      %s116 = sphi 0, %s100
      %s122 = sphi 0, %s124
      %s125 = sphi 0, %s122
      %s126 = sphi 0, %s125
      %s142 = sphi 0, %s126
      %s148 = sphi 0, %s150
      %s151 = sphi 0, %s148
      %s152 = sphi 0, %s151
      %s168 = sphi 0, %s152
      %s174 = sphi 0, %s176
      %s177 = sphi 0, %s174
      %s178 = sphi 0, %s177
      %s194 = sphi 0, %s178
      %s200 = sphi 0, %s202
      %s203 = sphi 0, %s200
      %s204 = sphi 0, %s203
      %s220 = sphi 0, %s204
      %s226 = sphi 0, %s228
      %s229 = sphi 0, %s226
      %s230 = sphi 0, %s229
      %s246 = sphi 0, %s230
      %s252 = sphi 0, %s254
      %s255 = sphi 0, %s252
      %s256 = sphi 0, %s255
      %s272 = sphi 0, %s256
      %s278 = sphi 0, %s280
      %s281 = sphi 0, %s278
      %s282 = sphi 0, %s281
      %s298 = sphi 0, %s282
      %s304 = sphi 0, %s306
      %s307 = sphi 0, %s304
      %s308 = sphi 0, %s307
      %s324 = sphi 0, %s308
      %s330 = sphi 0, %s332
      %s333 = sphi 0, %s330
      %s334 = sphi 0, %s333
      %s350 = sphi 0, %s334
      %s356 = sphi 0, %s358
      %s359 = sphi 0, %s356
      %s360 = sphi 0, %s359
      %s376 = sphi 0, %s360
      %s380 = sphi 0, %s380
      %s382 = sphi 0, %s380
      %s383 = sphi 0, %s382
      %s397 = sphi 0, %s383
      %s401 = sphi 0, %s401
      %s403 = sphi 0, %s401
      %s404 = sphi 0, %s403
      %s418 = sphi 0, %s404
      %s424 = sphi 0, %s426
      %s427 = sphi 0, %s424
      %s428 = sphi 0, %s427
      %s444 = sphi 0, %s428
    $region4: #{tpu_custom_call.1} parent=1 // loop_header_branch
      %25 = sbr.rel (%p23) target = $region8
    $region5: #{tpu_custom_call.1} parent=1 // loop_body
      %s27 = ssub.s32 %s22, 1
      %s28 = ssub.s32 %s22, 2
      %s35 = sadd.s32 1, %s30
      %p36 = scmp.ge.s32.totalorder %s35, 2
      %s37 = scalar_select %p36, 0, %s35
      %s38 = sadd.s32 1, %s29
      %s39 = scalar_select %p36, %s38, %s29
      %p40 = scmp.ge.s32.totalorder %s39, 1
      %s41 = scalar_select %p40, 0, %s39
      %s42 = ssub.s32 %s29, %s41
      %p43 = scmp.eq.s32.totalorder %s42, 0
      %s45 = sadd.s32 %s44, 1
      %s46 = scalar_select %p43, %s44, %s45
      %p49 = pneg %p43
      %p50 = scmp.eq.s32.totalorder %s22, 1
      %p51 = por %p49, %p50
      %p52 = scmp.ne.s32.totalorder %s44, %s47
      %p53 = scmp.eq.s32.totalorder %s22, 0
      %p54 = por %p52, %p53
      %p55 = scmp.ne.s32.totalorder %s44, %s47
      %p56 = scmp.eq.s32.totalorder %s27, 1
      %p57 = por %p55, %p56
      %p58 = scmp.ne.s32.totalorder %s47, %s48
      %p59 = scmp.eq.s32.totalorder %s27, 0
      %p60 = por %p58, %p59
      %p61 = scmp.ne.s32.totalorder %s47, %s48
      %p62 = scmp.eq.s32.totalorder %s28, 1
      %p63 = por %p61, %p62
      %p65 = scmp.ne.s32.totalorder %s48, %s64
      %p66 = scmp.eq.s32.totalorder %s28, 0
      %p67 = por %p65, %p66
      %s68 = ssub.s32 %s30, %s37
      %p69 = scmp.eq.s32.totalorder %s68, 0
      %s71 = sadd.s32 %s70, 1
      %s72 = scalar_select %p69, %s70, %s71
      %p75 = pneg %p69
      %p76 = scmp.eq.s32.totalorder %s22, 1
      %p77 = por %p75, %p76
      %p78 = scmp.ne.s32.totalorder %s70, %s73
      %p79 = scmp.eq.s32.totalorder %s22, 0
      %p80 = por %p78, %p79
      %p81 = scmp.ne.s32.totalorder %s70, %s73
      %p82 = scmp.eq.s32.totalorder %s27, 1
      %p83 = por %p81, %p82
      %p84 = scmp.ne.s32.totalorder %s73, %s74
      %p85 = scmp.eq.s32.totalorder %s27, 0
      %p86 = por %p84, %p85
      %p87 = scmp.ne.s32.totalorder %s73, %s74
      %p88 = scmp.eq.s32.totalorder %s28, 1
      %p89 = por %p87, %p88
      %p91 = scmp.ne.s32.totalorder %s74, %s90
      %p92 = scmp.eq.s32.totalorder %s28, 0
      %p93 = por %p91, %p92
      %s94 = ssub.s32 %s30, %s37
      %p95 = scmp.eq.s32.totalorder %s94, 0
      %s97 = sadd.s32 %s96, 1
      %s98 = scalar_select %p95, %s96, %s97
      %p101 = pneg %p95
      %p102 = scmp.eq.s32.totalorder %s22, 1
      %p103 = por %p101, %p102
      %p104 = scmp.ne.s32.totalorder %s96, %s99
      %p105 = scmp.eq.s32.totalorder %s22, 0
      %p106 = por %p104, %p105
      %p107 = scmp.ne.s32.totalorder %s96, %s99
      %p108 = scmp.eq.s32.totalorder %s27, 1
      %p109 = por %p107, %p108
      %p110 = scmp.ne.s32.totalorder %s99, %s100
      %p111 = scmp.eq.s32.totalorder %s27, 0
      %p112 = por %p110, %p111
      %p113 = scmp.ne.s32.totalorder %s99, %s100
      %p114 = scmp.eq.s32.totalorder %s28, 1
      %p115 = por %p113, %p114
      %p117 = scmp.ne.s32.totalorder %s100, %s116
      %p118 = scmp.eq.s32.totalorder %s28, 0
      %p119 = por %p117, %p118
      %s120 = ssub.s32 %s30, %s37
      %p121 = scmp.eq.s32.totalorder %s120, 0
      %s123 = sadd.s32 %s122, 1
      %s124 = scalar_select %p121, %s122, %s123
      %p127 = pneg %p121
      %p128 = scmp.eq.s32.totalorder %s22, 1
      %p129 = por %p127, %p128
      %p130 = scmp.ne.s32.totalorder %s122, %s125
      %p131 = scmp.eq.s32.totalorder %s22, 0
      %p132 = por %p130, %p131
      %p133 = scmp.ne.s32.totalorder %s122, %s125
      %p134 = scmp.eq.s32.totalorder %s27, 1
      %p135 = por %p133, %p134
      %p136 = scmp.ne.s32.totalorder %s125, %s126
      %p137 = scmp.eq.s32.totalorder %s27, 0
      %p138 = por %p136, %p137
      %p139 = scmp.ne.s32.totalorder %s125, %s126
      %p140 = scmp.eq.s32.totalorder %s28, 1
      %p141 = por %p139, %p140
      %p143 = scmp.ne.s32.totalorder %s126, %s142
      %p144 = scmp.eq.s32.totalorder %s28, 0
      %p145 = por %p143, %p144
      %s146 = ssub.s32 %s30, %s37
      %p147 = scmp.eq.s32.totalorder %s146, 0
      %s149 = sadd.s32 %s148, 1
      %s150 = scalar_select %p147, %s148, %s149
      %p153 = pneg %p147
      %p154 = scmp.eq.s32.totalorder %s22, 1
      %p155 = por %p153, %p154
      %p156 = scmp.ne.s32.totalorder %s148, %s151
      %p157 = scmp.eq.s32.totalorder %s22, 0
      %p158 = por %p156, %p157
      %p159 = scmp.ne.s32.totalorder %s148, %s151
      %p160 = scmp.eq.s32.totalorder %s27, 1
      %p161 = por %p159, %p160
      %p162 = scmp.ne.s32.totalorder %s151, %s152
      %p163 = scmp.eq.s32.totalorder %s27, 0
      %p164 = por %p162, %p163
      %p165 = scmp.ne.s32.totalorder %s151, %s152
      %p166 = scmp.eq.s32.totalorder %s28, 1
      %p167 = por %p165, %p166
      %p169 = scmp.ne.s32.totalorder %s152, %s168
      %p170 = scmp.eq.s32.totalorder %s28, 0
      %p171 = por %p169, %p170
      %s172 = ssub.s32 %s30, %s37
      %p173 = scmp.eq.s32.totalorder %s172, 0
      %s175 = sadd.s32 %s174, 1
      %s176 = scalar_select %p173, %s174, %s175
      %p179 = pneg %p173
      %p180 = scmp.eq.s32.totalorder %s22, 1
      %p181 = por %p179, %p180
      %p182 = scmp.ne.s32.totalorder %s174, %s177
      %p183 = scmp.eq.s32.totalorder %s22, 0
      %p184 = por %p182, %p183
      %p185 = scmp.ne.s32.totalorder %s174, %s177
      %p186 = scmp.eq.s32.totalorder %s27, 1
      %p187 = por %p185, %p186
      %p188 = scmp.ne.s32.totalorder %s177, %s178
      %p189 = scmp.eq.s32.totalorder %s27, 0
      %p190 = por %p188, %p189
      %p191 = scmp.ne.s32.totalorder %s177, %s178
      %p192 = scmp.eq.s32.totalorder %s28, 1
      %p193 = por %p191, %p192
      %p195 = scmp.ne.s32.totalorder %s178, %s194
      %p196 = scmp.eq.s32.totalorder %s28, 0
      %p197 = por %p195, %p196
      %s198 = ssub.s32 %s30, %s37
      %p199 = scmp.eq.s32.totalorder %s198, 0
      %s201 = sadd.s32 %s200, 1
      %s202 = scalar_select %p199, %s200, %s201
      %p205 = pneg %p199
      %p206 = scmp.eq.s32.totalorder %s22, 1
      %p207 = por %p205, %p206
      %p208 = scmp.ne.s32.totalorder %s200, %s203
      %p209 = scmp.eq.s32.totalorder %s22, 0
      %p210 = por %p208, %p209
      %p211 = scmp.ne.s32.totalorder %s200, %s203
      %p212 = scmp.eq.s32.totalorder %s27, 1
      %p213 = por %p211, %p212
      %p214 = scmp.ne.s32.totalorder %s203, %s204
      %p215 = scmp.eq.s32.totalorder %s27, 0
      %p216 = por %p214, %p215
      %p217 = scmp.ne.s32.totalorder %s203, %s204
      %p218 = scmp.eq.s32.totalorder %s28, 1
      %p219 = por %p217, %p218
      %p221 = scmp.ne.s32.totalorder %s204, %s220
      %p222 = scmp.eq.s32.totalorder %s28, 0
      %p223 = por %p221, %p222
      %s224 = ssub.s32 %s30, %s37
      %p225 = scmp.eq.s32.totalorder %s224, 0
      %s227 = sadd.s32 %s226, 1
      %s228 = scalar_select %p225, %s226, %s227
      %p231 = pneg %p225
      %p232 = scmp.eq.s32.totalorder %s22, 1
      %p233 = por %p231, %p232
      %p234 = scmp.ne.s32.totalorder %s226, %s229
      %p235 = scmp.eq.s32.totalorder %s22, 0
      %p236 = por %p234, %p235
      %p237 = scmp.ne.s32.totalorder %s226, %s229
      %p238 = scmp.eq.s32.totalorder %s27, 1
      %p239 = por %p237, %p238
      %p240 = scmp.ne.s32.totalorder %s229, %s230
      %p241 = scmp.eq.s32.totalorder %s27, 0
      %p242 = por %p240, %p241
      %p243 = scmp.ne.s32.totalorder %s229, %s230
      %p244 = scmp.eq.s32.totalorder %s28, 1
      %p245 = por %p243, %p244
      %p247 = scmp.ne.s32.totalorder %s230, %s246
      %p248 = scmp.eq.s32.totalorder %s28, 0
      %p249 = por %p247, %p248
      %s250 = ssub.s32 %s30, %s37
      %p251 = scmp.eq.s32.totalorder %s250, 0
      %s253 = sadd.s32 %s252, 1
      %s254 = scalar_select %p251, %s252, %s253
      %p257 = pneg %p251
      %p258 = scmp.eq.s32.totalorder %s22, 1
      %p259 = por %p257, %p258
      %p260 = scmp.ne.s32.totalorder %s252, %s255
      %p261 = scmp.eq.s32.totalorder %s22, 0
      %p262 = por %p260, %p261
      %p263 = scmp.ne.s32.totalorder %s252, %s255
      %p264 = scmp.eq.s32.totalorder %s27, 1
      %p265 = por %p263, %p264
      %p266 = scmp.ne.s32.totalorder %s255, %s256
      %p267 = scmp.eq.s32.totalorder %s27, 0
      %p268 = por %p266, %p267
      %p269 = scmp.ne.s32.totalorder %s255, %s256
      %p270 = scmp.eq.s32.totalorder %s28, 1
      %p271 = por %p269, %p270
      %p273 = scmp.ne.s32.totalorder %s256, %s272
      %p274 = scmp.eq.s32.totalorder %s28, 0
      %p275 = por %p273, %p274
      %s276 = ssub.s32 %s30, %s37
      %p277 = scmp.eq.s32.totalorder %s276, 0
      %s279 = sadd.s32 %s278, 1
      %s280 = scalar_select %p277, %s278, %s279
      %p283 = pneg %p277
      %p284 = scmp.eq.s32.totalorder %s22, 1
      %p285 = por %p283, %p284
      %p286 = scmp.ne.s32.totalorder %s278, %s281
      %p287 = scmp.eq.s32.totalorder %s22, 0
      %p288 = por %p286, %p287
      %p289 = scmp.ne.s32.totalorder %s278, %s281
      %p290 = scmp.eq.s32.totalorder %s27, 1
      %p291 = por %p289, %p290
      %p292 = scmp.ne.s32.totalorder %s281, %s282
      %p293 = scmp.eq.s32.totalorder %s27, 0
      %p294 = por %p292, %p293
      %p295 = scmp.ne.s32.totalorder %s281, %s282
      %p296 = scmp.eq.s32.totalorder %s28, 1
      %p297 = por %p295, %p296
      %p299 = scmp.ne.s32.totalorder %s282, %s298
      %p300 = scmp.eq.s32.totalorder %s28, 0
      %p301 = por %p299, %p300
      %s302 = ssub.s32 %s30, %s37
      %p303 = scmp.eq.s32.totalorder %s302, 0
      %s305 = sadd.s32 %s304, 1
      %s306 = scalar_select %p303, %s304, %s305
      %p309 = pneg %p303
      %p310 = scmp.eq.s32.totalorder %s22, 1
      %p311 = por %p309, %p310
      %p312 = scmp.ne.s32.totalorder %s304, %s307
      %p313 = scmp.eq.s32.totalorder %s22, 0
      %p314 = por %p312, %p313
      %p315 = scmp.ne.s32.totalorder %s304, %s307
      %p316 = scmp.eq.s32.totalorder %s27, 1
      %p317 = por %p315, %p316
      %p318 = scmp.ne.s32.totalorder %s307, %s308
      %p319 = scmp.eq.s32.totalorder %s27, 0
      %p320 = por %p318, %p319
      %p321 = scmp.ne.s32.totalorder %s307, %s308
      %p322 = scmp.eq.s32.totalorder %s28, 1
      %p323 = por %p321, %p322
      %p325 = scmp.ne.s32.totalorder %s308, %s324
      %p326 = scmp.eq.s32.totalorder %s28, 0
      %p327 = por %p325, %p326
      %s328 = ssub.s32 %s30, %s37
      %p329 = scmp.eq.s32.totalorder %s328, 0
      %s331 = sadd.s32 %s330, 1
      %s332 = scalar_select %p329, %s330, %s331
      %p335 = pneg %p329
      %p336 = scmp.eq.s32.totalorder %s22, 1
      %p337 = por %p335, %p336
      %p338 = scmp.ne.s32.totalorder %s330, %s333
      %p339 = scmp.eq.s32.totalorder %s22, 0
      %p340 = por %p338, %p339
      %p341 = scmp.ne.s32.totalorder %s330, %s333
      %p342 = scmp.eq.s32.totalorder %s27, 1
      %p343 = por %p341, %p342
      %p344 = scmp.ne.s32.totalorder %s333, %s334
      %p345 = scmp.eq.s32.totalorder %s27, 0
      %p346 = por %p344, %p345
      %p347 = scmp.ne.s32.totalorder %s333, %s334
      %p348 = scmp.eq.s32.totalorder %s28, 1
      %p349 = por %p347, %p348
      %p351 = scmp.ne.s32.totalorder %s334, %s350
      %p352 = scmp.eq.s32.totalorder %s28, 0
      %p353 = por %p351, %p352
      %s354 = ssub.s32 %s30, %s37
      %p355 = scmp.eq.s32.totalorder %s354, 0
      %s357 = sadd.s32 %s356, 1
      %s358 = scalar_select %p355, %s356, %s357
      %p361 = pneg %p355
      %p362 = scmp.eq.s32.totalorder %s22, 1
      %p363 = por %p361, %p362
      %p364 = scmp.ne.s32.totalorder %s356, %s359
      %p365 = scmp.eq.s32.totalorder %s22, 0
      %p366 = por %p364, %p365
      %p367 = scmp.ne.s32.totalorder %s356, %s359
      %p368 = scmp.eq.s32.totalorder %s27, 1
      %p369 = por %p367, %p368
      %p370 = scmp.ne.s32.totalorder %s359, %s360
      %p371 = scmp.eq.s32.totalorder %s27, 0
      %p372 = por %p370, %p371
      %p373 = scmp.ne.s32.totalorder %s359, %s360
      %p374 = scmp.eq.s32.totalorder %s28, 1
      %p375 = por %p373, %p374
      %p377 = scmp.ne.s32.totalorder %s360, %s376
      %p378 = scmp.eq.s32.totalorder %s28, 0
      %p379 = por %p377, %p378
      %s381 = sadd.s32 %s380, 1
      %p384 = scmp.eq.s32.totalorder %s22, 1
      %p385 = scmp.ne.s32.totalorder %s380, %s382
      %p386 = scmp.eq.s32.totalorder %s22, 0
      %p387 = por %p385, %p386
      %p388 = scmp.ne.s32.totalorder %s380, %s382
      %p389 = scmp.eq.s32.totalorder %s27, 1
      %p390 = por %p388, %p389
      %p391 = scmp.ne.s32.totalorder %s382, %s383
      %p392 = scmp.eq.s32.totalorder %s27, 0
      %p393 = por %p391, %p392
      %p394 = scmp.ne.s32.totalorder %s382, %s383
      %p395 = scmp.eq.s32.totalorder %s28, 1
      %p396 = por %p394, %p395
      %p398 = scmp.ne.s32.totalorder %s383, %s397
      %p399 = scmp.eq.s32.totalorder %s28, 0
      %p400 = por %p398, %p399
      %s402 = sadd.s32 %s401, 1
      %p405 = scmp.eq.s32.totalorder %s22, 1
      %p406 = scmp.ne.s32.totalorder %s401, %s403
      %p407 = scmp.eq.s32.totalorder %s22, 0
      %p408 = por %p406, %p407
      %p409 = scmp.ne.s32.totalorder %s401, %s403
      %p410 = scmp.eq.s32.totalorder %s27, 1
      %p411 = por %p409, %p410
      %p412 = scmp.ne.s32.totalorder %s403, %s404
      %p413 = scmp.eq.s32.totalorder %s27, 0
      %p414 = por %p412, %p413
      %p415 = scmp.ne.s32.totalorder %s403, %s404
      %p416 = scmp.eq.s32.totalorder %s28, 1
      %p417 = por %p415, %p416
      %p419 = scmp.ne.s32.totalorder %s404, %s418
      %p420 = scmp.eq.s32.totalorder %s28, 0
      %p421 = por %p419, %p420
      %s422 = ssub.s32 %s29, %s41
      %p423 = scmp.eq.s32.totalorder %s422, 0
      %s425 = sadd.s32 %s424, 1
      %s426 = scalar_select %p423, %s424, %s425
      %p429 = pneg %p423
      %p430 = scmp.eq.s32.totalorder %s22, 1
      %p431 = por %p429, %p430
      %p432 = scmp.ne.s32.totalorder %s424, %s427
      %p433 = scmp.eq.s32.totalorder %s22, 0
      %p434 = por %p432, %p433
      %p435 = scmp.ne.s32.totalorder %s424, %s427
      %p436 = scmp.eq.s32.totalorder %s27, 1
      %p437 = por %p435, %p436
      %p438 = scmp.ne.s32.totalorder %s427, %s428
      %p439 = scmp.eq.s32.totalorder %s27, 0
      %p440 = por %p438, %p439
      %p441 = scmp.ne.s32.totalorder %s427, %s428
      %p442 = scmp.eq.s32.totalorder %s28, 1
      %p443 = por %p441, %p442
      %p445 = scmp.ne.s32.totalorder %s428, %s444
      %p446 = scmp.eq.s32.totalorder %s28, 0
      %p447 = por %p445, %p446
      %p448 = scmp.le.s32.totalorder 1, %s22
      %p449 = scmp.lt.s32.totalorder %s22, 3
      %p450 = pnand %p448, %p449
      %p451 = pneg %p450
      // Predicated region
      $region9: #{tpu_custom_call.1} parent=5 // pred_check
        _
      $region10: #{tpu_custom_call.1} parent=5 // pred_check_branch
        %453 = sbr.rel (%p450) target = $region12
      $region11: #{tpu_custom_call.1} parent=5 // pred_region
        %s454 = ssub.s32 %s22, 1
        // Predicated region
        $region13: #{tpu_custom_call.1} parent=11 // pred_check
          %p455 = pneg %p60
        $region14: #{tpu_custom_call.1} parent=11 // pred_check_branch
          %457 = sbr.rel (%p455) target = $region16
        $region15: #{tpu_custom_call.1} parent=11 // pred_region
          %p458 = scmp.lt.s32.totalorder %s31, 0
          %s459 = scalar_select %p458, %s31, 0
          %s460 = smul.addr %s459, 2
          %s461 = scalar_lea.vmem %s0, %s460
        $region16: #{tpu_custom_call.1} parent=11 // pred_fallthru
          _
        // Predicated region
        $region17: #{tpu_custom_call.1} parent=11 // pred_check
          %p462 = pneg %p393
        $region18: #{tpu_custom_call.1} parent=11 // pred_check_branch
          %464 = sbr.rel (%p462) target = $region20
        $region19: #{tpu_custom_call.1} parent=11 // pred_region
          _
        $region20: #{tpu_custom_call.1} parent=11 // pred_fallthru
          _
        // Predicated region
        $region21: #{tpu_custom_call.1} parent=11 // pred_check
          %p465 = pneg %p414
        $region22: #{tpu_custom_call.1} parent=11 // pred_check_branch
          %467 = sbr.rel (%p465) target = $region24
        $region23: #{tpu_custom_call.1} parent=11 // pred_region
          _
        $region24: #{tpu_custom_call.1} parent=11 // pred_fallthru
          _
      $region12: #{tpu_custom_call.1} parent=5 // pred_fallthru
        _
      %p468 = scmp.lt.s32.totalorder %s22, 2
      // Predicated region
      $region25: #{tpu_custom_call.1} parent=5 // pred_check
        %p469 = pneg %p468
      $region26: #{tpu_custom_call.1} parent=5 // pred_check_branch
        %471 = sbr.rel (%p469) target = $region28
      $region27: #{tpu_custom_call.1} parent=5 // pred_region
        // Predicated region
        $region29: #{tpu_custom_call.1} parent=27 // pred_check
          %p472 = pneg %p80
        $region30: #{tpu_custom_call.1} parent=27 // pred_check_branch
          %474 = sbr.rel (%p472) target = $region32
        $region31: #{tpu_custom_call.1} parent=27 // pred_region
          %p475 = scmp.lt.s32.totalorder %s30, 1
          %s476 = scalar_select %p475, %s30, 1
          %s477 = scalar_lea.vmem %s1, %s476
        $region32: #{tpu_custom_call.1} parent=27 // pred_fallthru
          _
        // Predicated region
        $region33: #{tpu_custom_call.1} parent=27 // pred_check
          %p478 = pneg %p106
        $region34: #{tpu_custom_call.1} parent=27 // pred_check_branch
          %480 = sbr.rel (%p478) target = $region36
        $region35: #{tpu_custom_call.1} parent=27 // pred_region
          %p481 = scmp.lt.s32.totalorder %s30, 1
          %s482 = scalar_select %p481, %s30, 1
          %s483 = scalar_lea.vmem %s2, %s482
        $region36: #{tpu_custom_call.1} parent=27 // pred_fallthru
          _
        // Predicated region
        $region37: #{tpu_custom_call.1} parent=27 // pred_check
          %p484 = pneg %p132
        $region38: #{tpu_custom_call.1} parent=27 // pred_check_branch
          %486 = sbr.rel (%p484) target = $region40
        $region39: #{tpu_custom_call.1} parent=27 // pred_region
          %p487 = scmp.lt.s32.totalorder %s30, 1
          %s488 = scalar_select %p487, %s30, 1
          %s489 = smul.addr %s488, 4
          %s490 = smul.addr %s489, 4
          %s491 = scalar_lea.vmem %s3, %s490
        $region40: #{tpu_custom_call.1} parent=27 // pred_fallthru
          _
        // Predicated region
        $region41: #{tpu_custom_call.1} parent=27 // pred_check
          %p492 = pneg %p158
        $region42: #{tpu_custom_call.1} parent=27 // pred_check_branch
          %494 = sbr.rel (%p492) target = $region44
        $region43: #{tpu_custom_call.1} parent=27 // pred_region
          %p495 = scmp.lt.s32.totalorder %s30, 1
          %s496 = scalar_select %p495, %s30, 1
          %s497 = scalar_lea.vmem %s4, %s496
        $region44: #{tpu_custom_call.1} parent=27 // pred_fallthru
          _
        // Predicated region
        $region45: #{tpu_custom_call.1} parent=27 // pred_check
          %p498 = pneg %p184
        $region46: #{tpu_custom_call.1} parent=27 // pred_check_branch
          %500 = sbr.rel (%p498) target = $region48
        $region47: #{tpu_custom_call.1} parent=27 // pred_region
          %p501 = scmp.lt.s32.totalorder %s30, 1
          %s502 = scalar_select %p501, %s30, 1
          %s503 = smul.addr %s502, 4
          %s504 = smul.addr %s503, 4
          %s505 = scalar_lea.vmem %s5, %s504
        $region48: #{tpu_custom_call.1} parent=27 // pred_fallthru
          _
        // Predicated region
        $region49: #{tpu_custom_call.1} parent=27 // pred_check
          %p506 = pneg %p210
        $region50: #{tpu_custom_call.1} parent=27 // pred_check_branch
          %508 = sbr.rel (%p506) target = $region52
        $region51: #{tpu_custom_call.1} parent=27 // pred_region
          %p509 = scmp.lt.s32.totalorder %s30, 1
          %s510 = scalar_select %p509, %s30, 1
          %s511 = scalar_lea.vmem %s6, %s510
        $region52: #{tpu_custom_call.1} parent=27 // pred_fallthru
          _
        // Predicated region
        $region53: #{tpu_custom_call.1} parent=27 // pred_check
          %p512 = pneg %p236
        $region54: #{tpu_custom_call.1} parent=27 // pred_check_branch
          %514 = sbr.rel (%p512) target = $region56
        $region55: #{tpu_custom_call.1} parent=27 // pred_region
          %p515 = scmp.lt.s32.totalorder %s30, 1
          %s516 = scalar_select %p515, %s30, 1
          %s517 = scalar_lea.vmem %s7, %s516
        $region56: #{tpu_custom_call.1} parent=27 // pred_fallthru
          _
        // Predicated region
        $region57: #{tpu_custom_call.1} parent=27 // pred_check
          %p518 = pneg %p262
        $region58: #{tpu_custom_call.1} parent=27 // pred_check_branch
          %520 = sbr.rel (%p518) target = $region60
        $region59: #{tpu_custom_call.1} parent=27 // pred_region
          %p521 = scmp.lt.s32.totalorder %s30, 1
          %s522 = scalar_select %p521, %s30, 1
          %s523 = scalar_lea.vmem %s8, %s522
        $region60: #{tpu_custom_call.1} parent=27 // pred_fallthru
          _
        // Predicated region
        $region61: #{tpu_custom_call.1} parent=27 // pred_check
          %p524 = pneg %p288
        $region62: #{tpu_custom_call.1} parent=27 // pred_check_branch
          %526 = sbr.rel (%p524) target = $region64
        $region63: #{tpu_custom_call.1} parent=27 // pred_region
          %p527 = scmp.lt.s32.totalorder %s30, 1
          %s528 = scalar_select %p527, %s30, 1
          %s529 = smul.addr %s528, 4
          %s530 = smul.addr %s529, 4
          %s531 = scalar_lea.vmem %s9, %s530
        $region64: #{tpu_custom_call.1} parent=27 // pred_fallthru
          _
        // Predicated region
        $region65: #{tpu_custom_call.1} parent=27 // pred_check
          %p532 = pneg %p314
        $region66: #{tpu_custom_call.1} parent=27 // pred_check_branch
          %534 = sbr.rel (%p532) target = $region68
        $region67: #{tpu_custom_call.1} parent=27 // pred_region
          %p535 = scmp.lt.s32.totalorder %s30, 1
          %s536 = scalar_select %p535, %s30, 1
          %s537 = scalar_lea.vmem %s10, %s536
        $region68: #{tpu_custom_call.1} parent=27 // pred_fallthru
          _
        // Predicated region
        $region69: #{tpu_custom_call.1} parent=27 // pred_check
          %p538 = pneg %p340
        $region70: #{tpu_custom_call.1} parent=27 // pred_check_branch
          %540 = sbr.rel (%p538) target = $region72
        $region71: #{tpu_custom_call.1} parent=27 // pred_region
          %p541 = scmp.lt.s32.totalorder %s30, 1
          %s542 = scalar_select %p541, %s30, 1
          %s543 = smul.addr %s542, 16
          %s544 = smul.addr %s543, 4
          %s545 = scalar_lea.vmem %s11, %s544
        $region72: #{tpu_custom_call.1} parent=27 // pred_fallthru
          _
        // Predicated region
        $region73: #{tpu_custom_call.1} parent=27 // pred_check
          %p546 = pneg %p366
        $region74: #{tpu_custom_call.1} parent=27 // pred_check_branch
          %548 = sbr.rel (%p546) target = $region76
        $region75: #{tpu_custom_call.1} parent=27 // pred_region
          %p549 = scmp.lt.s32.totalorder %s30, 1
          %s550 = scalar_select %p549, %s30, 1
          %s551 = scalar_lea.vmem %s12, %s550
        $region76: #{tpu_custom_call.1} parent=27 // pred_fallthru
          _
      $region28: #{tpu_custom_call.1} parent=5 // pred_fallthru
        _
      %p552 = scmp.le.s32.totalorder 1, %s22
      %p553 = scmp.lt.s32.totalorder %s22, 3
      %p554 = pnand %p552, %p553
      %p555 = pneg %p554
      // Predicated region
      $region77: #{tpu_custom_call.1} parent=5 // pred_check
        _
      $region78: #{tpu_custom_call.1} parent=5 // pred_check_branch
        %557 = sbr.rel (%p554) target = $region80
      $region79: #{tpu_custom_call.1} parent=5 // pred_region
        %s558 = ssub.s32 %s22, 1
        %p559 = scmp.lt.s32.totalorder %s31, 0
        %s560 = scalar_select %p559, %s31, 0
        %s561 = smul.addr %s560, 2
        %s562 = scalar_lea.vmem %s0, %s561
        %p563 = pneg %p60
        %p564 = pneg %p57
        %p565 = scmp.lt.s32.totalorder %s32, 1
        %s566 = scalar_select %p565, %s32, 1
        %s567 = scalar_lea.vmem %s1, %s566
        %p568 = pneg %p86
        %p569 = pneg %p83
        %p570 = scmp.lt.s32.totalorder %s32, 1
        %s571 = scalar_select %p570, %s32, 1
        %s572 = scalar_lea.vmem %s2, %s571
        %p573 = pneg %p112
        %p574 = pneg %p109
        %p575 = scmp.lt.s32.totalorder %s32, 1
        %s576 = scalar_select %p575, %s32, 1
        %s577 = smul.addr %s576, 4
        %s578 = smul.addr %s577, 4
        %s579 = scalar_lea.vmem %s3, %s578
        %p580 = pneg %p138
        %p581 = pneg %p135
        %p582 = scmp.lt.s32.totalorder %s32, 1
        %s583 = scalar_select %p582, %s32, 1
        %s584 = scalar_lea.vmem %s4, %s583
        %p585 = pneg %p164
        %p586 = pneg %p161
        %p587 = scmp.lt.s32.totalorder %s32, 1
        %s588 = scalar_select %p587, %s32, 1
        %s589 = smul.addr %s588, 4
        %s590 = smul.addr %s589, 4
        %s591 = scalar_lea.vmem %s5, %s590
        %p592 = pneg %p190
        %p593 = pneg %p187
        %p594 = scmp.lt.s32.totalorder %s32, 1
        %s595 = scalar_select %p594, %s32, 1
        %s596 = scalar_lea.vmem %s6, %s595
        %p597 = pneg %p216
        %p598 = pneg %p213
        %p599 = scmp.lt.s32.totalorder %s32, 1
        %s600 = scalar_select %p599, %s32, 1
        %s601 = scalar_lea.vmem %s7, %s600
        %p602 = pneg %p242
        %p603 = pneg %p239
        %p604 = scmp.lt.s32.totalorder %s32, 1
        %s605 = scalar_select %p604, %s32, 1
        %s606 = scalar_lea.vmem %s8, %s605
        %p607 = pneg %p268
        %p608 = pneg %p265
        %p609 = scmp.lt.s32.totalorder %s32, 1
        %s610 = scalar_select %p609, %s32, 1
        %s611 = smul.addr %s610, 4
        %s612 = smul.addr %s611, 4
        %s613 = scalar_lea.vmem %s9, %s612
        %p614 = pneg %p294
        %p615 = pneg %p291
        %p616 = scmp.lt.s32.totalorder %s32, 1
        %s617 = scalar_select %p616, %s32, 1
        %s618 = scalar_lea.vmem %s10, %s617
        %p619 = pneg %p320
        %p620 = pneg %p317
        %p621 = scmp.lt.s32.totalorder %s32, 1
        %s622 = scalar_select %p621, %s32, 1
        %s623 = smul.addr %s622, 16
        %s624 = smul.addr %s623, 4
        %s625 = scalar_lea.vmem %s11, %s624
        %p626 = pneg %p346
        %p627 = pneg %p343
        %p628 = scmp.lt.s32.totalorder %s32, 1
        %s629 = scalar_select %p628, %s32, 1
        %s630 = scalar_lea.vmem %s12, %s629
        %p631 = pneg %p372
        %p632 = pneg %p369
        %p633 = pneg %p393
        %p634 = pneg %p390
        %p635 = pneg %p414
        %p636 = pneg %p411
        %p637 = pneg %p440
        %p638 = pneg %p437
        %p639 = scmp.lt.s32.totalorder %s31, 0
        %s640 = scalar_select %p639, %s31, 0
        %s641 = smul.addr %s640, 2
        %s642 = scalar_lea.vmem %s0, %s641
        %p643 = scmp.lt.s32.totalorder %s32, 1
        %s644 = scalar_select %p643, %s32, 1
        %s645 = scalar_lea.vmem %s1, %s644
        %p646 = scmp.lt.s32.totalorder %s32, 1
        %s647 = scalar_select %p646, %s32, 1
        %s648 = scalar_lea.vmem %s2, %s647
        %p649 = scmp.lt.s32.totalorder %s32, 1
        %s650 = scalar_select %p649, %s32, 1
        %s651 = smul.addr %s650, 4
        %s652 = smul.addr %s651, 4
        %s653 = scalar_lea.vmem %s3, %s652
        %p654 = scmp.lt.s32.totalorder %s32, 1
        %s655 = scalar_select %p654, %s32, 1
        %s656 = scalar_lea.vmem %s4, %s655
        %p657 = scmp.lt.s32.totalorder %s32, 1
        %s658 = scalar_select %p657, %s32, 1
        %s659 = smul.addr %s658, 4
        %s660 = smul.addr %s659, 4
        %s661 = scalar_lea.vmem %s5, %s660
        %p662 = scmp.lt.s32.totalorder %s32, 1
        %s663 = scalar_select %p662, %s32, 1
        %s664 = scalar_lea.vmem %s6, %s663
        %p665 = scmp.lt.s32.totalorder %s32, 1
        %s666 = scalar_select %p665, %s32, 1
        %s667 = scalar_lea.vmem %s7, %s666
        %p668 = scmp.lt.s32.totalorder %s32, 1
        %s669 = scalar_select %p668, %s32, 1
        %s670 = scalar_lea.vmem %s8, %s669
        %p671 = scmp.lt.s32.totalorder %s32, 1
        %s672 = scalar_select %p671, %s32, 1
        %s673 = smul.addr %s672, 4
        %s674 = smul.addr %s673, 4
        %s675 = scalar_lea.vmem %s9, %s674
        %p676 = scmp.lt.s32.totalorder %s32, 1
        %s677 = scalar_select %p676, %s32, 1
        %s678 = scalar_lea.vmem %s10, %s677
        %p679 = scmp.lt.s32.totalorder %s32, 1
        %s680 = scalar_select %p679, %s32, 1
        %s681 = smul.addr %s680, 16
        %s682 = smul.addr %s681, 4
        %s683 = scalar_lea.vmem %s11, %s682
        %p684 = scmp.lt.s32.totalorder %s32, 1
        %s685 = scalar_select %p684, %s32, 1
        %s686 = scalar_lea.vmem %s12, %s685
        %p688 = scmp.eq.s32.totalorder %s32, 0
        // Predicated region
        $region81: #{tpu_custom_call.1} parent=79 // pred_check
          %p689 = pneg %p688
        $region82: #{tpu_custom_call.1} parent=79 // pred_check_branch
          %691 = sbr.rel (%p689) target = $region84
        $region83: #{tpu_custom_call.1} parent=79 // pred_region
          %v692 = vld [vmem:[%s642] sm:$0x3]
          %v693 = vld [vmem:[%s642 + $0x2] sm:$0x3]
          %v694 = vld [vmem:[%s642 + $0x4] sm:$0x3]
          %v695 = vld [vmem:[%s642 + $0x6] sm:$0x3]
          %v696 = vld [vmem:[%s642 + $0x8] sm:$0x3]
          %v697 = vld [vmem:[%s642 + $0xa] sm:$0x3]
          %v698 = vld [vmem:[%s642 + $0xc] sm:$0x3]
          %v699 = vld [vmem:[%s642 + $0xe] sm:$0x3]
          %v700 = vld [vmem:[%s642 + $0x10] sm:$0x3]
          %vm701 = vcmask 254976
          %702 = vst.msk [vmem:[#allocation2] sm:$0x3] %vm701, %v692
          %703 = vst.msk [vmem:[#allocation2 + $0x2] sm:$0x3] %vm701, %v693
          %704 = vst.msk [vmem:[#allocation2 + $0x4] sm:$0x3] %vm701, %v694
          %705 = vst.msk [vmem:[#allocation2 + $0x6] sm:$0x3] %vm701, %v695
          %706 = vst.msk [vmem:[#allocation2 + $0x8] sm:$0x3] %vm701, %v696
          %707 = vst.msk [vmem:[#allocation2 + $0xa] sm:$0x3] %vm701, %v697
          %708 = vst.msk [vmem:[#allocation2 + $0xc] sm:$0x3] %vm701, %v698
          %709 = vst.msk [vmem:[#allocation2 + $0xe] sm:$0x3] %vm701, %v699
          %710 = vst.msk [vmem:[#allocation2 + $0x10] sm:$0x3] %vm701, %v700
        $region84: #{tpu_custom_call.1} parent=79 // pred_fallthru
          _
        %v711 = vld [vmem:[#allocation2] sm:$0x3]
        %v712 = vld [vmem:[#allocation2 + $0x2] sm:$0x3]
        %v713 = vld [vmem:[#allocation2 + $0x4] sm:$0x3]
        %v714 = vld [vmem:[#allocation2 + $0x6] sm:$0x3]
        %v715 = vld [vmem:[#allocation2 + $0x8] sm:$0x3]
        %v716 = vld [vmem:[#allocation2 + $0xa] sm:$0x3]
        %v717 = vld [vmem:[#allocation2 + $0xc] sm:$0x3]
        %v718 = vld [vmem:[#allocation2 + $0xe] sm:$0x3]
        %v719 = vld [vmem:[#allocation2 + $0x10] sm:$0x3]
        %v729 = vcombine.low %v711, %v712
        %v730 = vcombine.low %v713, %v714
        %v732 = vunpack.c.l.s4 1983009808
        %v733 = vunpack.c.0.s8 %v732
        %v734 = vlaneseq
        %v735 = vshrl.u32 %v734, 7
        %v736 = vsub.s32 %v733, %v735
        %v737 = vrot.slane %v729, %v736
        %v739 = vunpack.c.l.s4 1983009808
        %v740 = vunpack.c.0.s8 %v739
        %v741 = vlaneseq
        %v742 = vshrl.u32 %v741, 7
        %v743 = vsub.s32 %v740, %v742
        %v744 = vrot.slane %v730, %v743
        %v745 = vcombine.low %v737, %v744
        %v746 = vcombine.low %v715, %v716
        %v747 = vcombine.low %v717, %v718
        %v749 = vunpack.c.l.s4 1983009808
        %v750 = vunpack.c.0.s8 %v749
        %v751 = vlaneseq
        %v752 = vshrl.u32 %v751, 7
        %v753 = vsub.s32 %v750, %v752
        %v754 = vrot.slane %v746, %v753
        %v756 = vunpack.c.l.s4 1983009808
        %v757 = vunpack.c.0.s8 %v756
        %v758 = vlaneseq
        %v759 = vshrl.u32 %v758, 7
        %v760 = vsub.s32 %v757, %v759
        %v761 = vrot.slane %v747, %v760
        %v762 = vcombine.low %v754, %v761
        %v764 = vunpack.c.l.s4 1983009808
        %v765 = vunpack.c.0.s8 %v764
        %v766 = vlaneseq
        %v767 = vshrl.u32 %v766, 7
        %v768 = vsub.s32 %v765, %v767
        %v769 = vrot.slane %v719, %v768
        %vm773 = vcmask 261120
        %v774 = vsel %vm773, %v745, 0.0
        %775 = vadd.xlane.f32.xlu0 %v774
        %v776 = vpop.xlane.xlu0 %775
        %v777 = vsel %vm773, %v762, 0.0
        %778 = vadd.xlane.f32.xlu0 %v777
        %v779 = vpop.xlane.xlu0 %778
        %vm780 = vcmask 254976
        %v781 = vsel %vm780, %v769, 0.0
        %782 = vadd.xlane.f32.xlu0 %v781
        %v783 = vpop.xlane.xlu0 %782
        %v784 = vrcp.pop 32.0
        %v785 = vmul.f32 %v776, %v784
        %v786 = vmul.f32 %v779, %v784
        %v787 = vmul.f32 %v783, %v784
        %v788 = vmul.f32 %v711, %v711
        %v789 = vmul.f32 %v712, %v712
        %v790 = vmul.f32 %v713, %v713
        %v791 = vmul.f32 %v714, %v714
        %v792 = vmul.f32 %v715, %v715
        %v793 = vmul.f32 %v716, %v716
        %v794 = vmul.f32 %v717, %v717
        %v795 = vmul.f32 %v718, %v718
        %v796 = vmul.f32 %v719, %v719
        %v806 = vcombine.low %v788, %v789
        %v807 = vcombine.low %v790, %v791
        %v809 = vunpack.c.l.s4 1983009808
        %v810 = vunpack.c.0.s8 %v809
        %v811 = vlaneseq
        %v812 = vshrl.u32 %v811, 7
        %v813 = vsub.s32 %v810, %v812
        %v814 = vrot.slane %v806, %v813
        %v816 = vunpack.c.l.s4 1983009808
        %v817 = vunpack.c.0.s8 %v816
        %v818 = vlaneseq
        %v819 = vshrl.u32 %v818, 7
        %v820 = vsub.s32 %v817, %v819
        %v821 = vrot.slane %v807, %v820
        %v822 = vcombine.low %v814, %v821
        %v823 = vcombine.low %v792, %v793
        %v824 = vcombine.low %v794, %v795
        %v826 = vunpack.c.l.s4 1983009808
        %v827 = vunpack.c.0.s8 %v826
        %v828 = vlaneseq
        %v829 = vshrl.u32 %v828, 7
        %v830 = vsub.s32 %v827, %v829
        %v831 = vrot.slane %v823, %v830
        %v833 = vunpack.c.l.s4 1983009808
        %v834 = vunpack.c.0.s8 %v833
        %v835 = vlaneseq
        %v836 = vshrl.u32 %v835, 7
        %v837 = vsub.s32 %v834, %v836
        %v838 = vrot.slane %v824, %v837
        %v839 = vcombine.low %v831, %v838
        %v841 = vunpack.c.l.s4 1983009808
        %v842 = vunpack.c.0.s8 %v841
        %v843 = vlaneseq
        %v844 = vshrl.u32 %v843, 7
        %v845 = vsub.s32 %v842, %v844
        %v846 = vrot.slane %v796, %v845
        %v850 = vsel %vm773, %v822, 0.0
        %851 = vadd.xlane.f32.xlu0 %v850
        %v852 = vpop.xlane.xlu0 %851
        %v853 = vsel %vm773, %v839, 0.0
        %854 = vadd.xlane.f32.xlu0 %v853
        %v855 = vpop.xlane.xlu0 %854
        %v856 = vsel %vm780, %v846, 0.0
        %857 = vadd.xlane.f32.xlu0 %v856
        %v858 = vpop.xlane.xlu0 %857
        %v859 = vmul.f32 %v852, %v784
        %v860 = vmul.f32 %v855, %v784
        %v861 = vmul.f32 %v858, %v784
        %v862 = vmul.f32 %v785, %v785
        %v863 = vmul.f32 %v786, %v786
        %v864 = vmul.f32 %v787, %v787
        %v865 = vsub.f32 %v859, %v862
        %v866 = vsub.f32 %v860, %v863
        %v867 = vsub.f32 %v861, %v864
        %v872 = vunpack.c.l.s4 269488144
        %v873 = vunpack.c.0.s8 %v872
        %v874 = vlaneseq
        %v875 = vshrl.u32 %v874, 7
        %v876 = vsub.s32 %v873, %v875
        %v877 = vrot.slane %v785, %v876
        %v879 = vunpack.c.l.s4 842150450
        %v880 = vunpack.c.0.s8 %v879
        %v881 = vlaneseq
        %v882 = vshrl.u32 %v881, 7
        %v883 = vsub.s32 %v880, %v882
        %v884 = vrot.slane %v785, %v883
        %v886 = vunpack.c.l.s4 1414812756
        %v887 = vunpack.c.0.s8 %v886
        %v888 = vlaneseq
        %v889 = vshrl.u32 %v888, 7
        %v890 = vsub.s32 %v887, %v889
        %v891 = vrot.slane %v785, %v890
        %v893 = vunpack.c.l.s4 1987475062
        %v894 = vunpack.c.0.s8 %v893
        %v895 = vlaneseq
        %v896 = vshrl.u32 %v895, 7
        %v897 = vsub.s32 %v894, %v896
        %v898 = vrot.slane %v785, %v897
        %v900 = vunpack.c.l.s4 269488144
        %v901 = vunpack.c.0.s8 %v900
        %v902 = vlaneseq
        %v903 = vshrl.u32 %v902, 7
        %v904 = vsub.s32 %v901, %v903
        %v905 = vrot.slane %v786, %v904
        %v907 = vunpack.c.l.s4 842150450
        %v908 = vunpack.c.0.s8 %v907
        %v909 = vlaneseq
        %v910 = vshrl.u32 %v909, 7
        %v911 = vsub.s32 %v908, %v910
        %v912 = vrot.slane %v786, %v911
        %v914 = vunpack.c.l.s4 1414812756
        %v915 = vunpack.c.0.s8 %v914
        %v916 = vlaneseq
        %v917 = vshrl.u32 %v916, 7
        %v918 = vsub.s32 %v915, %v917
        %v919 = vrot.slane %v786, %v918
        %v921 = vunpack.c.l.s4 1987475062
        %v922 = vunpack.c.0.s8 %v921
        %v923 = vlaneseq
        %v924 = vshrl.u32 %v923, 7
        %v925 = vsub.s32 %v922, %v924
        %v926 = vrot.slane %v786, %v925
        %v928 = vunpack.c.l.s4 269488144
        %v929 = vunpack.c.0.s8 %v928
        %v930 = vlaneseq
        %v931 = vshrl.u32 %v930, 7
        %v932 = vsub.s32 %v929, %v931
        %v933 = vrot.slane %v787, %v932
        %v943 = vsub.f32 %v711, %v877
        %v944 = vsub.f32 %v712, %v884
        %v945 = vsub.f32 %v713, %v891
        %v946 = vsub.f32 %v714, %v898
        %v947 = vsub.f32 %v715, %v905
        %v948 = vsub.f32 %v716, %v912
        %v949 = vsub.f32 %v717, %v919
        %v950 = vsub.f32 %v718, %v926
        %v951 = vsub.f32 %v719, %v933
        %v952 = vadd.f32 %v865, 1e-06
        %v953 = vadd.f32 %v866, 1e-06
        %v954 = vadd.f32 %v867, 1e-06
        %v955 = vrsqrt.pop %v952
        %v956 = vrsqrt.pop %v953
        %v957 = vrsqrt.pop %v954
        %v962 = vunpack.c.l.s4 269488144
        %v963 = vunpack.c.0.s8 %v962
        %v964 = vlaneseq
        %v965 = vshrl.u32 %v964, 7
        %v966 = vsub.s32 %v963, %v965
        %v967 = vrot.slane %v955, %v966
        %v969 = vunpack.c.l.s4 842150450
        %v970 = vunpack.c.0.s8 %v969
        %v971 = vlaneseq
        %v972 = vshrl.u32 %v971, 7
        %v973 = vsub.s32 %v970, %v972
        %v974 = vrot.slane %v955, %v973
        %v976 = vunpack.c.l.s4 1414812756
        %v977 = vunpack.c.0.s8 %v976
        %v978 = vlaneseq
        %v979 = vshrl.u32 %v978, 7
        %v980 = vsub.s32 %v977, %v979
        %v981 = vrot.slane %v955, %v980
        %v983 = vunpack.c.l.s4 1987475062
        %v984 = vunpack.c.0.s8 %v983
        %v985 = vlaneseq
        %v986 = vshrl.u32 %v985, 7
        %v987 = vsub.s32 %v984, %v986
        %v988 = vrot.slane %v955, %v987
        %v990 = vunpack.c.l.s4 269488144
        %v991 = vunpack.c.0.s8 %v990
        %v992 = vlaneseq
        %v993 = vshrl.u32 %v992, 7
        %v994 = vsub.s32 %v991, %v993
        %v995 = vrot.slane %v956, %v994
        %v997 = vunpack.c.l.s4 842150450
        %v998 = vunpack.c.0.s8 %v997
        %v999 = vlaneseq
        %v1000 = vshrl.u32 %v999, 7
        %v1001 = vsub.s32 %v998, %v1000
        %v1002 = vrot.slane %v956, %v1001
        %v1004 = vunpack.c.l.s4 1414812756
        %v1005 = vunpack.c.0.s8 %v1004
        %v1006 = vlaneseq
        %v1007 = vshrl.u32 %v1006, 7
        %v1008 = vsub.s32 %v1005, %v1007
        %v1009 = vrot.slane %v956, %v1008
        %v1011 = vunpack.c.l.s4 1987475062
        %v1012 = vunpack.c.0.s8 %v1011
        %v1013 = vlaneseq
        %v1014 = vshrl.u32 %v1013, 7
        %v1015 = vsub.s32 %v1012, %v1014
        %v1016 = vrot.slane %v956, %v1015
        %v1018 = vunpack.c.l.s4 269488144
        %v1019 = vunpack.c.0.s8 %v1018
        %v1020 = vlaneseq
        %v1021 = vshrl.u32 %v1020, 7
        %v1022 = vsub.s32 %v1019, %v1021
        %v1023 = vrot.slane %v957, %v1022
        %v1033 = vmul.f32 %v943, %v967
        %v1034 = vmul.f32 %v944, %v974
        %v1035 = vmul.f32 %v945, %v981
        %v1036 = vmul.f32 %v946, %v988
        %v1037 = vmul.f32 %v947, %v995
        %v1038 = vmul.f32 %v948, %v1002
        %v1039 = vmul.f32 %v949, %v1009
        %v1040 = vmul.f32 %v950, %v1016
        %v1041 = vmul.f32 %v951, %v1023
        %v1042 = vld [vmem:[%s645] sm:$0x1]
        %v1044 = vlaneseq
        %v1045 = vshrl.u32 %v1044, 7
        %v1046 = vsub.s32 0, %v1045
        %v1047 = vrot.slane %v1042, %v1046
        %v1048 = vcombine.high %v1047, %v1047
        %v1050 = vunpack.c.l.s4 1983009808
        %v1051 = vunpack.c.0.s8 %v1050
        %v1052 = vlaneseq
        %v1053 = vshrl.u32 %v1052, 7
        %v1054 = vsub.s32 %v1051, %v1053
        %v1055 = vrot.slane %v1047, %v1054
        %v1057 = vunpack.c.l.s4 1983009808
        %v1058 = vunpack.c.0.s8 %v1057
        %v1059 = vlaneseq
        %v1060 = vshrl.u32 %v1059, 7
        %v1061 = vsub.s32 %v1058, %v1060
        %v1062 = vrot.slane %v1048, %v1061
        %v1063 = vcombine.high %v1055, %v1055
        %v1064 = vcombine.high %v1062, %v1062
        %v1069 = vmul.f32 %v1033, %v1055
        %v1070 = vmul.f32 %v1034, %v1063
        %v1071 = vmul.f32 %v1035, %v1062
        %v1072 = vmul.f32 %v1036, %v1064
        %v1073 = vmul.f32 %v1037, %v1055
        %v1074 = vmul.f32 %v1038, %v1063
        %v1075 = vmul.f32 %v1039, %v1062
        %v1076 = vmul.f32 %v1040, %v1064
        %v1077 = vmul.f32 %v1041, %v1055
        %v1078 = vld [vmem:[%s648] sm:$0x1]
        %v1080 = vlaneseq
        %v1081 = vshrl.u32 %v1080, 7
        %v1082 = vsub.s32 0, %v1081
        %v1083 = vrot.slane %v1078, %v1082
        %v1084 = vcombine.high %v1083, %v1083
        %v1086 = vunpack.c.l.s4 1983009808
        %v1087 = vunpack.c.0.s8 %v1086
        %v1088 = vlaneseq
        %v1089 = vshrl.u32 %v1088, 7
        %v1090 = vsub.s32 %v1087, %v1089
        %v1091 = vrot.slane %v1083, %v1090
        %v1093 = vunpack.c.l.s4 1983009808
        %v1094 = vunpack.c.0.s8 %v1093
        %v1095 = vlaneseq
        %v1096 = vshrl.u32 %v1095, 7
        %v1097 = vsub.s32 %v1094, %v1096
        %v1098 = vrot.slane %v1084, %v1097
        %v1099 = vcombine.high %v1091, %v1091
        %v1100 = vcombine.high %v1098, %v1098
        %v1105 = vadd.f32 %v1069, %v1091
        %v1106 = vadd.f32 %v1070, %v1099
        %v1107 = vadd.f32 %v1071, %v1098
        %v1108 = vadd.f32 %v1072, %v1100
        %v1109 = vadd.f32 %v1073, %v1091
        %v1110 = vadd.f32 %v1074, %v1099
        %v1111 = vadd.f32 %v1075, %v1098
        %v1112 = vadd.f32 %v1076, %v1100
        %v1113 = vadd.f32 %v1077, %v1091
        %v1123 = vcombine.low %v1105, %v1106
        %v1124 = vcombine.low %v1107, %v1108
        %v1126 = vunpack.c.l.s4 1983009808
        %v1127 = vunpack.c.0.s8 %v1126
        %v1128 = vlaneseq
        %v1129 = vshrl.u32 %v1128, 7
        %v1130 = vsub.s32 %v1127, %v1129
        %v1131 = vrot.slane %v1123, %v1130
        %v1133 = vunpack.c.l.s4 1983009808
        %v1134 = vunpack.c.0.s8 %v1133
        %v1135 = vlaneseq
        %v1136 = vshrl.u32 %v1135, 7
        %v1137 = vsub.s32 %v1134, %v1136
        %v1138 = vrot.slane %v1124, %v1137
        %v1139 = vcombine.low %v1131, %v1138
        %v1140 = vcombine.low %v1109, %v1110
        %v1141 = vcombine.low %v1111, %v1112
        %v1143 = vunpack.c.l.s4 1983009808
        %v1144 = vunpack.c.0.s8 %v1143
        %v1145 = vlaneseq
        %v1146 = vshrl.u32 %v1145, 7
        %v1147 = vsub.s32 %v1144, %v1146
        %v1148 = vrot.slane %v1140, %v1147
        %v1150 = vunpack.c.l.s4 1983009808
        %v1151 = vunpack.c.0.s8 %v1150
        %v1152 = vlaneseq
        %v1153 = vshrl.u32 %v1152, 7
        %v1154 = vsub.s32 %v1151, %v1153
        %v1155 = vrot.slane %v1141, %v1154
        %v1156 = vcombine.low %v1148, %v1155
        %v1158 = vunpack.c.l.s4 1983009808
        %v1159 = vunpack.c.0.s8 %v1158
        %v1160 = vlaneseq
        %v1161 = vshrl.u32 %v1160, 7
        %v1162 = vsub.s32 %v1159, %v1161
        %v1163 = vrot.slane %v1113, %v1162
        %v1167 = vpack.c.bf16 %v1156, %v1139
        %v1168 = vpack.c.bf16 %v1163, %v1163
        %v1169 = vld [vmem:[%s653] sm:$0xf]
        %v1170 = vld [vmem:[%s653 + $0x4] sm:$0xf]
        %v1171 = vld [vmem:[%s653 + $0x8] sm:$0xf]
        %v1172 = vld [vmem:[%s653 + $0xc] sm:$0xf]
        %v1173 = vld [vmem:[%s656] sm:$0x1]
        %v1175 = vlaneseq
        %v1176 = vshrl.u32 %v1175, 7
        %v1177 = vsub.s32 0, %v1176
        %v1178 = vrot.slane %v1173, %v1177
        %v1184 = vunpack.c.l.b16 %v1169
        %v1185 = vunpack.c.l.b16 %v1170
        %v1186 = vunpack.c.l.b16 %v1171
        %v1187 = vunpack.c.l.b16 %v1172
        %v1188 = vpack.c.b16 %v1185, %v1184
        %v1189 = vpack.c.b16 %v1187, %v1186
        %v1193 = vsel %vm773, %v1167, 0
        %v1196 = vsel %vm773, %v1168, 0
        %1198 = vmatprep.subr.bf16.mxu0 0
        %1199 = vmatpush1.bf16.msra.mxu0 %v1188
        %1200 = vmatprep.subr.bf16.mxu0 0
        %1201 = vmatpush1.bf16.msra.mxu0 %v1189
        %1202 = vmatprep.subr.bf16.mxu0 0
        %1203 = vmatpush1.bf16.msra.mxu0 0
        %1204 = vmatprep.subr.bf16.mxu0 0
        %1205 = vmatpush1.bf16.msra.mxu0 0
        %1206 = vmatprep.subr.bf16.mxu0 0
        %1207 = vmatpush1.bf16.msra.mxu0 0
        %1208 = vmatprep.subr.bf16.mxu0 0
        %1209 = vmatpush1.bf16.msra.mxu0 0
        %1210 = vmatprep.subr.bf16.mxu0 0
        %1211 = vmatpush1.bf16.msra.mxu0 0
        %1212 = vmatprep.subr.bf16.mxu0 0
        %1213 = vmatpush1.bf16.msra.mxu0 0
        %1214 = vmatprep.subr.bf16.mxu0 0
        %1215 = vmatpush1.bf16.msra.mxu0 0
        %1216 = vmatprep.subr.bf16.mxu0 0
        %1217 = vmatpush1.bf16.msra.mxu0 0
        %1218 = vmatprep.subr.bf16.mxu0 0
        %1219 = vmatpush1.bf16.msra.mxu0 0
        %1220 = vmatprep.subr.bf16.mxu0 0
        %1221 = vmatpush1.bf16.msra.mxu0 0
        %1222 = vmatprep.subr.bf16.mxu0 0
        %1223 = vmatpush1.bf16.msra.mxu0 0
        %1224 = vmatprep.subr.bf16.mxu0 0
        %1225 = vmatpush1.bf16.msra.mxu0 0
        %1226 = vmatprep.subr.bf16.mxu0 0
        %1227 = vmatpush1.bf16.msra.mxu0 0
        %1228 = vmatprep.subr.bf16.mxu0 0
        %1229 = vmatpush1.bf16.msra.mxu0 0
        %1230 = vmatprep.mubr.bf16.mxu0 0
        %1231 = vmatmul.mubr.bf16.gmra.mrb[0].mxu0 %v1193
        %v1232 = vpop.f32.mrb[0].mxu0
        %v1233 = vadd.f32 %v1178, %v1232
        %v1234 = vpop.f32.mrb[0].mxu0
        %v1235 = vpop.f32.mrb[0].mxu0
        %v1236 = vadd.f32 %v1178, %v1235
        %v1237 = vpop.f32.mrb[0].mxu0
        %1238 = vmatprep.mubr.bf16.mxu0 0
        %1239 = vmatmul.mubr.bf16.gmra.mrb[0].mxu0 %v1196
        %v1240 = vpop.f32.mrb[0].mxu0
        %v1241 = vadd.f32 %v1178, %v1240
        %v1242 = vpop.f32.mrb[0].mxu0
        %v1243 = vpop.f32.mrb[0].mxu0
        %v1244 = vpop.f32.mrb[0].mxu0
        %1245 = vdwg.mxu0
        %v1249 = vcombine.high %v1233, %v1233
        %v1251 = vunpack.c.l.s4 1983009808
        %v1252 = vunpack.c.0.s8 %v1251
        %v1253 = vlaneseq
        %v1254 = vshrl.u32 %v1253, 7
        %v1255 = vsub.s32 %v1252, %v1254
        %v1256 = vrot.slane %v1233, %v1255
        %v1258 = vunpack.c.l.s4 1983009808
        %v1259 = vunpack.c.0.s8 %v1258
        %v1260 = vlaneseq
        %v1261 = vshrl.u32 %v1260, 7
        %v1262 = vsub.s32 %v1259, %v1261
        %v1263 = vrot.slane %v1249, %v1262
        %v1264 = vcombine.high %v1256, %v1256
        %v1265 = vcombine.high %v1263, %v1263
        %v1266 = vcombine.high %v1236, %v1236
        %v1268 = vunpack.c.l.s4 1983009808
        %v1269 = vunpack.c.0.s8 %v1268
        %v1270 = vlaneseq
        %v1271 = vshrl.u32 %v1270, 7
        %v1272 = vsub.s32 %v1269, %v1271
        %v1273 = vrot.slane %v1236, %v1272
        %v1275 = vunpack.c.l.s4 1983009808
        %v1276 = vunpack.c.0.s8 %v1275
        %v1277 = vlaneseq
        %v1278 = vshrl.u32 %v1277, 7
        %v1279 = vsub.s32 %v1276, %v1278
        %v1280 = vrot.slane %v1266, %v1279
        %v1281 = vcombine.high %v1273, %v1273
        %v1282 = vcombine.high %v1280, %v1280
        %v1284 = vunpack.c.l.s4 1983009808
        %v1285 = vunpack.c.0.s8 %v1284
        %v1286 = vlaneseq
        %v1287 = vshrl.u32 %v1286, 7
        %v1288 = vsub.s32 %v1285, %v1287
        %v1289 = vrot.slane %v1241, %v1288
        %v1299 = vmul.f32 %v1256, 0.25
        %v1300 = vmul.f32 %v1264, 0.25
        %v1301 = vmul.f32 %v1263, 0.25
        %v1302 = vmul.f32 %v1265, 0.25
        %v1303 = vmul.f32 %v1273, 0.25
        %v1304 = vmul.f32 %v1281, 0.25
        %v1305 = vmul.f32 %v1280, 0.25
        %v1306 = vmul.f32 %v1282, 0.25
        %v1307 = vmul.f32 %v1289, 0.25
        %v1308 = vpack.c.bf16 %v1299, %v1299
        %v1309 = vpack.c.bf16 %v1300, %v1300
        %v1310 = vpack.c.bf16 %v1301, %v1301
        %v1311 = vpack.c.bf16 %v1302, %v1302
        %v1312 = vpack.c.bf16 %v1303, %v1303
        %v1313 = vpack.c.bf16 %v1304, %v1304
        %v1314 = vpack.c.bf16 %v1305, %v1305
        %v1315 = vpack.c.bf16 %v1306, %v1306
        %v1316 = vpack.c.bf16 %v1307, %v1307
        %v1317 = vpack.c.bf16 %v1256, %v1256
        %v1318 = vpack.c.bf16 %v1264, %v1264
        %v1319 = vpack.c.bf16 %v1263, %v1263
        %v1320 = vpack.c.bf16 %v1265, %v1265
        %v1321 = vpack.c.bf16 %v1273, %v1273
        %v1322 = vpack.c.bf16 %v1281, %v1281
        %v1323 = vpack.c.bf16 %v1280, %v1280
        %v1324 = vpack.c.bf16 %v1282, %v1282
        %v1325 = vpack.c.bf16 %v1289, %v1289
        %v1335 = vunpack.c.l.b16 %v1308
        %v1336 = vunpack.c.l.b16 %v1309
        %v1337 = vunpack.c.l.b16 %v1310
        %v1338 = vunpack.c.l.b16 %v1311
        %v1339 = vunpack.c.l.b16 %v1312
        %v1340 = vunpack.c.l.b16 %v1313
        %v1341 = vunpack.c.l.b16 %v1314
        %v1342 = vunpack.c.l.b16 %v1315
        %v1343 = vunpack.c.l.b16 %v1316
        %v1344 = vrot.slane %v1336, 7
        %vm1345 = vcmask 1041409
        %v1346 = vsel %vm1345, %v1344, %v1335
        %v1347 = vrot.slane %v1337, 6
        %vm1348 = vcmask 1042434
        %v1349 = vsel %vm1348, %v1347, %v1346
        %v1350 = vrot.slane %v1338, 5
        %vm1351 = vcmask 1043459
        %v1352 = vsel %vm1351, %v1350, %v1349
        %v1353 = vrot.slane %v1339, 4
        %vm1354 = vcmask 1044484
        %v1355 = vsel %vm1354, %v1353, %v1352
        %v1356 = vrot.slane %v1340, 3
        %vm1357 = vcmask 1045509
        %v1358 = vsel %vm1357, %v1356, %v1355
        %v1359 = vrot.slane %v1341, 2
        %vm1360 = vcmask 1046534
        %v1361 = vsel %vm1360, %v1359, %v1358
        %v1362 = vrot.slane %v1342, 1
        %vm1363 = vcmask 1047559
        %v1364 = vsel %vm1363, %v1362, %v1361
        %v1365 = vpack.c.b16 %v1343, %v1364
        %v1375 = vunpack.c.l.b16 %v1317
        %v1376 = vunpack.c.l.b16 %v1318
        %v1377 = vunpack.c.l.b16 %v1319
        %v1378 = vunpack.c.l.b16 %v1320
        %v1379 = vunpack.c.l.b16 %v1321
        %v1380 = vunpack.c.l.b16 %v1322
        %v1381 = vunpack.c.l.b16 %v1323
        %v1382 = vunpack.c.l.b16 %v1324
        %v1383 = vunpack.c.l.b16 %v1325
        %v1384 = vrot.slane %v1376, 7
        %v1385 = vsel %vm1345, %v1384, %v1375
        %v1386 = vrot.slane %v1377, 6
        %v1387 = vsel %vm1348, %v1386, %v1385
        %v1388 = vrot.slane %v1378, 5
        %v1389 = vsel %vm1351, %v1388, %v1387
        %v1390 = vrot.slane %v1379, 4
        %v1391 = vsel %vm1354, %v1390, %v1389
        %v1392 = vrot.slane %v1380, 3
        %v1393 = vsel %vm1357, %v1392, %v1391
        %v1394 = vrot.slane %v1381, 2
        %v1395 = vsel %vm1360, %v1394, %v1393
        %v1396 = vrot.slane %v1382, 1
        %v1397 = vsel %vm1363, %v1396, %v1395
        %v1398 = vpack.c.b16 %v1383, %v1397
        %1399 = vrot.lane.b32.xlu0 %v1398, 96
        %v1400 = vpop.permute.xlu0 %1399
        %vm1401 = vcmask 130048
        %v1403 = vsel %vm1401, %v1365, 0
        %v1406 = vsel %vm1401, %v1400, 0
        %1408 = vmatprep.subr.bf16.mxu0 0
        %1409 = vmatpush1.bf16.xpose.msra.mxu0 %v1406
        %1410 = vmatprep.subr.bf16.mxu0 0
        %1411 = vmatpush1.bf16.xpose.msra.mxu0 0
        %1412 = vmatprep.subr.bf16.mxu0 0
        %1413 = vmatpush1.bf16.xpose.msra.mxu0 0
        %1414 = vmatprep.subr.bf16.mxu0 0
        %1415 = vmatpush1.bf16.xpose.msra.mxu0 0
        %1416 = vmatprep.subr.bf16.mxu0 0
        %1417 = vmatpush1.bf16.xpose.msra.mxu0 0
        %1418 = vmatprep.subr.bf16.mxu0 0
        %1419 = vmatpush1.bf16.xpose.msra.mxu0 0
        %1420 = vmatprep.subr.bf16.mxu0 0
        %1421 = vmatpush1.bf16.xpose.msra.mxu0 0
        %1422 = vmatprep.subr.bf16.mxu0 0
        %1423 = vmatpush1.bf16.xpose.msra.mxu0 0
        %1424 = vmatprep.subr.bf16.mxu0 0
        %1425 = vmatpush1.bf16.xpose.msra.mxu0 0
        %1426 = vmatprep.subr.bf16.mxu0 0
        %1427 = vmatpush1.bf16.xpose.msra.mxu0 0
        %1428 = vmatprep.subr.bf16.mxu0 0
        %1429 = vmatpush1.bf16.xpose.msra.mxu0 0
        %1430 = vmatprep.subr.bf16.mxu0 0
        %1431 = vmatpush1.bf16.xpose.msra.mxu0 0
        %1432 = vmatprep.subr.bf16.mxu0 0
        %1433 = vmatpush1.bf16.xpose.msra.mxu0 0
        %1434 = vmatprep.subr.bf16.mxu0 0
        %1435 = vmatpush1.bf16.xpose.msra.mxu0 0
        %1436 = vmatprep.subr.bf16.mxu0 0
        %1437 = vmatpush1.bf16.xpose.msra.mxu0 0
        %1438 = vmatprep.subr.bf16.mxu0 0
        %1439 = vmatpush1.bf16.xpose.msra.mxu0 0
        %1440 = vmatprep.mubr.bf16.mxu0 0
        %1441 = vmatmul.mubr.bf16.gmra.mrb[0].mxu0 %v1403
        %v1442 = vpop.f32.mrb[0].mxu0
        %v1443 = vadd.f32 0.0, %v1442
        %v1444 = vpop.f32.mrb[0].mxu0
        %v1445 = vpop.f32.mrb[0].mxu0
        %v1446 = vadd.f32 0.0, %v1445
        %v1447 = vpop.f32.mrb[0].mxu0
        %1448 = vdwg.mxu0
        %vm1449 = vcmask 72704
        %v1450 = vsel %vm1449, %v1443, -inf
        %1451 = vmax.xlane.f32.xlu0 %v1450
        %v1452 = vpop.xlane.xlu0 %1451
        %vm1453 = vcmask 65536
        %v1454 = vsel %vm1453, %v1446, -inf
        %1455 = vmax.xlane.f32.xlu0 %v1454
        %v1456 = vpop.xlane.xlu0 %1455
        %v1457 = vsub.f32 %v1443, %v1452
        %v1458 = vsub.f32 %v1446, %v1456
        %v1459 = vmul.f32 %v1457, 1.442695
        %v1460 = vpow.pop %v1459
        %v1461 = vmul.f32 %v1458, 1.442695
        %v1462 = vpow.pop %v1461
        %v1463 = vsel %vm1449, %v1460, 0.0
        %1464 = vadd.xlane.f32.xlu0 %v1463
        %v1465 = vpop.xlane.xlu0 %1464
        %v1466 = vsel %vm1453, %v1462, 0.0
        %1467 = vadd.xlane.f32.xlu0 %v1466
        %v1468 = vpop.xlane.xlu0 %1467
        %v1469 = vrcp.pop %v1465
        %v1470 = vrcp.pop %v1468
        %v1471 = vmul.f32 %v1460, %v1469
        %v1472 = vmul.f32 %v1462, %v1470
        %v1473 = vpack.c.bf16 %v1472, %v1471
        %1474 = vrot.lane.b32.xlu0 %v1398, 64
        %v1475 = vpop.permute.xlu0 %1474
        %v1477 = vsel %vm1449, %v1473, 0
        %vm1479 = vcmask 1043456
        %vm1480 = vcmask 1044480
        %v1481 = vsel %vm1479, 4294967295, 65535
        %v1482 = vsel %vm1480, %v1481, 0
        %v1484 = vand.u32 %v1475, %v1482
        %1486 = vmatprep.subr.bf16.mxu0 0
        %1487 = vmatpush1.bf16.msra.mxu0 %v1484
        %1488 = vmatprep.subr.bf16.mxu0 0
        %1489 = vmatpush1.bf16.msra.mxu0 0
        %1490 = vmatprep.subr.bf16.mxu0 0
        %1491 = vmatpush1.bf16.msra.mxu0 0
        %1492 = vmatprep.subr.bf16.mxu0 0
        %1493 = vmatpush1.bf16.msra.mxu0 0
        %1494 = vmatprep.subr.bf16.mxu0 0
        %1495 = vmatpush1.bf16.msra.mxu0 0
        %1496 = vmatprep.subr.bf16.mxu0 0
        %1497 = vmatpush1.bf16.msra.mxu0 0
        %1498 = vmatprep.subr.bf16.mxu0 0
        %1499 = vmatpush1.bf16.msra.mxu0 0
        %1500 = vmatprep.subr.bf16.mxu0 0
        %1501 = vmatpush1.bf16.msra.mxu0 0
        %1502 = vmatprep.subr.bf16.mxu0 0
        %1503 = vmatpush1.bf16.msra.mxu0 0
        %1504 = vmatprep.subr.bf16.mxu0 0
        %1505 = vmatpush1.bf16.msra.mxu0 0
        %1506 = vmatprep.subr.bf16.mxu0 0
        %1507 = vmatpush1.bf16.msra.mxu0 0
        %1508 = vmatprep.subr.bf16.mxu0 0
        %1509 = vmatpush1.bf16.msra.mxu0 0
        %1510 = vmatprep.subr.bf16.mxu0 0
        %1511 = vmatpush1.bf16.msra.mxu0 0
        %1512 = vmatprep.subr.bf16.mxu0 0
        %1513 = vmatpush1.bf16.msra.mxu0 0
        %1514 = vmatprep.subr.bf16.mxu0 0
        %1515 = vmatpush1.bf16.msra.mxu0 0
        %1516 = vmatprep.subr.bf16.mxu0 0
        %1517 = vmatpush1.bf16.msra.mxu0 0
        %1518 = vmatprep.mubr.bf16.mxu0 0
        %1519 = vmatmul.mubr.bf16.gmra.mrb[0].mxu0 %v1477
        %v1520 = vpop.f32.mrb[0].mxu0
        %v1521 = vadd.f32 0.0, %v1520
        %v1522 = vpop.f32.mrb[0].mxu0
        %v1523 = vpop.f32.mrb[0].mxu0
        %v1524 = vadd.f32 0.0, %v1523
        %v1525 = vpop.f32.mrb[0].mxu0
        %1526 = vdwg.mxu0
        %1527 = vrot.lane.b32.xlu0 %v1365, 112
        %v1528 = vpop.permute.xlu0 %1527
        %1529 = vrot.lane.b32.xlu0 %v1398, 80
        %v1530 = vpop.permute.xlu0 %1529
        %v1532 = vsel %vm1401, %v1528, 0
        %v1535 = vsel %vm1401, %v1530, 0
        %1537 = vmatprep.subr.bf16.mxu0 0
        %1538 = vmatpush1.bf16.xpose.msra.mxu0 %v1535
        %1539 = vmatprep.subr.bf16.mxu0 0
        %1540 = vmatpush1.bf16.xpose.msra.mxu0 0
        %1541 = vmatprep.subr.bf16.mxu0 0
        %1542 = vmatpush1.bf16.xpose.msra.mxu0 0
        %1543 = vmatprep.subr.bf16.mxu0 0
        %1544 = vmatpush1.bf16.xpose.msra.mxu0 0
        %1545 = vmatprep.subr.bf16.mxu0 0
        %1546 = vmatpush1.bf16.xpose.msra.mxu0 0
        %1547 = vmatprep.subr.bf16.mxu0 0
        %1548 = vmatpush1.bf16.xpose.msra.mxu0 0
        %1549 = vmatprep.subr.bf16.mxu0 0
        %1550 = vmatpush1.bf16.xpose.msra.mxu0 0
        %1551 = vmatprep.subr.bf16.mxu0 0
        %1552 = vmatpush1.bf16.xpose.msra.mxu0 0
        %1553 = vmatprep.subr.bf16.mxu0 0
        %1554 = vmatpush1.bf16.xpose.msra.mxu0 0
        %1555 = vmatprep.subr.bf16.mxu0 0
        %1556 = vmatpush1.bf16.xpose.msra.mxu0 0
        %1557 = vmatprep.subr.bf16.mxu0 0
        %1558 = vmatpush1.bf16.xpose.msra.mxu0 0
        %1559 = vmatprep.subr.bf16.mxu0 0
        %1560 = vmatpush1.bf16.xpose.msra.mxu0 0
        %1561 = vmatprep.subr.bf16.mxu0 0
        %1562 = vmatpush1.bf16.xpose.msra.mxu0 0
        %1563 = vmatprep.subr.bf16.mxu0 0
        %1564 = vmatpush1.bf16.xpose.msra.mxu0 0
        %1565 = vmatprep.subr.bf16.mxu0 0
        %1566 = vmatpush1.bf16.xpose.msra.mxu0 0
        %1567 = vmatprep.subr.bf16.mxu0 0
        %1568 = vmatpush1.bf16.xpose.msra.mxu0 0
        %1569 = vmatprep.mubr.bf16.mxu0 0
        %1570 = vmatmul.mubr.bf16.gmra.mrb[0].mxu0 %v1532
        %v1571 = vpop.f32.mrb[0].mxu0
        %v1572 = vadd.f32 0.0, %v1571
        %v1573 = vpop.f32.mrb[0].mxu0
        %v1574 = vpop.f32.mrb[0].mxu0
        %v1575 = vadd.f32 0.0, %v1574
        %v1576 = vpop.f32.mrb[0].mxu0
        %1577 = vdwg.mxu0
        %v1578 = vsel %vm1449, %v1572, -inf
        %1579 = vmax.xlane.f32.xlu0 %v1578
        %v1580 = vpop.xlane.xlu0 %1579
        %v1581 = vsel %vm1453, %v1575, -inf
        %1582 = vmax.xlane.f32.xlu0 %v1581
        %v1583 = vpop.xlane.xlu0 %1582
        %v1584 = vsub.f32 %v1572, %v1580
        %v1585 = vsub.f32 %v1575, %v1583
        %v1586 = vmul.f32 %v1584, 1.442695
        %v1587 = vpow.pop %v1586
        %v1588 = vmul.f32 %v1585, 1.442695
        %v1589 = vpow.pop %v1588
        %v1590 = vsel %vm1449, %v1587, 0.0
        %1591 = vadd.xlane.f32.xlu0 %v1590
        %v1592 = vpop.xlane.xlu0 %1591
        %v1593 = vsel %vm1453, %v1589, 0.0
        %1594 = vadd.xlane.f32.xlu0 %v1593
        %v1595 = vpop.xlane.xlu0 %1594
        %v1596 = vrcp.pop %v1592
        %v1597 = vrcp.pop %v1595
        %v1598 = vmul.f32 %v1587, %v1596
        %v1599 = vmul.f32 %v1589, %v1597
        %v1600 = vpack.c.bf16 %v1599, %v1598
        %1601 = vrot.lane.b32.xlu0 %v1398, 48
        %v1602 = vpop.permute.xlu0 %1601
        %v1604 = vsel %vm1449, %v1600, 0
        %v1607 = vand.u32 %v1602, %v1482
        %1609 = vmatprep.subr.bf16.mxu0 0
        %1610 = vmatpush1.bf16.msra.mxu0 %v1607
        %1611 = vmatprep.subr.bf16.mxu0 0
        %1612 = vmatpush1.bf16.msra.mxu0 0
        %1613 = vmatprep.subr.bf16.mxu0 0
        %1614 = vmatpush1.bf16.msra.mxu0 0
        %1615 = vmatprep.subr.bf16.mxu0 0
        %1616 = vmatpush1.bf16.msra.mxu0 0
        %1617 = vmatprep.subr.bf16.mxu0 0
        %1618 = vmatpush1.bf16.msra.mxu0 0
        %1619 = vmatprep.subr.bf16.mxu0 0
        %1620 = vmatpush1.bf16.msra.mxu0 0
        %1621 = vmatprep.subr.bf16.mxu0 0
        %1622 = vmatpush1.bf16.msra.mxu0 0
        %1623 = vmatprep.subr.bf16.mxu0 0
        %1624 = vmatpush1.bf16.msra.mxu0 0
        %1625 = vmatprep.subr.bf16.mxu0 0
        %1626 = vmatpush1.bf16.msra.mxu0 0
        %1627 = vmatprep.subr.bf16.mxu0 0
        %1628 = vmatpush1.bf16.msra.mxu0 0
        %1629 = vmatprep.subr.bf16.mxu0 0
        %1630 = vmatpush1.bf16.msra.mxu0 0
        %1631 = vmatprep.subr.bf16.mxu0 0
        %1632 = vmatpush1.bf16.msra.mxu0 0
        %1633 = vmatprep.subr.bf16.mxu0 0
        %1634 = vmatpush1.bf16.msra.mxu0 0
        %1635 = vmatprep.subr.bf16.mxu0 0
        %1636 = vmatpush1.bf16.msra.mxu0 0
        %1637 = vmatprep.subr.bf16.mxu0 0
        %1638 = vmatpush1.bf16.msra.mxu0 0
        %1639 = vmatprep.subr.bf16.mxu0 0
        %1640 = vmatpush1.bf16.msra.mxu0 0
        %1641 = vmatprep.mubr.bf16.mxu0 0
        %1642 = vmatmul.mubr.bf16.gmra.mrb[0].mxu0 %v1604
        %v1643 = vpop.f32.mrb[0].mxu0
        %v1644 = vadd.f32 0.0, %v1643
        %v1645 = vpop.f32.mrb[0].mxu0
        %v1646 = vpop.f32.mrb[0].mxu0
        %v1647 = vadd.f32 0.0, %v1646
        %v1648 = vpop.f32.mrb[0].mxu0
        %1649 = vdwg.mxu0
        %1652 = vrot.lane.b32.xlu0 %v1644, 16
        %v1653 = vpop.permute.xlu0 %1652
        %1654 = vrot.lane.b32.xlu0 %v1647, 16
        %v1655 = vpop.permute.xlu0 %1654
        %v1658 = vsel %vm1401, %v1521, %v1653
        %v1659 = vsel %vm1401, %v1524, %v1655
        %v1660 = vrot.slane %v1335, 1
        %v1661 = vsel %vm1345, %v1336, %v1660
        %v1662 = vrot.slane %v1337, 7
        %v1663 = vsel %vm1348, %v1662, %v1661
        %v1664 = vrot.slane %v1338, 6
        %v1665 = vsel %vm1351, %v1664, %v1663
        %v1666 = vrot.slane %v1339, 5
        %v1667 = vsel %vm1354, %v1666, %v1665
        %v1668 = vrot.slane %v1340, 4
        %v1669 = vsel %vm1357, %v1668, %v1667
        %v1670 = vrot.slane %v1341, 3
        %v1671 = vsel %vm1360, %v1670, %v1669
        %v1672 = vrot.slane %v1342, 2
        %v1673 = vsel %vm1363, %v1672, %v1671
        %v1674 = vrot.slane %v1343, 1
        %v1675 = vpack.c.b16 %v1674, %v1673
        %v1676 = vrot.slane %v1375, 1
        %v1677 = vsel %vm1345, %v1376, %v1676
        %v1678 = vrot.slane %v1377, 7
        %v1679 = vsel %vm1348, %v1678, %v1677
        %v1680 = vrot.slane %v1378, 6
        %v1681 = vsel %vm1351, %v1680, %v1679
        %v1682 = vrot.slane %v1379, 5
        %v1683 = vsel %vm1354, %v1682, %v1681
        %v1684 = vrot.slane %v1380, 4
        %v1685 = vsel %vm1357, %v1684, %v1683
        %v1686 = vrot.slane %v1381, 3
        %v1687 = vsel %vm1360, %v1686, %v1685
        %v1688 = vrot.slane %v1382, 2
        %v1689 = vsel %vm1363, %v1688, %v1687
        %v1690 = vrot.slane %v1383, 1
        %v1691 = vpack.c.b16 %v1690, %v1689
        %1692 = vrot.lane.b32.xlu0 %v1691, 96
        %v1693 = vpop.permute.xlu0 %1692
        %v1695 = vsel %vm1401, %v1675, 0
        %v1698 = vsel %vm1401, %v1693, 0
        %1700 = vmatprep.subr.bf16.mxu0 0
        %1701 = vmatpush1.bf16.xpose.msra.mxu0 %v1698
        %1702 = vmatprep.subr.bf16.mxu0 0
        %1703 = vmatpush1.bf16.xpose.msra.mxu0 0
        %1704 = vmatprep.subr.bf16.mxu0 0
        %1705 = vmatpush1.bf16.xpose.msra.mxu0 0
        %1706 = vmatprep.subr.bf16.mxu0 0
        %1707 = vmatpush1.bf16.xpose.msra.mxu0 0
        %1708 = vmatprep.subr.bf16.mxu0 0
        %1709 = vmatpush1.bf16.xpose.msra.mxu0 0
        %1710 = vmatprep.subr.bf16.mxu0 0
        %1711 = vmatpush1.bf16.xpose.msra.mxu0 0
        %1712 = vmatprep.subr.bf16.mxu0 0
        %1713 = vmatpush1.bf16.xpose.msra.mxu0 0
        %1714 = vmatprep.subr.bf16.mxu0 0
        %1715 = vmatpush1.bf16.xpose.msra.mxu0 0
        %1716 = vmatprep.subr.bf16.mxu0 0
        %1717 = vmatpush1.bf16.xpose.msra.mxu0 0
        %1718 = vmatprep.subr.bf16.mxu0 0
        %1719 = vmatpush1.bf16.xpose.msra.mxu0 0
        %1720 = vmatprep.subr.bf16.mxu0 0
        %1721 = vmatpush1.bf16.xpose.msra.mxu0 0
        %1722 = vmatprep.subr.bf16.mxu0 0
        %1723 = vmatpush1.bf16.xpose.msra.mxu0 0
        %1724 = vmatprep.subr.bf16.mxu0 0
        %1725 = vmatpush1.bf16.xpose.msra.mxu0 0
        %1726 = vmatprep.subr.bf16.mxu0 0
        %1727 = vmatpush1.bf16.xpose.msra.mxu0 0
        %1728 = vmatprep.subr.bf16.mxu0 0
        %1729 = vmatpush1.bf16.xpose.msra.mxu0 0
        %1730 = vmatprep.subr.bf16.mxu0 0
        %1731 = vmatpush1.bf16.xpose.msra.mxu0 0
        %1732 = vmatprep.mubr.bf16.mxu0 0
        %1733 = vmatmul.mubr.bf16.gmra.mrb[0].mxu0 %v1695
        %v1734 = vpop.f32.mrb[0].mxu0
        %v1735 = vadd.f32 0.0, %v1734
        %v1736 = vpop.f32.mrb[0].mxu0
        %v1737 = vpop.f32.mrb[0].mxu0
        %v1738 = vadd.f32 0.0, %v1737
        %v1739 = vpop.f32.mrb[0].mxu0
        %1740 = vdwg.mxu0
        %v1741 = vsel %vm1449, %v1735, -inf
        %1742 = vmax.xlane.f32.xlu0 %v1741
        %v1743 = vpop.xlane.xlu0 %1742
        %v1744 = vsel %vm1453, %v1738, -inf
        %1745 = vmax.xlane.f32.xlu0 %v1744
        %v1746 = vpop.xlane.xlu0 %1745
        %v1747 = vsub.f32 %v1735, %v1743
        %v1748 = vsub.f32 %v1738, %v1746
        %v1749 = vmul.f32 %v1747, 1.442695
        %v1750 = vpow.pop %v1749
        %v1751 = vmul.f32 %v1748, 1.442695
        %v1752 = vpow.pop %v1751
        %v1753 = vsel %vm1449, %v1750, 0.0
        %1754 = vadd.xlane.f32.xlu0 %v1753
        %v1755 = vpop.xlane.xlu0 %1754
        %v1756 = vsel %vm1453, %v1752, 0.0
        %1757 = vadd.xlane.f32.xlu0 %v1756
        %v1758 = vpop.xlane.xlu0 %1757
        %v1759 = vrcp.pop %v1755
        %v1760 = vrcp.pop %v1758
        %v1761 = vmul.f32 %v1750, %v1759
        %v1762 = vmul.f32 %v1752, %v1760
        %v1763 = vpack.c.bf16 %v1762, %v1761
        %1764 = vrot.lane.b32.xlu0 %v1691, 64
        %v1765 = vpop.permute.xlu0 %1764
        %v1767 = vsel %vm1449, %v1763, 0
        %v1770 = vand.u32 %v1765, %v1482
        %1772 = vmatprep.subr.bf16.mxu0 0
        %1773 = vmatpush1.bf16.msra.mxu0 %v1770
        %1774 = vmatprep.subr.bf16.mxu0 0
        %1775 = vmatpush1.bf16.msra.mxu0 0
        %1776 = vmatprep.subr.bf16.mxu0 0
        %1777 = vmatpush1.bf16.msra.mxu0 0
        %1778 = vmatprep.subr.bf16.mxu0 0
        %1779 = vmatpush1.bf16.msra.mxu0 0
        %1780 = vmatprep.subr.bf16.mxu0 0
        %1781 = vmatpush1.bf16.msra.mxu0 0
        %1782 = vmatprep.subr.bf16.mxu0 0
        %1783 = vmatpush1.bf16.msra.mxu0 0
        %1784 = vmatprep.subr.bf16.mxu0 0
        %1785 = vmatpush1.bf16.msra.mxu0 0
        %1786 = vmatprep.subr.bf16.mxu0 0
        %1787 = vmatpush1.bf16.msra.mxu0 0
        %1788 = vmatprep.subr.bf16.mxu0 0
        %1789 = vmatpush1.bf16.msra.mxu0 0
        %1790 = vmatprep.subr.bf16.mxu0 0
        %1791 = vmatpush1.bf16.msra.mxu0 0
        %1792 = vmatprep.subr.bf16.mxu0 0
        %1793 = vmatpush1.bf16.msra.mxu0 0
        %1794 = vmatprep.subr.bf16.mxu0 0
        %1795 = vmatpush1.bf16.msra.mxu0 0
        %1796 = vmatprep.subr.bf16.mxu0 0
        %1797 = vmatpush1.bf16.msra.mxu0 0
        %1798 = vmatprep.subr.bf16.mxu0 0
        %1799 = vmatpush1.bf16.msra.mxu0 0
        %1800 = vmatprep.subr.bf16.mxu0 0
        %1801 = vmatpush1.bf16.msra.mxu0 0
        %1802 = vmatprep.subr.bf16.mxu0 0
        %1803 = vmatpush1.bf16.msra.mxu0 0
        %1804 = vmatprep.mubr.bf16.mxu0 0
        %1805 = vmatmul.mubr.bf16.gmra.mrb[0].mxu0 %v1767
        %v1806 = vpop.f32.mrb[0].mxu0
        %v1807 = vadd.f32 0.0, %v1806
        %v1808 = vpop.f32.mrb[0].mxu0
        %v1809 = vpop.f32.mrb[0].mxu0
        %v1810 = vadd.f32 0.0, %v1809
        %v1811 = vpop.f32.mrb[0].mxu0
        %1812 = vdwg.mxu0
        %1813 = vrot.lane.b32.xlu0 %v1675, 112
        %v1814 = vpop.permute.xlu0 %1813
        %1815 = vrot.lane.b32.xlu0 %v1691, 80
        %v1816 = vpop.permute.xlu0 %1815
        %v1818 = vsel %vm1401, %v1814, 0
        %v1821 = vsel %vm1401, %v1816, 0
        %1823 = vmatprep.subr.bf16.mxu0 0
        %1824 = vmatpush1.bf16.xpose.msra.mxu0 %v1821
        %1825 = vmatprep.subr.bf16.mxu0 0
        %1826 = vmatpush1.bf16.xpose.msra.mxu0 0
        %1827 = vmatprep.subr.bf16.mxu0 0
        %1828 = vmatpush1.bf16.xpose.msra.mxu0 0
        %1829 = vmatprep.subr.bf16.mxu0 0
        %1830 = vmatpush1.bf16.xpose.msra.mxu0 0
        %1831 = vmatprep.subr.bf16.mxu0 0
        %1832 = vmatpush1.bf16.xpose.msra.mxu0 0
        %1833 = vmatprep.subr.bf16.mxu0 0
        %1834 = vmatpush1.bf16.xpose.msra.mxu0 0
        %1835 = vmatprep.subr.bf16.mxu0 0
        %1836 = vmatpush1.bf16.xpose.msra.mxu0 0
        %1837 = vmatprep.subr.bf16.mxu0 0
        %1838 = vmatpush1.bf16.xpose.msra.mxu0 0
        %1839 = vmatprep.subr.bf16.mxu0 0
        %1840 = vmatpush1.bf16.xpose.msra.mxu0 0
        %1841 = vmatprep.subr.bf16.mxu0 0
        %1842 = vmatpush1.bf16.xpose.msra.mxu0 0
        %1843 = vmatprep.subr.bf16.mxu0 0
        %1844 = vmatpush1.bf16.xpose.msra.mxu0 0
        %1845 = vmatprep.subr.bf16.mxu0 0
        %1846 = vmatpush1.bf16.xpose.msra.mxu0 0
        %1847 = vmatprep.subr.bf16.mxu0 0
        %1848 = vmatpush1.bf16.xpose.msra.mxu0 0
        %1849 = vmatprep.subr.bf16.mxu0 0
        %1850 = vmatpush1.bf16.xpose.msra.mxu0 0
        %1851 = vmatprep.subr.bf16.mxu0 0
        %1852 = vmatpush1.bf16.xpose.msra.mxu0 0
        %1853 = vmatprep.subr.bf16.mxu0 0
        %1854 = vmatpush1.bf16.xpose.msra.mxu0 0
        %1855 = vmatprep.mubr.bf16.mxu0 0
        %1856 = vmatmul.mubr.bf16.gmra.mrb[0].mxu0 %v1818
        %v1857 = vpop.f32.mrb[0].mxu0
        %v1858 = vadd.f32 0.0, %v1857
        %v1859 = vpop.f32.mrb[0].mxu0
        %v1860 = vpop.f32.mrb[0].mxu0
        %v1861 = vadd.f32 0.0, %v1860
        %v1862 = vpop.f32.mrb[0].mxu0
        %1863 = vdwg.mxu0
        %v1864 = vsel %vm1449, %v1858, -inf
        %1865 = vmax.xlane.f32.xlu0 %v1864
        %v1866 = vpop.xlane.xlu0 %1865
        %v1867 = vsel %vm1453, %v1861, -inf
        %1868 = vmax.xlane.f32.xlu0 %v1867
        %v1869 = vpop.xlane.xlu0 %1868
        %v1870 = vsub.f32 %v1858, %v1866
        %v1871 = vsub.f32 %v1861, %v1869
        %v1872 = vmul.f32 %v1870, 1.442695
        %v1873 = vpow.pop %v1872
        %v1874 = vmul.f32 %v1871, 1.442695
        %v1875 = vpow.pop %v1874
        %v1876 = vsel %vm1449, %v1873, 0.0
        %1877 = vadd.xlane.f32.xlu0 %v1876
        %v1878 = vpop.xlane.xlu0 %1877
        %v1879 = vsel %vm1453, %v1875, 0.0
        %1880 = vadd.xlane.f32.xlu0 %v1879
        %v1881 = vpop.xlane.xlu0 %1880
        %v1882 = vrcp.pop %v1878
        %v1883 = vrcp.pop %v1881
        %v1884 = vmul.f32 %v1873, %v1882
        %v1885 = vmul.f32 %v1875, %v1883
        %v1886 = vpack.c.bf16 %v1885, %v1884
        %1887 = vrot.lane.b32.xlu0 %v1691, 48
        %v1888 = vpop.permute.xlu0 %1887
        %v1890 = vsel %vm1449, %v1886, 0
        %v1893 = vand.u32 %v1888, %v1482
        %1895 = vmatprep.subr.bf16.mxu0 0
        %1896 = vmatpush1.bf16.msra.mxu0 %v1893
        %1897 = vmatprep.subr.bf16.mxu0 0
        %1898 = vmatpush1.bf16.msra.mxu0 0
        %1899 = vmatprep.subr.bf16.mxu0 0
        %1900 = vmatpush1.bf16.msra.mxu0 0
        %1901 = vmatprep.subr.bf16.mxu0 0
        %1902 = vmatpush1.bf16.msra.mxu0 0
        %1903 = vmatprep.subr.bf16.mxu0 0
        %1904 = vmatpush1.bf16.msra.mxu0 0
        %1905 = vmatprep.subr.bf16.mxu0 0
        %1906 = vmatpush1.bf16.msra.mxu0 0
        %1907 = vmatprep.subr.bf16.mxu0 0
        %1908 = vmatpush1.bf16.msra.mxu0 0
        %1909 = vmatprep.subr.bf16.mxu0 0
        %1910 = vmatpush1.bf16.msra.mxu0 0
        %1911 = vmatprep.subr.bf16.mxu0 0
        %1912 = vmatpush1.bf16.msra.mxu0 0
        %1913 = vmatprep.subr.bf16.mxu0 0
        %1914 = vmatpush1.bf16.msra.mxu0 0
        %1915 = vmatprep.subr.bf16.mxu0 0
        %1916 = vmatpush1.bf16.msra.mxu0 0
        %1917 = vmatprep.subr.bf16.mxu0 0
        %1918 = vmatpush1.bf16.msra.mxu0 0
        %1919 = vmatprep.subr.bf16.mxu0 0
        %1920 = vmatpush1.bf16.msra.mxu0 0
        %1921 = vmatprep.subr.bf16.mxu0 0
        %1922 = vmatpush1.bf16.msra.mxu0 0
        %1923 = vmatprep.subr.bf16.mxu0 0
        %1924 = vmatpush1.bf16.msra.mxu0 0
        %1925 = vmatprep.subr.bf16.mxu0 0
        %1926 = vmatpush1.bf16.msra.mxu0 0
        %1927 = vmatprep.mubr.bf16.mxu0 0
        %1928 = vmatmul.mubr.bf16.gmra.mrb[0].mxu0 %v1890
        %v1929 = vpop.f32.mrb[0].mxu0
        %v1930 = vadd.f32 0.0, %v1929
        %v1931 = vpop.f32.mrb[0].mxu0
        %v1932 = vpop.f32.mrb[0].mxu0
        %v1933 = vadd.f32 0.0, %v1932
        %v1934 = vpop.f32.mrb[0].mxu0
        %1935 = vdwg.mxu0
        %1938 = vrot.lane.b32.xlu0 %v1930, 16
        %v1939 = vpop.permute.xlu0 %1938
        %1940 = vrot.lane.b32.xlu0 %v1933, 16
        %v1941 = vpop.permute.xlu0 %1940
        %v1944 = vsel %vm1401, %v1807, %v1939
        %v1945 = vsel %vm1401, %v1810, %v1941
        %v1948 = vcombine.high %v1658, %v1658
        %v1950 = vunpack.c.l.s4 1966171168
        %v1951 = vunpack.c.0.s8 %v1950
        %v1952 = vlaneseq
        %v1953 = vshrl.u32 %v1952, 7
        %v1954 = vsub.s32 %v1951, %v1953
        %v1955 = vrot.slane %v1658, %v1954
        %v1957 = vunpack.c.l.s4 1966171168
        %v1958 = vunpack.c.0.s8 %v1957
        %v1959 = vlaneseq
        %v1960 = vshrl.u32 %v1959, 7
        %v1961 = vsub.s32 %v1958, %v1960
        %v1962 = vrot.slane %v1948, %v1961
        %v1963 = vcombine.high %v1955, %v1955
        %v1964 = vcombine.high %v1962, %v1962
        %v1966 = vunpack.c.l.s4 1966171168
        %v1967 = vunpack.c.0.s8 %v1966
        %v1968 = vlaneseq
        %v1969 = vshrl.u32 %v1968, 7
        %v1970 = vsub.s32 %v1967, %v1969
        %v1971 = vrot.slane %v1955, %v1970
        %v1973 = vunpack.c.l.s4 1966171168
        %v1974 = vunpack.c.0.s8 %v1973
        %v1975 = vlaneseq
        %v1976 = vshrl.u32 %v1975, 7
        %v1977 = vsub.s32 %v1974, %v1976
        %v1978 = vrot.slane %v1962, %v1977
        %v1980 = vunpack.c.l.s4 1966171168
        %v1981 = vunpack.c.0.s8 %v1980
        %v1982 = vlaneseq
        %v1983 = vshrl.u32 %v1982, 7
        %v1984 = vsub.s32 %v1981, %v1983
        %v1985 = vrot.slane %v1963, %v1984
        %v1987 = vunpack.c.l.s4 1966171168
        %v1988 = vunpack.c.0.s8 %v1987
        %v1989 = vlaneseq
        %v1990 = vshrl.u32 %v1989, 7
        %v1991 = vsub.s32 %v1988, %v1990
        %v1992 = vrot.slane %v1964, %v1991
        %v1993 = vcombine.high %v1971, %v1971
        %v1994 = vcombine.high %v1978, %v1978
        %v1995 = vcombine.high %v1985, %v1985
        %v1996 = vcombine.high %v1992, %v1992
        %v1998 = vunpack.c.l.s4 1966171168
        %v1999 = vunpack.c.0.s8 %v1998
        %v2000 = vlaneseq
        %v2001 = vshrl.u32 %v2000, 7
        %v2002 = vsub.s32 %v1999, %v2001
        %v2003 = vrot.slane %v1659, %v2002
        %v2005 = vunpack.c.l.s4 1966171168
        %v2006 = vunpack.c.0.s8 %v2005
        %v2007 = vlaneseq
        %v2008 = vshrl.u32 %v2007, 7
        %v2009 = vsub.s32 %v2006, %v2008
        %v2010 = vrot.slane %v2003, %v2009
        %v2022 = vcombine.high %v1944, %v1944
        %v2024 = vunpack.c.l.s4 1966171168
        %v2025 = vunpack.c.0.s8 %v2024
        %v2026 = vlaneseq
        %v2027 = vshrl.u32 %v2026, 7
        %v2028 = vsub.s32 %v2025, %v2027
        %v2029 = vrot.slane %v1944, %v2028
        %v2031 = vunpack.c.l.s4 1966171168
        %v2032 = vunpack.c.0.s8 %v2031
        %v2033 = vlaneseq
        %v2034 = vshrl.u32 %v2033, 7
        %v2035 = vsub.s32 %v2032, %v2034
        %v2036 = vrot.slane %v2022, %v2035
        %v2037 = vcombine.high %v2029, %v2029
        %v2038 = vcombine.high %v2036, %v2036
        %v2040 = vunpack.c.l.s4 1966171168
        %v2041 = vunpack.c.0.s8 %v2040
        %v2042 = vlaneseq
        %v2043 = vshrl.u32 %v2042, 7
        %v2044 = vsub.s32 %v2041, %v2043
        %v2045 = vrot.slane %v2029, %v2044
        %v2047 = vunpack.c.l.s4 1966171168
        %v2048 = vunpack.c.0.s8 %v2047
        %v2049 = vlaneseq
        %v2050 = vshrl.u32 %v2049, 7
        %v2051 = vsub.s32 %v2048, %v2050
        %v2052 = vrot.slane %v2036, %v2051
        %v2054 = vunpack.c.l.s4 1966171168
        %v2055 = vunpack.c.0.s8 %v2054
        %v2056 = vlaneseq
        %v2057 = vshrl.u32 %v2056, 7
        %v2058 = vsub.s32 %v2055, %v2057
        %v2059 = vrot.slane %v2037, %v2058
        %v2061 = vunpack.c.l.s4 1966171168
        %v2062 = vunpack.c.0.s8 %v2061
        %v2063 = vlaneseq
        %v2064 = vshrl.u32 %v2063, 7
        %v2065 = vsub.s32 %v2062, %v2064
        %v2066 = vrot.slane %v2038, %v2065
        %v2067 = vcombine.high %v2045, %v2045
        %v2068 = vcombine.high %v2052, %v2052
        %v2069 = vcombine.high %v2059, %v2059
        %v2070 = vcombine.high %v2066, %v2066
        %v2072 = vunpack.c.l.s4 1966171168
        %v2073 = vunpack.c.0.s8 %v2072
        %v2074 = vlaneseq
        %v2075 = vshrl.u32 %v2074, 7
        %v2076 = vsub.s32 %v2073, %v2075
        %v2077 = vrot.slane %v1945, %v2076
        %v2079 = vunpack.c.l.s4 1966171168
        %v2080 = vunpack.c.0.s8 %v2079
        %v2081 = vlaneseq
        %v2082 = vshrl.u32 %v2081, 7
        %v2083 = vsub.s32 %v2080, %v2082
        %v2084 = vrot.slane %v2077, %v2083
        %v2085 = vlaneseq
        %v2086 = vshrl.u32 %v2085, 7
        %v2087 = vsub.s32 0, %v2086
        %v2088 = vrot.slane %v2045, %v2087
        %v2089 = vlaneseq
        %v2090 = vshrl.u32 %v2089, 7
        %v2091 = vsub.s32 0, %v2090
        %v2092 = vrot.slane %v2059, %v2091
        %v2093 = vlaneseq
        %v2094 = vshrl.u32 %v2093, 7
        %v2095 = vsub.s32 0, %v2094
        %v2096 = vrot.slane %v2067, %v2095
        %v2097 = vlaneseq
        %v2098 = vshrl.u32 %v2097, 7
        %v2099 = vsub.s32 0, %v2098
        %v2100 = vrot.slane %v2069, %v2099
        %v2101 = vlaneseq
        %v2102 = vshrl.u32 %v2101, 7
        %v2103 = vsub.s32 0, %v2102
        %v2104 = vrot.slane %v2052, %v2103
        %v2105 = vlaneseq
        %v2106 = vshrl.u32 %v2105, 7
        %v2107 = vsub.s32 0, %v2106
        %v2108 = vrot.slane %v2066, %v2107
        %v2109 = vlaneseq
        %v2110 = vshrl.u32 %v2109, 7
        %v2111 = vsub.s32 0, %v2110
        %v2112 = vrot.slane %v2068, %v2111
        %v2113 = vlaneseq
        %v2114 = vshrl.u32 %v2113, 7
        %v2115 = vsub.s32 0, %v2114
        %v2116 = vrot.slane %v2070, %v2115
        %v2117 = vlaneseq
        %v2118 = vshrl.u32 %v2117, 7
        %v2119 = vsub.s32 0, %v2118
        %v2120 = vrot.slane %v2084, %v2119
        %vm2130 = vcmask 1040384
        %v2131 = vsel %vm2130, %v1971, %v2088
        %v2132 = vsel %vm2130, %v1985, %v2092
        %v2133 = vsel %vm2130, %v1993, %v2096
        %v2134 = vsel %vm2130, %v1995, %v2100
        %v2135 = vsel %vm2130, %v1978, %v2104
        %v2136 = vsel %vm2130, %v1992, %v2108
        %v2137 = vsel %vm2130, %v1994, %v2112
        %v2138 = vsel %vm2130, %v1996, %v2116
        %v2139 = vsel %vm2130, %v2010, %v2120
        %v2149 = vcombine.low %v2131, %v2132
        %v2150 = vcombine.low %v2133, %v2134
        %v2152 = vunpack.c.l.s4 1983009808
        %v2153 = vunpack.c.0.s8 %v2152
        %v2154 = vlaneseq
        %v2155 = vshrl.u32 %v2154, 7
        %v2156 = vsub.s32 %v2153, %v2155
        %v2157 = vrot.slane %v2149, %v2156
        %v2159 = vunpack.c.l.s4 1983009808
        %v2160 = vunpack.c.0.s8 %v2159
        %v2161 = vlaneseq
        %v2162 = vshrl.u32 %v2161, 7
        %v2163 = vsub.s32 %v2160, %v2162
        %v2164 = vrot.slane %v2150, %v2163
        %v2165 = vcombine.low %v2157, %v2164
        %v2166 = vcombine.low %v2135, %v2136
        %v2167 = vcombine.low %v2137, %v2138
        %v2169 = vunpack.c.l.s4 1983009808
        %v2170 = vunpack.c.0.s8 %v2169
        %v2171 = vlaneseq
        %v2172 = vshrl.u32 %v2171, 7
        %v2173 = vsub.s32 %v2170, %v2172
        %v2174 = vrot.slane %v2166, %v2173
        %v2176 = vunpack.c.l.s4 1983009808
        %v2177 = vunpack.c.0.s8 %v2176
        %v2178 = vlaneseq
        %v2179 = vshrl.u32 %v2178, 7
        %v2180 = vsub.s32 %v2177, %v2179
        %v2181 = vrot.slane %v2167, %v2180
        %v2182 = vcombine.low %v2174, %v2181
        %v2184 = vunpack.c.l.s4 1983009808
        %v2185 = vunpack.c.0.s8 %v2184
        %v2186 = vlaneseq
        %v2187 = vshrl.u32 %v2186, 7
        %v2188 = vsub.s32 %v2185, %v2187
        %v2189 = vrot.slane %v2139, %v2188
        %v2193 = vpack.c.bf16 %v2182, %v2165
        %v2194 = vpack.c.bf16 %v2189, %v2189
        %v2195 = vld [vmem:[%s661] sm:$0xf]
        %v2196 = vld [vmem:[%s661 + $0x4] sm:$0xf]
        %v2197 = vld [vmem:[%s661 + $0x8] sm:$0xf]
        %v2198 = vld [vmem:[%s661 + $0xc] sm:$0xf]
        %v2199 = vld [vmem:[%s664] sm:$0x1]
        %v2201 = vlaneseq
        %v2202 = vshrl.u32 %v2201, 7
        %v2203 = vsub.s32 0, %v2202
        %v2204 = vrot.slane %v2199, %v2203
        %v2210 = vunpack.c.l.b16 %v2195
        %v2211 = vunpack.c.l.b16 %v2196
        %v2212 = vunpack.c.l.b16 %v2197
        %v2213 = vunpack.c.l.b16 %v2198
        %v2214 = vpack.c.b16 %v2211, %v2210
        %v2215 = vpack.c.b16 %v2213, %v2212
        %v2219 = vsel %vm773, %v2193, 0
        %v2222 = vsel %vm773, %v2194, 0
        %2224 = vmatprep.subr.bf16.mxu0 0
        %2225 = vmatpush1.bf16.msra.mxu0 %v2214
        %2226 = vmatprep.subr.bf16.mxu0 0
        %2227 = vmatpush1.bf16.msra.mxu0 %v2215
        %2228 = vmatprep.subr.bf16.mxu0 0
        %2229 = vmatpush1.bf16.msra.mxu0 0
        %2230 = vmatprep.subr.bf16.mxu0 0
        %2231 = vmatpush1.bf16.msra.mxu0 0
        %2232 = vmatprep.subr.bf16.mxu0 0
        %2233 = vmatpush1.bf16.msra.mxu0 0
        %2234 = vmatprep.subr.bf16.mxu0 0
        %2235 = vmatpush1.bf16.msra.mxu0 0
        %2236 = vmatprep.subr.bf16.mxu0 0
        %2237 = vmatpush1.bf16.msra.mxu0 0
        %2238 = vmatprep.subr.bf16.mxu0 0
        %2239 = vmatpush1.bf16.msra.mxu0 0
        %2240 = vmatprep.subr.bf16.mxu0 0
        %2241 = vmatpush1.bf16.msra.mxu0 0
        %2242 = vmatprep.subr.bf16.mxu0 0
        %2243 = vmatpush1.bf16.msra.mxu0 0
        %2244 = vmatprep.subr.bf16.mxu0 0
        %2245 = vmatpush1.bf16.msra.mxu0 0
        %2246 = vmatprep.subr.bf16.mxu0 0
        %2247 = vmatpush1.bf16.msra.mxu0 0
        %2248 = vmatprep.subr.bf16.mxu0 0
        %2249 = vmatpush1.bf16.msra.mxu0 0
        %2250 = vmatprep.subr.bf16.mxu0 0
        %2251 = vmatpush1.bf16.msra.mxu0 0
        %2252 = vmatprep.subr.bf16.mxu0 0
        %2253 = vmatpush1.bf16.msra.mxu0 0
        %2254 = vmatprep.subr.bf16.mxu0 0
        %2255 = vmatpush1.bf16.msra.mxu0 0
        %2256 = vmatprep.mubr.bf16.mxu0 0
        %2257 = vmatmul.mubr.bf16.gmra.mrb[0].mxu0 %v2219
        %v2258 = vpop.f32.mrb[0].mxu0
        %v2259 = vadd.f32 %v2204, %v2258
        %v2260 = vpop.f32.mrb[0].mxu0
        %v2261 = vpop.f32.mrb[0].mxu0
        %v2262 = vadd.f32 %v2204, %v2261
        %v2263 = vpop.f32.mrb[0].mxu0
        %2264 = vmatprep.mubr.bf16.mxu0 0
        %2265 = vmatmul.mubr.bf16.gmra.mrb[0].mxu0 %v2222
        %v2266 = vpop.f32.mrb[0].mxu0
        %v2267 = vadd.f32 %v2204, %v2266
        %v2268 = vpop.f32.mrb[0].mxu0
        %v2269 = vpop.f32.mrb[0].mxu0
        %v2270 = vpop.f32.mrb[0].mxu0
        %2271 = vdwg.mxu0
        %v2275 = vcombine.high %v2259, %v2259
        %v2277 = vunpack.c.l.s4 1983009808
        %v2278 = vunpack.c.0.s8 %v2277
        %v2279 = vlaneseq
        %v2280 = vshrl.u32 %v2279, 7
        %v2281 = vsub.s32 %v2278, %v2280
        %v2282 = vrot.slane %v2259, %v2281
        %v2284 = vunpack.c.l.s4 1983009808
        %v2285 = vunpack.c.0.s8 %v2284
        %v2286 = vlaneseq
        %v2287 = vshrl.u32 %v2286, 7
        %v2288 = vsub.s32 %v2285, %v2287
        %v2289 = vrot.slane %v2275, %v2288
        %v2290 = vcombine.high %v2282, %v2282
        %v2291 = vcombine.high %v2289, %v2289
        %v2292 = vcombine.high %v2262, %v2262
        %v2294 = vunpack.c.l.s4 1983009808
        %v2295 = vunpack.c.0.s8 %v2294
        %v2296 = vlaneseq
        %v2297 = vshrl.u32 %v2296, 7
        %v2298 = vsub.s32 %v2295, %v2297
        %v2299 = vrot.slane %v2262, %v2298
        %v2301 = vunpack.c.l.s4 1983009808
        %v2302 = vunpack.c.0.s8 %v2301
        %v2303 = vlaneseq
        %v2304 = vshrl.u32 %v2303, 7
        %v2305 = vsub.s32 %v2302, %v2304
        %v2306 = vrot.slane %v2292, %v2305
        %v2307 = vcombine.high %v2299, %v2299
        %v2308 = vcombine.high %v2306, %v2306
        %v2310 = vunpack.c.l.s4 1983009808
        %v2311 = vunpack.c.0.s8 %v2310
        %v2312 = vlaneseq
        %v2313 = vshrl.u32 %v2312, 7
        %v2314 = vsub.s32 %v2311, %v2313
        %v2315 = vrot.slane %v2267, %v2314
        %v2325 = vadd.f32 %v711, %v2282
        %v2326 = vadd.f32 %v712, %v2290
        %v2327 = vadd.f32 %v713, %v2289
        %v2328 = vadd.f32 %v714, %v2291
        %v2329 = vadd.f32 %v715, %v2299
        %v2330 = vadd.f32 %v716, %v2307
        %v2331 = vadd.f32 %v717, %v2306
        %v2332 = vadd.f32 %v718, %v2308
        %v2333 = vadd.f32 %v719, %v2315
        %v2343 = vcombine.low %v2325, %v2326
        %v2344 = vcombine.low %v2327, %v2328
        %v2346 = vunpack.c.l.s4 1983009808
        %v2347 = vunpack.c.0.s8 %v2346
        %v2348 = vlaneseq
        %v2349 = vshrl.u32 %v2348, 7
        %v2350 = vsub.s32 %v2347, %v2349
        %v2351 = vrot.slane %v2343, %v2350
        %v2353 = vunpack.c.l.s4 1983009808
        %v2354 = vunpack.c.0.s8 %v2353
        %v2355 = vlaneseq
        %v2356 = vshrl.u32 %v2355, 7
        %v2357 = vsub.s32 %v2354, %v2356
        %v2358 = vrot.slane %v2344, %v2357
        %v2359 = vcombine.low %v2351, %v2358
        %v2360 = vcombine.low %v2329, %v2330
        %v2361 = vcombine.low %v2331, %v2332
        %v2363 = vunpack.c.l.s4 1983009808
        %v2364 = vunpack.c.0.s8 %v2363
        %v2365 = vlaneseq
        %v2366 = vshrl.u32 %v2365, 7
        %v2367 = vsub.s32 %v2364, %v2366
        %v2368 = vrot.slane %v2360, %v2367
        %v2370 = vunpack.c.l.s4 1983009808
        %v2371 = vunpack.c.0.s8 %v2370
        %v2372 = vlaneseq
        %v2373 = vshrl.u32 %v2372, 7
        %v2374 = vsub.s32 %v2371, %v2373
        %v2375 = vrot.slane %v2361, %v2374
        %v2376 = vcombine.low %v2368, %v2375
        %v2378 = vunpack.c.l.s4 1983009808
        %v2379 = vunpack.c.0.s8 %v2378
        %v2380 = vlaneseq
        %v2381 = vshrl.u32 %v2380, 7
        %v2382 = vsub.s32 %v2379, %v2381
        %v2383 = vrot.slane %v2333, %v2382
        %v2387 = vsel %vm773, %v2359, 0.0
        %2388 = vadd.xlane.f32.xlu0 %v2387
        %v2389 = vpop.xlane.xlu0 %2388
        %v2390 = vsel %vm773, %v2376, 0.0
        %2391 = vadd.xlane.f32.xlu0 %v2390
        %v2392 = vpop.xlane.xlu0 %2391
        %v2393 = vsel %vm780, %v2383, 0.0
        %2394 = vadd.xlane.f32.xlu0 %v2393
        %v2395 = vpop.xlane.xlu0 %2394
        %v2396 = vmul.f32 %v2389, %v784
        %v2397 = vmul.f32 %v2392, %v784
        %v2398 = vmul.f32 %v2395, %v784
        %v2399 = vmul.f32 %v2325, %v2325
        %v2400 = vmul.f32 %v2326, %v2326
        %v2401 = vmul.f32 %v2327, %v2327
        %v2402 = vmul.f32 %v2328, %v2328
        %v2403 = vmul.f32 %v2329, %v2329
        %v2404 = vmul.f32 %v2330, %v2330
        %v2405 = vmul.f32 %v2331, %v2331
        %v2406 = vmul.f32 %v2332, %v2332
        %v2407 = vmul.f32 %v2333, %v2333
        %v2417 = vcombine.low %v2399, %v2400
        %v2418 = vcombine.low %v2401, %v2402
        %v2420 = vunpack.c.l.s4 1983009808
        %v2421 = vunpack.c.0.s8 %v2420
        %v2422 = vlaneseq
        %v2423 = vshrl.u32 %v2422, 7
        %v2424 = vsub.s32 %v2421, %v2423
        %v2425 = vrot.slane %v2417, %v2424
        %v2427 = vunpack.c.l.s4 1983009808
        %v2428 = vunpack.c.0.s8 %v2427
        %v2429 = vlaneseq
        %v2430 = vshrl.u32 %v2429, 7
        %v2431 = vsub.s32 %v2428, %v2430
        %v2432 = vrot.slane %v2418, %v2431
        %v2433 = vcombine.low %v2425, %v2432
        %v2434 = vcombine.low %v2403, %v2404
        %v2435 = vcombine.low %v2405, %v2406
        %v2437 = vunpack.c.l.s4 1983009808
        %v2438 = vunpack.c.0.s8 %v2437
        %v2439 = vlaneseq
        %v2440 = vshrl.u32 %v2439, 7
        %v2441 = vsub.s32 %v2438, %v2440
        %v2442 = vrot.slane %v2434, %v2441
        %v2444 = vunpack.c.l.s4 1983009808
        %v2445 = vunpack.c.0.s8 %v2444
        %v2446 = vlaneseq
        %v2447 = vshrl.u32 %v2446, 7
        %v2448 = vsub.s32 %v2445, %v2447
        %v2449 = vrot.slane %v2435, %v2448
        %v2450 = vcombine.low %v2442, %v2449
        %v2452 = vunpack.c.l.s4 1983009808
        %v2453 = vunpack.c.0.s8 %v2452
        %v2454 = vlaneseq
        %v2455 = vshrl.u32 %v2454, 7
        %v2456 = vsub.s32 %v2453, %v2455
        %v2457 = vrot.slane %v2407, %v2456
        %v2461 = vsel %vm773, %v2433, 0.0
        %2462 = vadd.xlane.f32.xlu0 %v2461
        %v2463 = vpop.xlane.xlu0 %2462
        %v2464 = vsel %vm773, %v2450, 0.0
        %2465 = vadd.xlane.f32.xlu0 %v2464
        %v2466 = vpop.xlane.xlu0 %2465
        %v2467 = vsel %vm780, %v2457, 0.0
        %2468 = vadd.xlane.f32.xlu0 %v2467
        %v2469 = vpop.xlane.xlu0 %2468
        %v2470 = vmul.f32 %v2463, %v784
        %v2471 = vmul.f32 %v2466, %v784
        %v2472 = vmul.f32 %v2469, %v784
        %v2473 = vmul.f32 %v2396, %v2396
        %v2474 = vmul.f32 %v2397, %v2397
        %v2475 = vmul.f32 %v2398, %v2398
        %v2476 = vsub.f32 %v2470, %v2473
        %v2477 = vsub.f32 %v2471, %v2474
        %v2478 = vsub.f32 %v2472, %v2475
        %v2483 = vunpack.c.l.s4 269488144
        %v2484 = vunpack.c.0.s8 %v2483
        %v2485 = vlaneseq
        %v2486 = vshrl.u32 %v2485, 7
        %v2487 = vsub.s32 %v2484, %v2486
        %v2488 = vrot.slane %v2396, %v2487
        %v2490 = vunpack.c.l.s4 842150450
        %v2491 = vunpack.c.0.s8 %v2490
        %v2492 = vlaneseq
        %v2493 = vshrl.u32 %v2492, 7
        %v2494 = vsub.s32 %v2491, %v2493
        %v2495 = vrot.slane %v2396, %v2494
        %v2497 = vunpack.c.l.s4 1414812756
        %v2498 = vunpack.c.0.s8 %v2497
        %v2499 = vlaneseq
        %v2500 = vshrl.u32 %v2499, 7
        %v2501 = vsub.s32 %v2498, %v2500
        %v2502 = vrot.slane %v2396, %v2501
        %v2504 = vunpack.c.l.s4 1987475062
        %v2505 = vunpack.c.0.s8 %v2504
        %v2506 = vlaneseq
        %v2507 = vshrl.u32 %v2506, 7
        %v2508 = vsub.s32 %v2505, %v2507
        %v2509 = vrot.slane %v2396, %v2508
        %v2511 = vunpack.c.l.s4 269488144
        %v2512 = vunpack.c.0.s8 %v2511
        %v2513 = vlaneseq
        %v2514 = vshrl.u32 %v2513, 7
        %v2515 = vsub.s32 %v2512, %v2514
        %v2516 = vrot.slane %v2397, %v2515
        %v2518 = vunpack.c.l.s4 842150450
        %v2519 = vunpack.c.0.s8 %v2518
        %v2520 = vlaneseq
        %v2521 = vshrl.u32 %v2520, 7
        %v2522 = vsub.s32 %v2519, %v2521
        %v2523 = vrot.slane %v2397, %v2522
        %v2525 = vunpack.c.l.s4 1414812756
        %v2526 = vunpack.c.0.s8 %v2525
        %v2527 = vlaneseq
        %v2528 = vshrl.u32 %v2527, 7
        %v2529 = vsub.s32 %v2526, %v2528
        %v2530 = vrot.slane %v2397, %v2529
        %v2532 = vunpack.c.l.s4 1987475062
        %v2533 = vunpack.c.0.s8 %v2532
        %v2534 = vlaneseq
        %v2535 = vshrl.u32 %v2534, 7
        %v2536 = vsub.s32 %v2533, %v2535
        %v2537 = vrot.slane %v2397, %v2536
        %v2539 = vunpack.c.l.s4 269488144
        %v2540 = vunpack.c.0.s8 %v2539
        %v2541 = vlaneseq
        %v2542 = vshrl.u32 %v2541, 7
        %v2543 = vsub.s32 %v2540, %v2542
        %v2544 = vrot.slane %v2398, %v2543
        %v2554 = vsub.f32 %v2325, %v2488
        %v2555 = vsub.f32 %v2326, %v2495
        %v2556 = vsub.f32 %v2327, %v2502
        %v2557 = vsub.f32 %v2328, %v2509
        %v2558 = vsub.f32 %v2329, %v2516
        %v2559 = vsub.f32 %v2330, %v2523
        %v2560 = vsub.f32 %v2331, %v2530
        %v2561 = vsub.f32 %v2332, %v2537
        %v2562 = vsub.f32 %v2333, %v2544
        %v2563 = vadd.f32 %v2476, 1e-06
        %v2564 = vadd.f32 %v2477, 1e-06
        %v2565 = vadd.f32 %v2478, 1e-06
        %v2566 = vrsqrt.pop %v2563
        %v2567 = vrsqrt.pop %v2564
        %v2568 = vrsqrt.pop %v2565
        %v2573 = vunpack.c.l.s4 269488144
        %v2574 = vunpack.c.0.s8 %v2573
        %v2575 = vlaneseq
        %v2576 = vshrl.u32 %v2575, 7
        %v2577 = vsub.s32 %v2574, %v2576
        %v2578 = vrot.slane %v2566, %v2577
        %v2580 = vunpack.c.l.s4 842150450
        %v2581 = vunpack.c.0.s8 %v2580
        %v2582 = vlaneseq
        %v2583 = vshrl.u32 %v2582, 7
        %v2584 = vsub.s32 %v2581, %v2583
        %v2585 = vrot.slane %v2566, %v2584
        %v2587 = vunpack.c.l.s4 1414812756
        %v2588 = vunpack.c.0.s8 %v2587
        %v2589 = vlaneseq
        %v2590 = vshrl.u32 %v2589, 7
        %v2591 = vsub.s32 %v2588, %v2590
        %v2592 = vrot.slane %v2566, %v2591
        %v2594 = vunpack.c.l.s4 1987475062
        %v2595 = vunpack.c.0.s8 %v2594
        %v2596 = vlaneseq
        %v2597 = vshrl.u32 %v2596, 7
        %v2598 = vsub.s32 %v2595, %v2597
        %v2599 = vrot.slane %v2566, %v2598
        %v2601 = vunpack.c.l.s4 269488144
        %v2602 = vunpack.c.0.s8 %v2601
        %v2603 = vlaneseq
        %v2604 = vshrl.u32 %v2603, 7
        %v2605 = vsub.s32 %v2602, %v2604
        %v2606 = vrot.slane %v2567, %v2605
        %v2608 = vunpack.c.l.s4 842150450
        %v2609 = vunpack.c.0.s8 %v2608
        %v2610 = vlaneseq
        %v2611 = vshrl.u32 %v2610, 7
        %v2612 = vsub.s32 %v2609, %v2611
        %v2613 = vrot.slane %v2567, %v2612
        %v2615 = vunpack.c.l.s4 1414812756
        %v2616 = vunpack.c.0.s8 %v2615
        %v2617 = vlaneseq
        %v2618 = vshrl.u32 %v2617, 7
        %v2619 = vsub.s32 %v2616, %v2618
        %v2620 = vrot.slane %v2567, %v2619
        %v2622 = vunpack.c.l.s4 1987475062
        %v2623 = vunpack.c.0.s8 %v2622
        %v2624 = vlaneseq
        %v2625 = vshrl.u32 %v2624, 7
        %v2626 = vsub.s32 %v2623, %v2625
        %v2627 = vrot.slane %v2567, %v2626
        %v2629 = vunpack.c.l.s4 269488144
        %v2630 = vunpack.c.0.s8 %v2629
        %v2631 = vlaneseq
        %v2632 = vshrl.u32 %v2631, 7
        %v2633 = vsub.s32 %v2630, %v2632
        %v2634 = vrot.slane %v2568, %v2633
        %v2644 = vmul.f32 %v2554, %v2578
        %v2645 = vmul.f32 %v2555, %v2585
        %v2646 = vmul.f32 %v2556, %v2592
        %v2647 = vmul.f32 %v2557, %v2599
        %v2648 = vmul.f32 %v2558, %v2606
        %v2649 = vmul.f32 %v2559, %v2613
        %v2650 = vmul.f32 %v2560, %v2620
        %v2651 = vmul.f32 %v2561, %v2627
        %v2652 = vmul.f32 %v2562, %v2634
        %v2653 = vld [vmem:[%s667] sm:$0x1]
        %v2655 = vlaneseq
        %v2656 = vshrl.u32 %v2655, 7
        %v2657 = vsub.s32 0, %v2656
        %v2658 = vrot.slane %v2653, %v2657
        %v2659 = vcombine.high %v2658, %v2658
        %v2661 = vunpack.c.l.s4 1983009808
        %v2662 = vunpack.c.0.s8 %v2661
        %v2663 = vlaneseq
        %v2664 = vshrl.u32 %v2663, 7
        %v2665 = vsub.s32 %v2662, %v2664
        %v2666 = vrot.slane %v2658, %v2665
        %v2668 = vunpack.c.l.s4 1983009808
        %v2669 = vunpack.c.0.s8 %v2668
        %v2670 = vlaneseq
        %v2671 = vshrl.u32 %v2670, 7
        %v2672 = vsub.s32 %v2669, %v2671
        %v2673 = vrot.slane %v2659, %v2672
        %v2674 = vcombine.high %v2666, %v2666
        %v2675 = vcombine.high %v2673, %v2673
        %v2680 = vmul.f32 %v2644, %v2666
        %v2681 = vmul.f32 %v2645, %v2674
        %v2682 = vmul.f32 %v2646, %v2673
        %v2683 = vmul.f32 %v2647, %v2675
        %v2684 = vmul.f32 %v2648, %v2666
        %v2685 = vmul.f32 %v2649, %v2674
        %v2686 = vmul.f32 %v2650, %v2673
        %v2687 = vmul.f32 %v2651, %v2675
        %v2688 = vmul.f32 %v2652, %v2666
        %v2689 = vld [vmem:[%s670] sm:$0x1]
        %v2691 = vlaneseq
        %v2692 = vshrl.u32 %v2691, 7
        %v2693 = vsub.s32 0, %v2692
        %v2694 = vrot.slane %v2689, %v2693
        %v2695 = vcombine.high %v2694, %v2694
        %v2697 = vunpack.c.l.s4 1983009808
        %v2698 = vunpack.c.0.s8 %v2697
        %v2699 = vlaneseq
        %v2700 = vshrl.u32 %v2699, 7
        %v2701 = vsub.s32 %v2698, %v2700
        %v2702 = vrot.slane %v2694, %v2701
        %v2704 = vunpack.c.l.s4 1983009808
        %v2705 = vunpack.c.0.s8 %v2704
        %v2706 = vlaneseq
        %v2707 = vshrl.u32 %v2706, 7
        %v2708 = vsub.s32 %v2705, %v2707
        %v2709 = vrot.slane %v2695, %v2708
        %v2710 = vcombine.high %v2702, %v2702
        %v2711 = vcombine.high %v2709, %v2709
        %v2716 = vadd.f32 %v2680, %v2702
        %v2717 = vadd.f32 %v2681, %v2710
        %v2718 = vadd.f32 %v2682, %v2709
        %v2719 = vadd.f32 %v2683, %v2711
        %v2720 = vadd.f32 %v2684, %v2702
        %v2721 = vadd.f32 %v2685, %v2710
        %v2722 = vadd.f32 %v2686, %v2709
        %v2723 = vadd.f32 %v2687, %v2711
        %v2724 = vadd.f32 %v2688, %v2702
        %v2734 = vcombine.low %v2716, %v2717
        %v2735 = vcombine.low %v2718, %v2719
        %v2737 = vunpack.c.l.s4 1983009808
        %v2738 = vunpack.c.0.s8 %v2737
        %v2739 = vlaneseq
        %v2740 = vshrl.u32 %v2739, 7
        %v2741 = vsub.s32 %v2738, %v2740
        %v2742 = vrot.slane %v2734, %v2741
        %v2744 = vunpack.c.l.s4 1983009808
        %v2745 = vunpack.c.0.s8 %v2744
        %v2746 = vlaneseq
        %v2747 = vshrl.u32 %v2746, 7
        %v2748 = vsub.s32 %v2745, %v2747
        %v2749 = vrot.slane %v2735, %v2748
        %v2750 = vcombine.low %v2742, %v2749
        %v2751 = vcombine.low %v2720, %v2721
        %v2752 = vcombine.low %v2722, %v2723
        %v2754 = vunpack.c.l.s4 1983009808
        %v2755 = vunpack.c.0.s8 %v2754
        %v2756 = vlaneseq
        %v2757 = vshrl.u32 %v2756, 7
        %v2758 = vsub.s32 %v2755, %v2757
        %v2759 = vrot.slane %v2751, %v2758
        %v2761 = vunpack.c.l.s4 1983009808
        %v2762 = vunpack.c.0.s8 %v2761
        %v2763 = vlaneseq
        %v2764 = vshrl.u32 %v2763, 7
        %v2765 = vsub.s32 %v2762, %v2764
        %v2766 = vrot.slane %v2752, %v2765
        %v2767 = vcombine.low %v2759, %v2766
        %v2769 = vunpack.c.l.s4 1983009808
        %v2770 = vunpack.c.0.s8 %v2769
        %v2771 = vlaneseq
        %v2772 = vshrl.u32 %v2771, 7
        %v2773 = vsub.s32 %v2770, %v2772
        %v2774 = vrot.slane %v2724, %v2773
        %v2778 = vpack.c.bf16 %v2767, %v2750
        %v2779 = vpack.c.bf16 %v2774, %v2774
        %v2780 = vld [vmem:[%s675] sm:$0xf]
        %v2781 = vld [vmem:[%s675 + $0x4] sm:$0xf]
        %v2782 = vld [vmem:[%s675 + $0x8] sm:$0xf]
        %v2783 = vld [vmem:[%s675 + $0xc] sm:$0xf]
        %v2784 = vld [vmem:[%s678] sm:$0x1]
        %v2786 = vlaneseq
        %v2787 = vshrl.u32 %v2786, 7
        %v2788 = vsub.s32 0, %v2787
        %v2789 = vrot.slane %v2784, %v2788
        %v2795 = vunpack.c.l.b16 %v2780
        %v2796 = vunpack.c.l.b16 %v2781
        %v2797 = vunpack.c.l.b16 %v2782
        %v2798 = vunpack.c.l.b16 %v2783
        %v2799 = vpack.c.b16 %v2796, %v2795
        %v2800 = vpack.c.b16 %v2798, %v2797
        %v2804 = vsel %vm773, %v2778, 0
        %v2807 = vsel %vm773, %v2779, 0
        %2809 = vmatprep.subr.bf16.mxu0 0
        %2810 = vmatpush1.bf16.msra.mxu0 %v2799
        %2811 = vmatprep.subr.bf16.mxu0 0
        %2812 = vmatpush1.bf16.msra.mxu0 %v2800
        %2813 = vmatprep.subr.bf16.mxu0 0
        %2814 = vmatpush1.bf16.msra.mxu0 0
        %2815 = vmatprep.subr.bf16.mxu0 0
        %2816 = vmatpush1.bf16.msra.mxu0 0
        %2817 = vmatprep.subr.bf16.mxu0 0
        %2818 = vmatpush1.bf16.msra.mxu0 0
        %2819 = vmatprep.subr.bf16.mxu0 0
        %2820 = vmatpush1.bf16.msra.mxu0 0
        %2821 = vmatprep.subr.bf16.mxu0 0
        %2822 = vmatpush1.bf16.msra.mxu0 0
        %2823 = vmatprep.subr.bf16.mxu0 0
        %2824 = vmatpush1.bf16.msra.mxu0 0
        %2825 = vmatprep.subr.bf16.mxu0 0
        %2826 = vmatpush1.bf16.msra.mxu0 0
        %2827 = vmatprep.subr.bf16.mxu0 0
        %2828 = vmatpush1.bf16.msra.mxu0 0
        %2829 = vmatprep.subr.bf16.mxu0 0
        %2830 = vmatpush1.bf16.msra.mxu0 0
        %2831 = vmatprep.subr.bf16.mxu0 0
        %2832 = vmatpush1.bf16.msra.mxu0 0
        %2833 = vmatprep.subr.bf16.mxu0 0
        %2834 = vmatpush1.bf16.msra.mxu0 0
        %2835 = vmatprep.subr.bf16.mxu0 0
        %2836 = vmatpush1.bf16.msra.mxu0 0
        %2837 = vmatprep.subr.bf16.mxu0 0
        %2838 = vmatpush1.bf16.msra.mxu0 0
        %2839 = vmatprep.subr.bf16.mxu0 0
        %2840 = vmatpush1.bf16.msra.mxu0 0
        %2841 = vmatprep.mubr.bf16.mxu0 0
        %2842 = vmatmul.mubr.bf16.gmra.mrb[0].mxu0 %v2804
        %v2843 = vpop.f32.mrb[0].mxu0
        %v2844 = vadd.f32 %v2789, %v2843
        %v2845 = vpop.f32.mrb[0].mxu0
        %v2846 = vpop.f32.mrb[0].mxu0
        %v2847 = vadd.f32 %v2789, %v2846
        %v2848 = vpop.f32.mrb[0].mxu0
        %2849 = vmatprep.mubr.bf16.mxu0 0
        %2850 = vmatmul.mubr.bf16.gmra.mrb[0].mxu0 %v2807
        %v2851 = vpop.f32.mrb[0].mxu0
        %v2852 = vadd.f32 %v2789, %v2851
        %v2853 = vpop.f32.mrb[0].mxu0
        %v2854 = vpop.f32.mrb[0].mxu0
        %v2855 = vpop.f32.mrb[0].mxu0
        %2856 = vdwg.mxu0
        %v2857 = vmul.f32 %v2844, %v2844
        %v2858 = vmul.f32 %v2847, %v2847
        %v2859 = vmul.f32 %v2852, %v2852
        %v2860 = vmul.f32 %v2844, %v2857
        %v2861 = vmul.f32 %v2847, %v2858
        %v2862 = vmul.f32 %v2852, %v2859
        %v2863 = vmul.f32 %v2860, 0.044715
        %v2864 = vmul.f32 %v2861, 0.044715
        %v2865 = vmul.f32 %v2862, 0.044715
        %v2866 = vadd.f32 %v2844, %v2863
        %v2867 = vadd.f32 %v2847, %v2864
        %v2868 = vadd.f32 %v2852, %v2865
        %v2869 = vmul.f32 %v2866, 0.7978846
        %v2870 = vmul.f32 %v2867, 0.7978846
        %v2871 = vmul.f32 %v2868, 0.7978846
        %v2872 = vtanh.pop %v2869
        %v2873 = vtanh.pop %v2870
        %v2874 = vtanh.pop %v2871
        %v2875 = vadd.f32 %v2872, 1.0
        %v2876 = vadd.f32 %v2873, 1.0
        %v2877 = vadd.f32 %v2874, 1.0
        %v2878 = vmul.f32 %v2875, 0.5
        %v2879 = vmul.f32 %v2876, 0.5
        %v2880 = vmul.f32 %v2877, 0.5
        %v2881 = vmul.f32 %v2844, %v2878
        %v2882 = vmul.f32 %v2847, %v2879
        %v2883 = vmul.f32 %v2852, %v2880
        %v2884 = vpack.c.bf16 %v2882, %v2881
        %v2885 = vpack.c.bf16 %v2883, %v2883
        %v2886 = vld [vmem:[%s683] sm:$0xf]
        %v2887 = vld [vmem:[%s683 + $0x4] sm:$0xf]
        %v2888 = vld [vmem:[%s683 + $0x8] sm:$0xf]
        %v2889 = vld [vmem:[%s683 + $0xc] sm:$0xf]
        %v2890 = vld [vmem:[%s683 + $0x10] sm:$0xf]
        %v2891 = vld [vmem:[%s683 + $0x14] sm:$0xf]
        %v2892 = vld [vmem:[%s683 + $0x18] sm:$0xf]
        %v2893 = vld [vmem:[%s683 + $0x1c] sm:$0xf]
        %v2894 = vld [vmem:[%s683 + $0x20] sm:$0xf]
        %v2895 = vld [vmem:[%s683 + $0x24] sm:$0xf]
        %v2896 = vld [vmem:[%s683 + $0x28] sm:$0xf]
        %v2897 = vld [vmem:[%s683 + $0x2c] sm:$0xf]
        %v2898 = vld [vmem:[%s683 + $0x30] sm:$0xf]
        %v2899 = vld [vmem:[%s683 + $0x34] sm:$0xf]
        %v2900 = vld [vmem:[%s683 + $0x38] sm:$0xf]
        %v2901 = vld [vmem:[%s683 + $0x3c] sm:$0xf]
        %v2902 = vld [vmem:[%s686] sm:$0x1]
        %v2904 = vlaneseq
        %v2905 = vshrl.u32 %v2904, 7
        %v2906 = vsub.s32 0, %v2905
        %v2907 = vrot.slane %v2902, %v2906
        %v2925 = vunpack.c.l.b16 %v2886
        %v2926 = vunpack.c.l.b16 %v2887
        %v2927 = vunpack.c.l.b16 %v2888
        %v2928 = vunpack.c.l.b16 %v2889
        %v2929 = vunpack.c.l.b16 %v2890
        %v2930 = vunpack.c.l.b16 %v2891
        %v2931 = vunpack.c.l.b16 %v2892
        %v2932 = vunpack.c.l.b16 %v2893
        %v2933 = vunpack.c.l.b16 %v2894
        %v2934 = vunpack.c.l.b16 %v2895
        %v2935 = vunpack.c.l.b16 %v2896
        %v2936 = vunpack.c.l.b16 %v2897
        %v2937 = vunpack.c.l.b16 %v2898
        %v2938 = vunpack.c.l.b16 %v2899
        %v2939 = vunpack.c.l.b16 %v2900
        %v2940 = vunpack.c.l.b16 %v2901
        %v2941 = vpack.c.b16 %v2926, %v2925
        %v2942 = vpack.c.b16 %v2928, %v2927
        %v2943 = vpack.c.b16 %v2930, %v2929
        %v2944 = vpack.c.b16 %v2932, %v2931
        %v2945 = vpack.c.b16 %v2934, %v2933
        %v2946 = vpack.c.b16 %v2936, %v2935
        %v2947 = vpack.c.b16 %v2938, %v2937
        %v2948 = vpack.c.b16 %v2940, %v2939
        %2957 = vmatprep.subr.bf16.mxu0 0
        %2958 = vmatpush1.bf16.msra.mxu0 %v2941
        %2959 = vmatprep.subr.bf16.mxu0 0
        %2960 = vmatpush1.bf16.msra.mxu0 %v2942
        %2961 = vmatprep.subr.bf16.mxu0 0
        %2962 = vmatpush1.bf16.msra.mxu0 %v2943
        %2963 = vmatprep.subr.bf16.mxu0 0
        %2964 = vmatpush1.bf16.msra.mxu0 %v2944
        %2965 = vmatprep.subr.bf16.mxu0 0
        %2966 = vmatpush1.bf16.msra.mxu0 %v2945
        %2967 = vmatprep.subr.bf16.mxu0 0
        %2968 = vmatpush1.bf16.msra.mxu0 %v2946
        %2969 = vmatprep.subr.bf16.mxu0 0
        %2970 = vmatpush1.bf16.msra.mxu0 %v2947
        %2971 = vmatprep.subr.bf16.mxu0 0
        %2972 = vmatpush1.bf16.msra.mxu0 %v2948
        %2973 = vmatprep.subr.bf16.mxu0 0
        %2974 = vmatpush1.bf16.msra.mxu0 0
        %2975 = vmatprep.subr.bf16.mxu0 0
        %2976 = vmatpush1.bf16.msra.mxu0 0
        %2977 = vmatprep.subr.bf16.mxu0 0
        %2978 = vmatpush1.bf16.msra.mxu0 0
        %2979 = vmatprep.subr.bf16.mxu0 0
        %2980 = vmatpush1.bf16.msra.mxu0 0
        %2981 = vmatprep.subr.bf16.mxu0 0
        %2982 = vmatpush1.bf16.msra.mxu0 0
        %2983 = vmatprep.subr.bf16.mxu0 0
        %2984 = vmatpush1.bf16.msra.mxu0 0
        %2985 = vmatprep.subr.bf16.mxu0 0
        %2986 = vmatpush1.bf16.msra.mxu0 0
        %2987 = vmatprep.subr.bf16.mxu0 0
        %2988 = vmatpush1.bf16.msra.mxu0 0
        %2989 = vmatprep.mubr.bf16.mxu0 0
        %2990 = vmatmul.mubr.bf16.gmra.mrb[0].mxu0 %v2884
        %v2991 = vpop.f32.mrb[0].mxu0
        %v2992 = vadd.f32 %v2907, %v2991
        %v2993 = vpop.f32.mrb[0].mxu0
        %v2994 = vpop.f32.mrb[0].mxu0
        %v2995 = vadd.f32 %v2907, %v2994
        %v2996 = vpop.f32.mrb[0].mxu0
        %2997 = vmatprep.mubr.bf16.mxu0 0
        %2998 = vmatmul.mubr.bf16.gmra.mrb[0].mxu0 %v2885
        %v2999 = vpop.f32.mrb[0].mxu0
        %v3000 = vadd.f32 %v2907, %v2999
        %v3001 = vpop.f32.mrb[0].mxu0
        %v3002 = vpop.f32.mrb[0].mxu0
        %v3003 = vpop.f32.mrb[0].mxu0
        %3004 = vdwg.mxu0
        %v3008 = vcombine.high %v2992, %v2992
        %v3010 = vunpack.c.l.s4 1983009808
        %v3011 = vunpack.c.0.s8 %v3010
        %v3012 = vlaneseq
        %v3013 = vshrl.u32 %v3012, 7
        %v3014 = vsub.s32 %v3011, %v3013
        %v3015 = vrot.slane %v2992, %v3014
        %v3017 = vunpack.c.l.s4 1983009808
        %v3018 = vunpack.c.0.s8 %v3017
        %v3019 = vlaneseq
        %v3020 = vshrl.u32 %v3019, 7
        %v3021 = vsub.s32 %v3018, %v3020
        %v3022 = vrot.slane %v3008, %v3021
        %v3023 = vcombine.high %v3015, %v3015
        %v3024 = vcombine.high %v3022, %v3022
        %v3025 = vcombine.high %v2995, %v2995
        %v3027 = vunpack.c.l.s4 1983009808
        %v3028 = vunpack.c.0.s8 %v3027
        %v3029 = vlaneseq
        %v3030 = vshrl.u32 %v3029, 7
        %v3031 = vsub.s32 %v3028, %v3030
        %v3032 = vrot.slane %v2995, %v3031
        %v3034 = vunpack.c.l.s4 1983009808
        %v3035 = vunpack.c.0.s8 %v3034
        %v3036 = vlaneseq
        %v3037 = vshrl.u32 %v3036, 7
        %v3038 = vsub.s32 %v3035, %v3037
        %v3039 = vrot.slane %v3025, %v3038
        %v3040 = vcombine.high %v3032, %v3032
        %v3041 = vcombine.high %v3039, %v3039
        %v3043 = vunpack.c.l.s4 1983009808
        %v3044 = vunpack.c.0.s8 %v3043
        %v3045 = vlaneseq
        %v3046 = vshrl.u32 %v3045, 7
        %v3047 = vsub.s32 %v3044, %v3046
        %v3048 = vrot.slane %v3000, %v3047
        %v3058 = vadd.f32 %v2325, %v3015
        %v3059 = vadd.f32 %v2326, %v3023
        %v3060 = vadd.f32 %v2327, %v3022
        %v3061 = vadd.f32 %v2328, %v3024
        %v3062 = vadd.f32 %v2329, %v3032
        %v3063 = vadd.f32 %v2330, %v3040
        %v3064 = vadd.f32 %v2331, %v3039
        %v3065 = vadd.f32 %v2332, %v3041
        %v3066 = vadd.f32 %v2333, %v3048
        %3067 = vst.msk [vmem:[#allocation2] sm:$0x3] %vm780, %v3058
        %3068 = vst.msk [vmem:[#allocation2 + $0x2] sm:$0x3] %vm780, %v3059
        %3069 = vst.msk [vmem:[#allocation2 + $0x4] sm:$0x3] %vm780, %v3060
        %3070 = vst.msk [vmem:[#allocation2 + $0x6] sm:$0x3] %vm780, %v3061
        %3071 = vst.msk [vmem:[#allocation2 + $0x8] sm:$0x3] %vm780, %v3062
        %3072 = vst.msk [vmem:[#allocation2 + $0xa] sm:$0x3] %vm780, %v3063
        %3073 = vst.msk [vmem:[#allocation2 + $0xc] sm:$0x3] %vm780, %v3064
        %3074 = vst.msk [vmem:[#allocation2 + $0xe] sm:$0x3] %vm780, %v3065
        %3075 = vst.msk [vmem:[#allocation2 + $0x10] sm:$0x3] %vm780, %v3066
        %p3076 = scmp.eq.s32.totalorder %s32, 1
        // Predicated region
        $region85: #{tpu_custom_call.1} parent=79 // pred_check
          %p3077 = pneg %p3076
        $region86: #{tpu_custom_call.1} parent=79 // pred_check_branch
          %3079 = sbr.rel (%p3077) target = $region88
        $region87: #{tpu_custom_call.1} parent=79 // pred_region
          %v3089 = vcombine.low %v3058, %v3059
          %v3090 = vcombine.low %v3060, %v3061
          %v3092 = vunpack.c.l.s4 1983009808
          %v3093 = vunpack.c.0.s8 %v3092
          %v3094 = vlaneseq
          %v3095 = vshrl.u32 %v3094, 7
          %v3096 = vsub.s32 %v3093, %v3095
          %v3097 = vrot.slane %v3089, %v3096
          %v3099 = vunpack.c.l.s4 1983009808
          %v3100 = vunpack.c.0.s8 %v3099
          %v3101 = vlaneseq
          %v3102 = vshrl.u32 %v3101, 7
          %v3103 = vsub.s32 %v3100, %v3102
          %v3104 = vrot.slane %v3090, %v3103
          %v3105 = vcombine.low %v3097, %v3104
          %v3106 = vcombine.low %v3062, %v3063
          %v3107 = vcombine.low %v3064, %v3065
          %v3109 = vunpack.c.l.s4 1983009808
          %v3110 = vunpack.c.0.s8 %v3109
          %v3111 = vlaneseq
          %v3112 = vshrl.u32 %v3111, 7
          %v3113 = vsub.s32 %v3110, %v3112
          %v3114 = vrot.slane %v3106, %v3113
          %v3116 = vunpack.c.l.s4 1983009808
          %v3117 = vunpack.c.0.s8 %v3116
          %v3118 = vlaneseq
          %v3119 = vshrl.u32 %v3118, 7
          %v3120 = vsub.s32 %v3117, %v3119
          %v3121 = vrot.slane %v3107, %v3120
          %v3122 = vcombine.low %v3114, %v3121
          %v3124 = vunpack.c.l.s4 1983009808
          %v3125 = vunpack.c.0.s8 %v3124
          %v3126 = vlaneseq
          %v3127 = vshrl.u32 %v3126, 7
          %v3128 = vsub.s32 %v3125, %v3127
          %v3129 = vrot.slane %v3066, %v3128
          %v3133 = vpack.c.bf16 %v3122, %v3105
          %v3134 = vpack.c.bf16 %v3129, %v3129
          %v3135 = vld [vmem:[%s13] sm:$0xf]
          %v3136 = vld [vmem:[%s13 + $0x4] sm:$0xf]
          %v3137 = vld [vmem:[%s13 + $0x8] sm:$0xf]
          %v3138 = vld [vmem:[%s13 + $0xc] sm:$0xf]
          %v3139 = vld [vmem:[%s14] sm:$0x1]
          %v3141 = vlaneseq
          %v3142 = vshrl.u32 %v3141, 7
          %v3143 = vsub.s32 0, %v3142
          %v3144 = vrot.slane %v3139, %v3143
          %v3150 = vunpack.c.l.b16 %v3135
          %v3151 = vunpack.c.l.b16 %v3136
          %v3152 = vunpack.c.l.b16 %v3137
          %v3153 = vunpack.c.l.b16 %v3138
          %v3154 = vpack.c.b16 %v3151, %v3150
          %v3155 = vpack.c.b16 %v3153, %v3152
          %v3159 = vsel %vm773, %v3133, 0
          %v3162 = vsel %vm773, %v3134, 0
          %3164 = vmatprep.subr.bf16.mxu0 0
          %3165 = vmatpush1.bf16.msra.mxu0 %v3154
          %3166 = vmatprep.subr.bf16.mxu0 0
          %3167 = vmatpush1.bf16.msra.mxu0 %v3155
          %3168 = vmatprep.subr.bf16.mxu0 0
          %3169 = vmatpush1.bf16.msra.mxu0 0
          %3170 = vmatprep.subr.bf16.mxu0 0
          %3171 = vmatpush1.bf16.msra.mxu0 0
          %3172 = vmatprep.subr.bf16.mxu0 0
          %3173 = vmatpush1.bf16.msra.mxu0 0
          %3174 = vmatprep.subr.bf16.mxu0 0
          %3175 = vmatpush1.bf16.msra.mxu0 0
          %3176 = vmatprep.subr.bf16.mxu0 0
          %3177 = vmatpush1.bf16.msra.mxu0 0
          %3178 = vmatprep.subr.bf16.mxu0 0
          %3179 = vmatpush1.bf16.msra.mxu0 0
          %3180 = vmatprep.subr.bf16.mxu0 0
          %3181 = vmatpush1.bf16.msra.mxu0 0
          %3182 = vmatprep.subr.bf16.mxu0 0
          %3183 = vmatpush1.bf16.msra.mxu0 0
          %3184 = vmatprep.subr.bf16.mxu0 0
          %3185 = vmatpush1.bf16.msra.mxu0 0
          %3186 = vmatprep.subr.bf16.mxu0 0
          %3187 = vmatpush1.bf16.msra.mxu0 0
          %3188 = vmatprep.subr.bf16.mxu0 0
          %3189 = vmatpush1.bf16.msra.mxu0 0
          %3190 = vmatprep.subr.bf16.mxu0 0
          %3191 = vmatpush1.bf16.msra.mxu0 0
          %3192 = vmatprep.subr.bf16.mxu0 0
          %3193 = vmatpush1.bf16.msra.mxu0 0
          %3194 = vmatprep.subr.bf16.mxu0 0
          %3195 = vmatpush1.bf16.msra.mxu0 0
          %3196 = vmatprep.mubr.bf16.mxu0 0
          %3197 = vmatmul.mubr.bf16.gmra.mrb[0].mxu0 %v3159
          %v3198 = vpop.f32.mrb[0].mxu0
          %v3199 = vadd.f32 %v3144, %v3198
          %v3200 = vpop.f32.mrb[0].mxu0
          %v3201 = vpop.f32.mrb[0].mxu0
          %v3202 = vadd.f32 %v3144, %v3201
          %v3203 = vpop.f32.mrb[0].mxu0
          %3204 = vmatprep.mubr.bf16.mxu0 0
          %3205 = vmatmul.mubr.bf16.gmra.mrb[0].mxu0 %v3162
          %v3206 = vpop.f32.mrb[0].mxu0
          %v3207 = vadd.f32 %v3144, %v3206
          %v3208 = vpop.f32.mrb[0].mxu0
          %v3209 = vpop.f32.mrb[0].mxu0
          %v3210 = vpop.f32.mrb[0].mxu0
          %3211 = vdwg.mxu0
          %v3215 = vcombine.high %v3199, %v3199
          %v3217 = vunpack.c.l.s4 1983009808
          %v3218 = vunpack.c.0.s8 %v3217
          %v3219 = vlaneseq
          %v3220 = vshrl.u32 %v3219, 7
          %v3221 = vsub.s32 %v3218, %v3220
          %v3222 = vrot.slane %v3199, %v3221
          %v3224 = vunpack.c.l.s4 1983009808
          %v3225 = vunpack.c.0.s8 %v3224
          %v3226 = vlaneseq
          %v3227 = vshrl.u32 %v3226, 7
          %v3228 = vsub.s32 %v3225, %v3227
          %v3229 = vrot.slane %v3215, %v3228
          %v3230 = vcombine.high %v3222, %v3222
          %v3231 = vcombine.high %v3229, %v3229
          %v3232 = vcombine.high %v3202, %v3202
          %v3234 = vunpack.c.l.s4 1983009808
          %v3235 = vunpack.c.0.s8 %v3234
          %v3236 = vlaneseq
          %v3237 = vshrl.u32 %v3236, 7
          %v3238 = vsub.s32 %v3235, %v3237
          %v3239 = vrot.slane %v3202, %v3238
          %v3241 = vunpack.c.l.s4 1983009808
          %v3242 = vunpack.c.0.s8 %v3241
          %v3243 = vlaneseq
          %v3244 = vshrl.u32 %v3243, 7
          %v3245 = vsub.s32 %v3242, %v3244
          %v3246 = vrot.slane %v3232, %v3245
          %v3247 = vcombine.high %v3239, %v3239
          %v3248 = vcombine.high %v3246, %v3246
          %v3250 = vunpack.c.l.s4 1983009808
          %v3251 = vunpack.c.0.s8 %v3250
          %v3252 = vlaneseq
          %v3253 = vshrl.u32 %v3252, 7
          %v3254 = vsub.s32 %v3251, %v3253
          %v3255 = vrot.slane %v3207, %v3254
          %vm3265 = vcmask 517120
          %3266 = vst.msk [vmem:[#allocation3] sm:$0x3] %vm3265, %v3222
          %3267 = vst.msk [vmem:[#allocation3 + $0x2] sm:$0x3] %vm3265, %v3230
          %3268 = vst.msk [vmem:[#allocation3 + $0x4] sm:$0x3] %vm3265, %v3229
          %3269 = vst.msk [vmem:[#allocation3 + $0x6] sm:$0x3] %vm3265, %v3231
          %3270 = vst.msk [vmem:[#allocation3 + $0x8] sm:$0x3] %vm3265, %v3239
          %3271 = vst.msk [vmem:[#allocation3 + $0xa] sm:$0x3] %vm3265, %v3247
          %3272 = vst.msk [vmem:[#allocation3 + $0xc] sm:$0x3] %vm3265, %v3246
          %3273 = vst.msk [vmem:[#allocation3 + $0xe] sm:$0x3] %vm3265, %v3248
          %3274 = vst.msk [vmem:[#allocation3 + $0x10] sm:$0x3] %vm3265, %v3255
        $region88: #{tpu_custom_call.1} parent=79 // pred_fallthru
          _
        // Predicated region
        $region89: #{tpu_custom_call.1} parent=79 // pred_check
          %p3275 = pneg %p437
        $region90: #{tpu_custom_call.1} parent=79 // pred_check_branch
          %3277 = sbr.rel (%p3275) target = $region92
        $region91: #{tpu_custom_call.1} parent=79 // pred_region
          %s3279 = ssub.s32 288, 288
          %3280 = vsyncadd [#allocation4], %s3279
          %s3281 = smul.addr %s31, 32
          %s3282 = scalar_lea.hbm %s15, %s3281
          %s3283 = sshll.u32 [#allocation3], 4
          %s3284 = int_to_ptr.vmem [resolvable:$true] %s3283
          %3289 = dma.vmem_to_hbm [thread:$0]  %s3284, 288, %s3282, [#allocation4], 32, 32, 2
        $region92: #{tpu_custom_call.1} parent=79 // pred_fallthru
          _
        // Predicated region
        $region93: #{tpu_custom_call.1} parent=79 // pred_check
          %p3290 = pneg %p437
        $region94: #{tpu_custom_call.1} parent=79 // pred_check_branch
          %3292 = sbr.rel (%p3290) target = $region96
        $region95: #{tpu_custom_call.1} parent=79 // pred_region
          %3293 = dma.done [#allocation4], 288
        $region96: #{tpu_custom_call.1} parent=79 // pred_fallthru
          _
      $region80: #{tpu_custom_call.1} parent=5 // pred_fallthru
        _
      %p3294 = scmp.le.s32.totalorder 2, %s22
      // Predicated region
      $region97: #{tpu_custom_call.1} parent=5 // pred_check
        %p3295 = pneg %p3294
      $region98: #{tpu_custom_call.1} parent=5 // pred_check_branch
        %3297 = sbr.rel (%p3295) target = $region100
      $region99: #{tpu_custom_call.1} parent=5 // pred_region
        %s3298 = ssub.s32 %s22, 2
      $region100: #{tpu_custom_call.1} parent=5 // pred_fallthru
        _
    $region6: #{tpu_custom_call.1} parent=1 // loop_footer
      %s26 = sadd.s32 1, %s22
    $region7: #{tpu_custom_call.1} parent=1 // loop_footer_branch
      %21 = sbr.rel target = $region3
    $region8: #{tpu_custom_call.1} parent=1 // loop_exit
      _
    %3299 = vsyncpa [#allocation4], 1
    %s3300 = scalar_lea.sflag [#allocation4], 1
    %3301 = vsyncpa %s3300, 1

</llo_original>
